<compile_context>
chip_gen: v7x
topology: tpu7x:2x2x1
jax: 0.10.0
libtpu: 0.0.40
codegen_flags: <defaults>
</compile_context>

<pallas_src>
import math
import jax
import jax.numpy as jnp
from jax.experimental import pallas as pl
from jax.experimental.pallas import tpu as pltpu  # noqa: F401  (per template; TPU backend assumed)

# Small, TPU-tile-friendly shapes consistent with the Block structure.
B = 2          # batch
T = 16         # context length
E = 128        # embedding_dim (multiple of 128 -> lane-dense activations/stores)
H = 4          # num_heads
HS = E // H    # head_size = 32
FF = 4 * E     # feed-forward hidden = 512
EPS = 1e-5
NEG_INF = -1e30  # large finite negative; exp underflows to 0, avoids inf arithmetic


def block_kernel(x_ref, wqkv_ref, bqkv_ref, wp_ref, w1_ref, bff1_ref, w2_ref,
                 pk_ref, o_ref):
    """Whole transformer block on (B*T, E) activations in one invocation."""
    x = x_ref[...]                                   # (B*T, E) f32

    gamma1 = pk_ref[0:1, :]
    beta1 = pk_ref[1:2, :]
    gamma2 = pk_ref[2:3, :]
    beta2 = pk_ref[3:4, :]
    b_proj = pk_ref[4:5, :]
    b_ff2 = pk_ref[5:6, :]

    def layernorm(v, g, b):
        mu = jnp.mean(v, axis=-1, keepdims=True)
        var = jnp.mean(jnp.square(v - mu), axis=-1, keepdims=True)
        return (v - mu) * jax.lax.rsqrt(var + EPS) * g + b

    # ---- LayerNorm 1 over all B*T rows at once ----
    y = layernorm(x, gamma1, beta1)                  # (B*T, E)

    # ---- fused QKV projection: one (B*T,E) @ (E,3E) matmul ----
    # column layout: [Q heads | K heads | V heads]; 1/sqrt(HS) folded into Q.
    qkv = jnp.dot(y, wqkv_ref[...], preferred_element_type=jnp.float32) + bqkv_ref[...]

    # causal mask (faithful to reference: wei = K @ Q^T, masked where col > row)
    row = jax.lax.broadcasted_iota(jnp.int32, (T, T), 0)
    col = jax.lax.broadcasted_iota(jnp.int32, (T, T), 1)
    causal = col <= row

    # ---- attention scores for every (batch, head) block ----
    dn = (((1,), (1,)), ((), ()))                    # contract head dim: K @ Q^T
    scores = []
    for b in range(B):
        r0 = b * T
        for h in range(H):
            c0 = h * HS
            q_bh = qkv[r0:r0 + T, c0:c0 + HS]              # (T, HS), pre-scaled
            k_bh = qkv[r0:r0 + T, E + c0:E + c0 + HS]      # (T, HS)
            s = jax.lax.dot_general(k_bh, q_bh, dn,
                                    preferred_element_type=jnp.float32)  # (T, T)
            scores.append(jnp.where(causal, s, NEG_INF))

    # stack along sublanes (tile aligned) and run ONE batched softmax
    S = jnp.concatenate(scores, axis=0)              # (B*H*T, T)
    S = S - jnp.max(S, axis=-1, keepdims=True)
    P = jnp.exp(S)
    # exact reciprocal keeps 1e-4 parity with the reference;
    # pl.reciprocal(..., approx=True) is an essentially-free EUP op if a looser
    # tolerance is acceptable.
    P = P * pl.reciprocal(jnp.sum(P, axis=-1, keepdims=True), approx=False)

    # ---- P @ V with the head-concat folded into the output projection ----
    sa_rows = []
    for b in range(B):
        r0 = b * T
        acc = jnp.zeros((T, E), jnp.float32)
        for h in range(H):
            c0 = h * HS
            blk = (b * H + h) * T
            p_bh = P[blk:blk + T, :]                                   # (T, T)
            v_bh = qkv[r0:r0 + T, 2 * E + c0:2 * E + c0 + HS]          # (T, HS)
            o_bh = jnp.dot(p_bh, v_bh, preferred_element_type=jnp.float32)
            acc = acc + jnp.dot(o_bh, wp_ref[c0:c0 + HS, :],
                                preferred_element_type=jnp.float32)
        sa_rows.append(acc)
    sa = jnp.concatenate(sa_rows, axis=0) + b_proj   # (B*T, E)

    x1 = x + sa                                      # residual 1

    # ---- LayerNorm 2 + FeedForward (position-wise over all B*T rows) ----
    z = layernorm(x1, gamma2, beta2)
    h1 = jnp.maximum(
        jnp.dot(z, w1_ref[...], preferred_element_type=jnp.float32) + bff1_ref[...],
        0.0)
    ffo = jnp.dot(h1, w2_ref[...], preferred_element_type=jnp.float32) + b_ff2

    # residual 2; last dim E = 128 -> unmasked lane-dense store
    o_ref[...] = (x1 + ffo).astype(o_ref.dtype)


def block_forward(x, kp):
    b, t, e = x.shape
    x_flat = x.reshape(b * t, e)                     # free, contiguous reshape
    out_flat = pl.pallas_call(
        block_kernel,
        out_shape=jax.ShapeDtypeStruct((b * t, e), x.dtype),
    )(x_flat, kp["wqkv"], kp["bqkv"], kp["wp"], kp["w1"], kp["bff1"], kp["w2"],
      kp["packed"])
    return out_flat.reshape(b, t, e)


def init_params(key):
    """Raw per-head parameters mirroring the PyTorch module layout."""
    ks = jax.random.split(key, 12)
    s_e = 1.0 / math.sqrt(E)
    s_ff = 1.0 / math.sqrt(FF)
    return {
        "g1": jnp.ones((E,), jnp.float32),
        "beta1": jnp.zeros((E,), jnp.float32),
        "wq": jax.random.normal(ks[0], (H, E, HS), jnp.float32) * s_e,
        "bq": jax.random.normal(ks[1], (H, HS), jnp.float32) * 0.01,
        "wk": jax.random.normal(ks[2], (H, E, HS), jnp.float32) * s_e,
        "bk": jax.random.normal(ks[3], (H, HS), jnp.float32) * 0.01,
        "wv": jax.random.normal(ks[4], (H, E, HS), jnp.float32) * s_e,
        "bv": jax.random.normal(ks[5], (H, HS), jnp.float32) * 0.01,
        "wp": jax.random.normal(ks[6], (E, E), jnp.float32) * s_e,
        "bp": jax.random.normal(ks[7], (E,), jnp.float32) * 0.01,
        "g2": jnp.ones((E,), jnp.float32),
        "beta2": jnp.zeros((E,), jnp.float32),
        "w1": jax.random.normal(ks[8], (E, FF), jnp.float32) * s_e,
        "bff1": jax.random.normal(ks[9], (FF,), jnp.float32) * 0.01,
        "w2": jax.random.normal(ks[10], (FF, E), jnp.float32) * s_ff,
        "bff2": jnp.float32(0.01) * jax.random.normal(ks[11], (E,), jnp.float32),
    }


def pack_params(p):
    """Host-side repack: fused QKV weight/bias (scale folded into Q), packed vectors."""
    scale = 1.0 / math.sqrt(HS)

    def stack_heads(w):                      # (H, E, HS) -> (E, H*HS)
        return jnp.transpose(w, (1, 0, 2)).reshape(E, H * HS)

    wqkv = jnp.concatenate(
        [stack_heads(p["wq"] * scale), stack_heads(p["wk"]), stack_heads(p["wv"])],
        axis=-1)                                                     # (E, 3E)
    bqkv = jnp.concatenate(
        [(p["bq"] * scale).reshape(-1), p["bk"].reshape(-1), p["bv"].reshape(-1)]
    )[None, :]                                                       # (1, 3E)
    packed = jnp.stack(
        [p["g1"], p["beta1"], p["g2"], p["beta2"], p["bp"], p["bff2"]], axis=0)  # (6, E)
    return {
        "wqkv": wqkv,
        "bqkv": bqkv,
        "wp": p["wp"],
        "w1": p["w1"],
        "bff1": p["bff1"][None, :],          # (1, FF)
        "w2": p["w2"],
        "packed": packed,
    }


def block_reference(x, p):
    """Pure-JAX reference of the same forward pass (dropout = identity)."""
    def ln(v, g, b):
        mu = v.mean(-1, keepdims=True)
        var = ((v - mu) ** 2).mean(-1, keepdims=True)
        return (v - mu) / jnp.sqrt(var + EPS) * g + b

    t = x.shape[1]
    mask = jnp.tril(jnp.ones((t, t), bool))
    y = ln(x, p["g1"], p["beta1"])
    heads = []
    for h in range(H):
        k = y @ p["wk"][h] + p["bk"][h]
        q = y @ p["wq"][h] + p["bq"][h]
        v = y @ p["wv"][h] + p["bv"][h]
        # faithful to the PyTorch module: wei = key @ query^T
        wei = (k @ jnp.swapaxes(q, -1, -2)) * (HS ** -0.5)
        wei = jnp.where(mask, wei, -jnp.inf)
        wei = jax.nn.softmax(wei, axis=-1)
        heads.append(wei @ v)
    sa = jnp.concatenate(heads, -1) @ p["wp"] + p["bp"]
    x1 = x + sa
    z = ln(x1, p["g2"], p["beta2"])
    ffo = jnp.maximum(z @ p["w1"] + p["bff1"], 0.0) @ p["w2"] + p["bff2"]
    return x1 + ffo


if __name__ == "__main__":
    key = jax.random.PRNGKey(0)
    kp_key, kx_key = jax.random.split(key)
    raw = init_params(kp_key)
    kparams = pack_params(raw)
    x = jax.random.normal(kx_key, (B, T, E), jnp.float32)

    out = jax.block_until_ready(block_forward(x, kparams))

    with jax.default_matmul_precision("highest"):
        ref = block_reference(x, raw)

    assert out.shape == (B, T, E)
    assert jnp.allclose(out, ref, atol=1e-4, rtol=1e-4), "mismatch vs JAX reference"
    print("KERNEL_OK")
</pallas_src>

<mosaic_0001>
module attributes {stable_mosaic.version = 11 : i64} {
  func.func @block_kernel(%arg0: memref<32x128xf32, #tpu.memory_space<vmem>>, %arg1: memref<128x384xf32, #tpu.memory_space<vmem>>, %arg2: memref<1x384xf32, #tpu.memory_space<vmem>>, %arg3: memref<128x128xf32, #tpu.memory_space<vmem>>, %arg4: memref<128x512xf32, #tpu.memory_space<vmem>>, %arg5: memref<1x512xf32, #tpu.memory_space<vmem>>, %arg6: memref<512x128xf32, #tpu.memory_space<vmem>>, %arg7: memref<6x128xf32, #tpu.memory_space<vmem>>, %arg8: memref<32x128xf32, #tpu.memory_space<vmem>>) attributes {dimension_semantics = [], scalar_prefetch = 0 : i64, scratch_operands = 0 : i64, tpu.core_type = #tpu.core_type<tc>} {
    %c0 = arith.constant 0 : index
    %c0_0 = arith.constant 0 : index
    %0 = vector.load %arg0[%c0, %c0_0] : memref<32x128xf32, #tpu.memory_space<vmem>>, vector<32x128xf32>
    %c0_1 = arith.constant 0 : index
    %c0_2 = arith.constant 0 : index
    %1 = vector.load %arg7[%c0_1, %c0_2] : memref<6x128xf32, #tpu.memory_space<vmem>>, vector<1x128xf32>
    %c1 = arith.constant 1 : index
    %c0_3 = arith.constant 0 : index
    %2 = vector.load %arg7[%c1, %c0_3] : memref<6x128xf32, #tpu.memory_space<vmem>>, vector<1x128xf32>
    %c2 = arith.constant 2 : index
    %c0_4 = arith.constant 0 : index
    %3 = vector.load %arg7[%c2, %c0_4] : memref<6x128xf32, #tpu.memory_space<vmem>>, vector<1x128xf32>
    %c3 = arith.constant 3 : index
    %c0_5 = arith.constant 0 : index
    %4 = vector.load %arg7[%c3, %c0_5] : memref<6x128xf32, #tpu.memory_space<vmem>>, vector<1x128xf32>
    %c4 = arith.constant 4 : index
    %c0_6 = arith.constant 0 : index
    %5 = vector.load %arg7[%c4, %c0_6] : memref<6x128xf32, #tpu.memory_space<vmem>>, vector<1x128xf32>
    %c5 = arith.constant 5 : index
    %c0_7 = arith.constant 0 : index
    %6 = vector.load %arg7[%c5, %c0_7] : memref<6x128xf32, #tpu.memory_space<vmem>>, vector<1x128xf32>
    %cst = arith.constant dense<0.000000e+00> : vector<32xf32>
    %7 = vector.multi_reduction <add>, %0, %cst [1] : vector<32x128xf32> to vector<32xf32>
    %8 = vector.shape_cast %7 : vector<32xf32> to vector<32x1xf32>
    %cst_8 = arith.constant 1.280000e+02 : f32
    %9 = vector.broadcast %cst_8 : f32 to vector<32x1xf32>
    %10 = arith.divf %8, %9 : vector<32x1xf32>
    %11 = vector.broadcast %10 : vector<32x1xf32> to vector<32x128xf32>
    %12 = arith.subf %0, %11 : vector<32x128xf32>
    %13 = arith.mulf %12, %12 : vector<32x128xf32>
    %cst_9 = arith.constant dense<0.000000e+00> : vector<32xf32>
    %14 = vector.multi_reduction <add>, %13, %cst_9 [1] : vector<32x128xf32> to vector<32xf32>
    %15 = vector.shape_cast %14 : vector<32xf32> to vector<32x1xf32>
    %cst_10 = arith.constant 1.280000e+02 : f32
    %16 = vector.broadcast %cst_10 : f32 to vector<32x1xf32>
    %17 = arith.divf %15, %16 : vector<32x1xf32>
    %18 = vector.broadcast %10 : vector<32x1xf32> to vector<32x128xf32>
    %19 = arith.subf %0, %18 : vector<32x128xf32>
    %cst_11 = arith.constant 9.99999974E-6 : f32
    %20 = vector.broadcast %cst_11 : f32 to vector<32x1xf32>
    %21 = arith.addf %17, %20 : vector<32x1xf32>
    %22 = math.rsqrt %21 : vector<32x1xf32>
    %23 = vector.broadcast %22 : vector<32x1xf32> to vector<32x128xf32>
    %24 = arith.mulf %19, %23 : vector<32x128xf32>
    %25 = vector.broadcast %1 : vector<1x128xf32> to vector<32x128xf32>
    %26 = arith.mulf %24, %25 : vector<32x128xf32>
    %27 = vector.broadcast %2 : vector<1x128xf32> to vector<32x128xf32>
    %28 = arith.addf %26, %27 : vector<32x128xf32>
    %c0_12 = arith.constant 0 : index
    %c0_13 = arith.constant 0 : index
    %29 = vector.load %arg1[%c0_12, %c0_13] : memref<128x384xf32, #tpu.memory_space<vmem>>, vector<128x384xf32>
    %cst_14 = arith.constant dense<0.000000e+00> : vector<32x384xf32>
    %30 = tpu.matmul %28, %29, %cst_14 {dimension_numbers = #tpu.dot_dimension_numbers<[1], [0], [0], [1], [0, 0, 1, 1], [], []>} : vector<32x128xf32>, vector<128x384xf32>, vector<32x384xf32> -> vector<32x384xf32>
    %c0_15 = arith.constant 0 : index
    %c0_16 = arith.constant 0 : index
    %31 = vector.load %arg2[%c0_15, %c0_16] : memref<1x384xf32, #tpu.memory_space<vmem>>, vector<1x384xf32>
    %32 = vector.broadcast %31 : vector<1x384xf32> to vector<32x384xf32>
    %33 = arith.addf %30, %32 : vector<32x384xf32>
    %34 = tpu.iota {dimensions = array<i32: 0>} : vector<16x16xi32>
    %35 = tpu.iota {dimensions = array<i32: 1>} : vector<16x16xi32>
    %36 = arith.cmpi sle, %35, %34 : vector<16x16xi32>
    %37 = vector.extract_strided_slice %33 {offsets = [0, 0], sizes = [16, 32], strides = [1, 1]} : vector<32x384xf32> to vector<16x32xf32>
    %38 = vector.extract_strided_slice %33 {offsets = [0, 128], sizes = [16, 32], strides = [1, 1]} : vector<32x384xf32> to vector<16x32xf32>
    %cst_17 = arith.constant dense<0.000000e+00> : vector<16x16xf32>
    %39 = tpu.matmul %38, %37, %cst_17 {dimension_numbers = #tpu.dot_dimension_numbers<[1], [1], [0], [0], [0, 0, 1, 0], [], []>} : vector<16x32xf32>, vector<16x32xf32>, vector<16x16xf32> -> vector<16x16xf32>
    %cst_18 = arith.constant -1.000000e+30 : f32
    %40 = vector.broadcast %cst_18 : f32 to vector<16x16xf32>
    %41 = arith.select %36, %39, %40 : vector<16x16xi1>, vector<16x16xf32>
    %42 = vector.extract_strided_slice %33 {offsets = [0, 32], sizes = [16, 32], strides = [1, 1]} : vector<32x384xf32> to vector<16x32xf32>
    %43 = vector.extract_strided_slice %33 {offsets = [0, 160], sizes = [16, 32], strides = [1, 1]} : vector<32x384xf32> to vector<16x32xf32>
    %cst_19 = arith.constant dense<0.000000e+00> : vector<16x16xf32>
    %44 = tpu.matmul %43, %42, %cst_19 {dimension_numbers = #tpu.dot_dimension_numbers<[1], [1], [0], [0], [0, 0, 1, 0], [], []>} : vector<16x32xf32>, vector<16x32xf32>, vector<16x16xf32> -> vector<16x16xf32>
    %cst_20 = arith.constant -1.000000e+30 : f32
    %45 = vector.broadcast %cst_20 : f32 to vector<16x16xf32>
    %46 = arith.select %36, %44, %45 : vector<16x16xi1>, vector<16x16xf32>
    %47 = vector.extract_strided_slice %33 {offsets = [0, 64], sizes = [16, 32], strides = [1, 1]} : vector<32x384xf32> to vector<16x32xf32>
    %48 = vector.extract_strided_slice %33 {offsets = [0, 192], sizes = [16, 32], strides = [1, 1]} : vector<32x384xf32> to vector<16x32xf32>
    %cst_21 = arith.constant dense<0.000000e+00> : vector<16x16xf32>
    %49 = tpu.matmul %48, %47, %cst_21 {dimension_numbers = #tpu.dot_dimension_numbers<[1], [1], [0], [0], [0, 0, 1, 0], [], []>} : vector<16x32xf32>, vector<16x32xf32>, vector<16x16xf32> -> vector<16x16xf32>
    %cst_22 = arith.constant -1.000000e+30 : f32
    %50 = vector.broadcast %cst_22 : f32 to vector<16x16xf32>
    %51 = arith.select %36, %49, %50 : vector<16x16xi1>, vector<16x16xf32>
    %52 = vector.extract_strided_slice %33 {offsets = [0, 96], sizes = [16, 32], strides = [1, 1]} : vector<32x384xf32> to vector<16x32xf32>
    %53 = vector.extract_strided_slice %33 {offsets = [0, 224], sizes = [16, 32], strides = [1, 1]} : vector<32x384xf32> to vector<16x32xf32>
    %cst_23 = arith.constant dense<0.000000e+00> : vector<16x16xf32>
    %54 = tpu.matmul %53, %52, %cst_23 {dimension_numbers = #tpu.dot_dimension_numbers<[1], [1], [0], [0], [0, 0, 1, 0], [], []>} : vector<16x32xf32>, vector<16x32xf32>, vector<16x16xf32> -> vector<16x16xf32>
    %cst_24 = arith.constant -1.000000e+30 : f32
    %55 = vector.broadcast %cst_24 : f32 to vector<16x16xf32>
    %56 = arith.select %36, %54, %55 : vector<16x16xi1>, vector<16x16xf32>
    %57 = vector.extract_strided_slice %33 {offsets = [16, 0], sizes = [16, 32], strides = [1, 1]} : vector<32x384xf32> to vector<16x32xf32>
    %58 = vector.extract_strided_slice %33 {offsets = [16, 128], sizes = [16, 32], strides = [1, 1]} : vector<32x384xf32> to vector<16x32xf32>
    %cst_25 = arith.constant dense<0.000000e+00> : vector<16x16xf32>
    %59 = tpu.matmul %58, %57, %cst_25 {dimension_numbers = #tpu.dot_dimension_numbers<[1], [1], [0], [0], [0, 0, 1, 0], [], []>} : vector<16x32xf32>, vector<16x32xf32>, vector<16x16xf32> -> vector<16x16xf32>
    %cst_26 = arith.constant -1.000000e+30 : f32
    %60 = vector.broadcast %cst_26 : f32 to vector<16x16xf32>
    %61 = arith.select %36, %59, %60 : vector<16x16xi1>, vector<16x16xf32>
    %62 = vector.extract_strided_slice %33 {offsets = [16, 32], sizes = [16, 32], strides = [1, 1]} : vector<32x384xf32> to vector<16x32xf32>
    %63 = vector.extract_strided_slice %33 {offsets = [16, 160], sizes = [16, 32], strides = [1, 1]} : vector<32x384xf32> to vector<16x32xf32>
    %cst_27 = arith.constant dense<0.000000e+00> : vector<16x16xf32>
    %64 = tpu.matmul %63, %62, %cst_27 {dimension_numbers = #tpu.dot_dimension_numbers<[1], [1], [0], [0], [0, 0, 1, 0], [], []>} : vector<16x32xf32>, vector<16x32xf32>, vector<16x16xf32> -> vector<16x16xf32>
    %cst_28 = arith.constant -1.000000e+30 : f32
    %65 = vector.broadcast %cst_28 : f32 to vector<16x16xf32>
    %66 = arith.select %36, %64, %65 : vector<16x16xi1>, vector<16x16xf32>
    %67 = vector.extract_strided_slice %33 {offsets = [16, 64], sizes = [16, 32], strides = [1, 1]} : vector<32x384xf32> to vector<16x32xf32>
    %68 = vector.extract_strided_slice %33 {offsets = [16, 192], sizes = [16, 32], strides = [1, 1]} : vector<32x384xf32> to vector<16x32xf32>
    %cst_29 = arith.constant dense<0.000000e+00> : vector<16x16xf32>
    %69 = tpu.matmul %68, %67, %cst_29 {dimension_numbers = #tpu.dot_dimension_numbers<[1], [1], [0], [0], [0, 0, 1, 0], [], []>} : vector<16x32xf32>, vector<16x32xf32>, vector<16x16xf32> -> vector<16x16xf32>
    %cst_30 = arith.constant -1.000000e+30 : f32
    %70 = vector.broadcast %cst_30 : f32 to vector<16x16xf32>
    %71 = arith.select %36, %69, %70 : vector<16x16xi1>, vector<16x16xf32>
    %72 = vector.extract_strided_slice %33 {offsets = [16, 96], sizes = [16, 32], strides = [1, 1]} : vector<32x384xf32> to vector<16x32xf32>
    %73 = vector.extract_strided_slice %33 {offsets = [16, 224], sizes = [16, 32], strides = [1, 1]} : vector<32x384xf32> to vector<16x32xf32>
    %cst_31 = arith.constant dense<0.000000e+00> : vector<16x16xf32>
    %74 = tpu.matmul %73, %72, %cst_31 {dimension_numbers = #tpu.dot_dimension_numbers<[1], [1], [0], [0], [0, 0, 1, 0], [], []>} : vector<16x32xf32>, vector<16x32xf32>, vector<16x16xf32> -> vector<16x16xf32>
    %cst_32 = arith.constant -1.000000e+30 : f32
    %75 = vector.broadcast %cst_32 : f32 to vector<16x16xf32>
    %76 = arith.select %36, %74, %75 : vector<16x16xi1>, vector<16x16xf32>
    %77 = tpu.concatenate %41, %46, %51, %56, %61, %66, %71, %76 in 0 : vector<16x16xf32>, vector<16x16xf32>, vector<16x16xf32>, vector<16x16xf32>, vector<16x16xf32>, vector<16x16xf32>, vector<16x16xf32>, vector<16x16xf32> -> vector<128x16xf32>
    %cst_33 = arith.constant dense<0xFF800000> : vector<128xf32>
    %78 = vector.multi_reduction <maximumf>, %77, %cst_33 [1] : vector<128x16xf32> to vector<128xf32>
    %79 = vector.shape_cast %78 : vector<128xf32> to vector<128x1xf32>
    %80 = vector.broadcast %79 : vector<128x1xf32> to vector<128x16xf32>
    %81 = arith.subf %77, %80 : vector<128x16xf32>
    %82 = math.exp %81 : vector<128x16xf32>
    %cst_34 = arith.constant dense<0.000000e+00> : vector<128xf32>
    %83 = vector.multi_reduction <add>, %82, %cst_34 [1] : vector<128x16xf32> to vector<128xf32>
    %84 = vector.shape_cast %83 : vector<128xf32> to vector<128x1xf32>
    %85 = tpu.reciprocal %84 : vector<128x1xf32> -> vector<128x1xf32>
    %86 = vector.broadcast %85 : vector<128x1xf32> to vector<128x16xf32>
    %87 = arith.mulf %82, %86 : vector<128x16xf32>
    %cst_35 = arith.constant 0.000000e+00 : f32
    %88 = vector.broadcast %cst_35 : f32 to vector<16x128xf32>
    %89 = vector.extract_strided_slice %87 {offsets = [0, 0], sizes = [16, 16], strides = [1, 1]} : vector<128x16xf32> to vector<16x16xf32>
    %90 = vector.extract_strided_slice %33 {offsets = [0, 256], sizes = [16, 32], strides = [1, 1]} : vector<32x384xf32> to vector<16x32xf32>
    %cst_36 = arith.constant dense<0.000000e+00> : vector<16x32xf32>
    %91 = tpu.matmul %89, %90, %cst_36 {dimension_numbers = #tpu.dot_dimension_numbers<[1], [0], [0], [1], [0, 0, 1, 1], [], []>} : vector<16x16xf32>, vector<16x32xf32>, vector<16x32xf32> -> vector<16x32xf32>
    %c0_37 = arith.constant 0 : index
    %c0_38 = arith.constant 0 : index
    %92 = vector.load %arg3[%c0_37, %c0_38] : memref<128x128xf32, #tpu.memory_space<vmem>>, vector<32x128xf32>
    %cst_39 = arith.constant dense<0.000000e+00> : vector<16x128xf32>
    %93 = tpu.matmul %91, %92, %cst_39 {dimension_numbers = #tpu.dot_dimension_numbers<[1], [0], [0], [1], [0, 0, 1, 1], [], []>} : vector<16x32xf32>, vector<32x128xf32>, vector<16x128xf32> -> vector<16x128xf32>
    %94 = arith.addf %88, %93 : vector<16x128xf32>
    %95 = vector.extract_strided_slice %87 {offsets = [16, 0], sizes = [16, 16], strides = [1, 1]} : vector<128x16xf32> to vector<16x16xf32>
    %96 = vector.extract_strided_slice %33 {offsets = [0, 288], sizes = [16, 32], strides = [1, 1]} : vector<32x384xf32> to vector<16x32xf32>
    %cst_40 = arith.constant dense<0.000000e+00> : vector<16x32xf32>
    %97 = tpu.matmul %95, %96, %cst_40 {dimension_numbers = #tpu.dot_dimension_numbers<[1], [0], [0], [1], [0, 0, 1, 1], [], []>} : vector<16x16xf32>, vector<16x32xf32>, vector<16x32xf32> -> vector<16x32xf32>
    %c32 = arith.constant 32 : index
    %c0_41 = arith.constant 0 : index
    %98 = vector.load %arg3[%c32, %c0_41] : memref<128x128xf32, #tpu.memory_space<vmem>>, vector<32x128xf32>
    %cst_42 = arith.constant dense<0.000000e+00> : vector<16x128xf32>
    %99 = tpu.matmul %97, %98, %cst_42 {dimension_numbers = #tpu.dot_dimension_numbers<[1], [0], [0], [1], [0, 0, 1, 1], [], []>} : vector<16x32xf32>, vector<32x128xf32>, vector<16x128xf32> -> vector<16x128xf32>
    %100 = arith.addf %94, %99 : vector<16x128xf32>
    %101 = vector.extract_strided_slice %87 {offsets = [32, 0], sizes = [16, 16], strides = [1, 1]} : vector<128x16xf32> to vector<16x16xf32>
    %102 = vector.extract_strided_slice %33 {offsets = [0, 320], sizes = [16, 32], strides = [1, 1]} : vector<32x384xf32> to vector<16x32xf32>
    %cst_43 = arith.constant dense<0.000000e+00> : vector<16x32xf32>
    %103 = tpu.matmul %101, %102, %cst_43 {dimension_numbers = #tpu.dot_dimension_numbers<[1], [0], [0], [1], [0, 0, 1, 1], [], []>} : vector<16x16xf32>, vector<16x32xf32>, vector<16x32xf32> -> vector<16x32xf32>
    %c64 = arith.constant 64 : index
    %c0_44 = arith.constant 0 : index
    %104 = vector.load %arg3[%c64, %c0_44] : memref<128x128xf32, #tpu.memory_space<vmem>>, vector<32x128xf32>
    %cst_45 = arith.constant dense<0.000000e+00> : vector<16x128xf32>
    %105 = tpu.matmul %103, %104, %cst_45 {dimension_numbers = #tpu.dot_dimension_numbers<[1], [0], [0], [1], [0, 0, 1, 1], [], []>} : vector<16x32xf32>, vector<32x128xf32>, vector<16x128xf32> -> vector<16x128xf32>
    %106 = arith.addf %100, %105 : vector<16x128xf32>
    %107 = vector.extract_strided_slice %87 {offsets = [48, 0], sizes = [16, 16], strides = [1, 1]} : vector<128x16xf32> to vector<16x16xf32>
    %108 = vector.extract_strided_slice %33 {offsets = [0, 352], sizes = [16, 32], strides = [1, 1]} : vector<32x384xf32> to vector<16x32xf32>
    %cst_46 = arith.constant dense<0.000000e+00> : vector<16x32xf32>
    %109 = tpu.matmul %107, %108, %cst_46 {dimension_numbers = #tpu.dot_dimension_numbers<[1], [0], [0], [1], [0, 0, 1, 1], [], []>} : vector<16x16xf32>, vector<16x32xf32>, vector<16x32xf32> -> vector<16x32xf32>
    %c96 = arith.constant 96 : index
    %c0_47 = arith.constant 0 : index
    %110 = vector.load %arg3[%c96, %c0_47] : memref<128x128xf32, #tpu.memory_space<vmem>>, vector<32x128xf32>
    %cst_48 = arith.constant dense<0.000000e+00> : vector<16x128xf32>
    %111 = tpu.matmul %109, %110, %cst_48 {dimension_numbers = #tpu.dot_dimension_numbers<[1], [0], [0], [1], [0, 0, 1, 1], [], []>} : vector<16x32xf32>, vector<32x128xf32>, vector<16x128xf32> -> vector<16x128xf32>
    %112 = arith.addf %106, %111 : vector<16x128xf32>
    %cst_49 = arith.constant 0.000000e+00 : f32
    %113 = vector.broadcast %cst_49 : f32 to vector<16x128xf32>
    %114 = vector.extract_strided_slice %87 {offsets = [64, 0], sizes = [16, 16], strides = [1, 1]} : vector<128x16xf32> to vector<16x16xf32>
    %115 = vector.extract_strided_slice %33 {offsets = [16, 256], sizes = [16, 32], strides = [1, 1]} : vector<32x384xf32> to vector<16x32xf32>
    %cst_50 = arith.constant dense<0.000000e+00> : vector<16x32xf32>
    %116 = tpu.matmul %114, %115, %cst_50 {dimension_numbers = #tpu.dot_dimension_numbers<[1], [0], [0], [1], [0, 0, 1, 1], [], []>} : vector<16x16xf32>, vector<16x32xf32>, vector<16x32xf32> -> vector<16x32xf32>
    %c0_51 = arith.constant 0 : index
    %c0_52 = arith.constant 0 : index
    %117 = vector.load %arg3[%c0_51, %c0_52] : memref<128x128xf32, #tpu.memory_space<vmem>>, vector<32x128xf32>
    %cst_53 = arith.constant dense<0.000000e+00> : vector<16x128xf32>
    %118 = tpu.matmul %116, %117, %cst_53 {dimension_numbers = #tpu.dot_dimension_numbers<[1], [0], [0], [1], [0, 0, 1, 1], [], []>} : vector<16x32xf32>, vector<32x128xf32>, vector<16x128xf32> -> vector<16x128xf32>
    %119 = arith.addf %113, %118 : vector<16x128xf32>
    %120 = vector.extract_strided_slice %87 {offsets = [80, 0], sizes = [16, 16], strides = [1, 1]} : vector<128x16xf32> to vector<16x16xf32>
    %121 = vector.extract_strided_slice %33 {offsets = [16, 288], sizes = [16, 32], strides = [1, 1]} : vector<32x384xf32> to vector<16x32xf32>
    %cst_54 = arith.constant dense<0.000000e+00> : vector<16x32xf32>
    %122 = tpu.matmul %120, %121, %cst_54 {dimension_numbers = #tpu.dot_dimension_numbers<[1], [0], [0], [1], [0, 0, 1, 1], [], []>} : vector<16x16xf32>, vector<16x32xf32>, vector<16x32xf32> -> vector<16x32xf32>
    %c32_55 = arith.constant 32 : index
    %c0_56 = arith.constant 0 : index
    %123 = vector.load %arg3[%c32_55, %c0_56] : memref<128x128xf32, #tpu.memory_space<vmem>>, vector<32x128xf32>
    %cst_57 = arith.constant dense<0.000000e+00> : vector<16x128xf32>
    %124 = tpu.matmul %122, %123, %cst_57 {dimension_numbers = #tpu.dot_dimension_numbers<[1], [0], [0], [1], [0, 0, 1, 1], [], []>} : vector<16x32xf32>, vector<32x128xf32>, vector<16x128xf32> -> vector<16x128xf32>
    %125 = arith.addf %119, %124 : vector<16x128xf32>
    %126 = vector.extract_strided_slice %87 {offsets = [96, 0], sizes = [16, 16], strides = [1, 1]} : vector<128x16xf32> to vector<16x16xf32>
    %127 = vector.extract_strided_slice %33 {offsets = [16, 320], sizes = [16, 32], strides = [1, 1]} : vector<32x384xf32> to vector<16x32xf32>
    %cst_58 = arith.constant dense<0.000000e+00> : vector<16x32xf32>
    %128 = tpu.matmul %126, %127, %cst_58 {dimension_numbers = #tpu.dot_dimension_numbers<[1], [0], [0], [1], [0, 0, 1, 1], [], []>} : vector<16x16xf32>, vector<16x32xf32>, vector<16x32xf32> -> vector<16x32xf32>
    %c64_59 = arith.constant 64 : index
    %c0_60 = arith.constant 0 : index
    %129 = vector.load %arg3[%c64_59, %c0_60] : memref<128x128xf32, #tpu.memory_space<vmem>>, vector<32x128xf32>
    %cst_61 = arith.constant dense<0.000000e+00> : vector<16x128xf32>
    %130 = tpu.matmul %128, %129, %cst_61 {dimension_numbers = #tpu.dot_dimension_numbers<[1], [0], [0], [1], [0, 0, 1, 1], [], []>} : vector<16x32xf32>, vector<32x128xf32>, vector<16x128xf32> -> vector<16x128xf32>
    %131 = arith.addf %125, %130 : vector<16x128xf32>
    %132 = vector.extract_strided_slice %87 {offsets = [112, 0], sizes = [16, 16], strides = [1, 1]} : vector<128x16xf32> to vector<16x16xf32>
    %133 = vector.extract_strided_slice %33 {offsets = [16, 352], sizes = [16, 32], strides = [1, 1]} : vector<32x384xf32> to vector<16x32xf32>
    %cst_62 = arith.constant dense<0.000000e+00> : vector<16x32xf32>
    %134 = tpu.matmul %132, %133, %cst_62 {dimension_numbers = #tpu.dot_dimension_numbers<[1], [0], [0], [1], [0, 0, 1, 1], [], []>} : vector<16x16xf32>, vector<16x32xf32>, vector<16x32xf32> -> vector<16x32xf32>
    %c96_63 = arith.constant 96 : index
    %c0_64 = arith.constant 0 : index
    %135 = vector.load %arg3[%c96_63, %c0_64] : memref<128x128xf32, #tpu.memory_space<vmem>>, vector<32x128xf32>
    %cst_65 = arith.constant dense<0.000000e+00> : vector<16x128xf32>
    %136 = tpu.matmul %134, %135, %cst_65 {dimension_numbers = #tpu.dot_dimension_numbers<[1], [0], [0], [1], [0, 0, 1, 1], [], []>} : vector<16x32xf32>, vector<32x128xf32>, vector<16x128xf32> -> vector<16x128xf32>
    %137 = arith.addf %131, %136 : vector<16x128xf32>
    %138 = tpu.concatenate %112, %137 in 0 : vector<16x128xf32>, vector<16x128xf32> -> vector<32x128xf32>
    %139 = vector.broadcast %5 : vector<1x128xf32> to vector<32x128xf32>
    %140 = arith.addf %138, %139 : vector<32x128xf32>
    %141 = arith.addf %0, %140 : vector<32x128xf32>
    %cst_66 = arith.constant dense<0.000000e+00> : vector<32xf32>
    %142 = vector.multi_reduction <add>, %141, %cst_66 [1] : vector<32x128xf32> to vector<32xf32>
    %143 = vector.shape_cast %142 : vector<32xf32> to vector<32x1xf32>
    %cst_67 = arith.constant 1.280000e+02 : f32
    %144 = vector.broadcast %cst_67 : f32 to vector<32x1xf32>
    %145 = arith.divf %143, %144 : vector<32x1xf32>
    %146 = vector.broadcast %145 : vector<32x1xf32> to vector<32x128xf32>
    %147 = arith.subf %141, %146 : vector<32x128xf32>
    %148 = arith.mulf %147, %147 : vector<32x128xf32>
    %cst_68 = arith.constant dense<0.000000e+00> : vector<32xf32>
    %149 = vector.multi_reduction <add>, %148, %cst_68 [1] : vector<32x128xf32> to vector<32xf32>
    %150 = vector.shape_cast %149 : vector<32xf32> to vector<32x1xf32>
    %cst_69 = arith.constant 1.280000e+02 : f32
    %151 = vector.broadcast %cst_69 : f32 to vector<32x1xf32>
    %152 = arith.divf %150, %151 : vector<32x1xf32>
    %153 = vector.broadcast %145 : vector<32x1xf32> to vector<32x128xf32>
    %154 = arith.subf %141, %153 : vector<32x128xf32>
    %cst_70 = arith.constant 9.99999974E-6 : f32
    %155 = vector.broadcast %cst_70 : f32 to vector<32x1xf32>
    %156 = arith.addf %152, %155 : vector<32x1xf32>
    %157 = math.rsqrt %156 : vector<32x1xf32>
    %158 = vector.broadcast %157 : vector<32x1xf32> to vector<32x128xf32>
    %159 = arith.mulf %154, %158 : vector<32x128xf32>
    %160 = vector.broadcast %3 : vector<1x128xf32> to vector<32x128xf32>
    %161 = arith.mulf %159, %160 : vector<32x128xf32>
    %162 = vector.broadcast %4 : vector<1x128xf32> to vector<32x128xf32>
    %163 = arith.addf %161, %162 : vector<32x128xf32>
    %c0_71 = arith.constant 0 : index
    %c0_72 = arith.constant 0 : index
    %164 = vector.load %arg4[%c0_71, %c0_72] : memref<128x512xf32, #tpu.memory_space<vmem>>, vector<128x512xf32>
    %cst_73 = arith.constant dense<0.000000e+00> : vector<32x512xf32>
    %165 = tpu.matmul %163, %164, %cst_73 {dimension_numbers = #tpu.dot_dimension_numbers<[1], [0], [0], [1], [0, 0, 1, 1], [], []>} : vector<32x128xf32>, vector<128x512xf32>, vector<32x512xf32> -> vector<32x512xf32>
    %c0_74 = arith.constant 0 : index
    %c0_75 = arith.constant 0 : index
    %166 = vector.load %arg5[%c0_74, %c0_75] : memref<1x512xf32, #tpu.memory_space<vmem>>, vector<1x512xf32>
    %167 = vector.broadcast %166 : vector<1x512xf32> to vector<32x512xf32>
    %168 = arith.addf %165, %167 : vector<32x512xf32>
    %cst_76 = arith.constant 0.000000e+00 : f32
    %169 = vector.broadcast %cst_76 : f32 to vector<32x512xf32>
    %170 = arith.maximumf %168, %169 : vector<32x512xf32>
    %c0_77 = arith.constant 0 : index
    %c0_78 = arith.constant 0 : index
    %171 = vector.load %arg6[%c0_77, %c0_78] : memref<512x128xf32, #tpu.memory_space<vmem>>, vector<512x128xf32>
    %cst_79 = arith.constant dense<0.000000e+00> : vector<32x128xf32>
    %172 = tpu.matmul %170, %171, %cst_79 {dimension_numbers = #tpu.dot_dimension_numbers<[1], [0], [0], [1], [0, 0, 1, 1], [], []>} : vector<32x512xf32>, vector<512x128xf32>, vector<32x128xf32> -> vector<32x128xf32>
    %173 = vector.broadcast %6 : vector<1x128xf32> to vector<32x128xf32>
    %174 = arith.addf %172, %173 : vector<32x128xf32>
    %175 = arith.addf %141, %174 : vector<32x128xf32>
    %c0_80 = arith.constant 0 : index
    %c0_81 = arith.constant 0 : index
    %176 = vector.load %arg8[%c0_80, %c0_81] : memref<32x128xf32, #tpu.memory_space<vmem>>, vector<32x128xf32>
    tpu.vector_store %arg8[%c0_80, %c0_81], %175 {strides = array<i32>} : memref<32x128xf32, #tpu.memory_space<vmem>>, vector<32x128xf32>,
    return
  }
}

</mosaic_0001>

<llo_original>
// kernel: tpu_custom_call.1
$region0: #{tpu_custom_call.1}
  #allocation0 [shape = 'u32[]', space=smem, size = 0x4, offset = 0x4, fixed_abs, tag = 'smem constant byte address 0x4 - core index']
  #allocation1 [shape = 'u32[144,128]{1,0:T(1,128)}', space=vmem, size = 0x12000, scoped, tag = 'internal scratch']
  %s0 = inlined_call_operand.hbm [shape: f32[32,128], index: 0, kind: input, shape index: {}]
  %s1 = inlined_call_operand.hbm [shape: f32[128,384], index: 1, kind: input, shape index: {}]
  %s2 = inlined_call_operand.vmem [shape: f32[1,384], index: 2, kind: input, shape index: {}]
  %s3 = inlined_call_operand.hbm [shape: f32[128,128], index: 3, kind: input, shape index: {}]
  %s4 = inlined_call_operand.hbm [shape: f32[128,512], index: 4, kind: input, shape index: {}]
  %s5 = inlined_call_operand.vmem [shape: f32[1,512], index: 5, kind: input, shape index: {}]
  %s6 = inlined_call_operand.hbm [shape: f32[512,128], index: 6, kind: input, shape index: {}]
  %s7 = inlined_call_operand.vmem [shape: f32[6,128], index: 7, kind: input, shape index: {}]
  %s8 = inlined_call_operand.hbm [shape: f32[32,128], index: 8, kind: output, shape index: {}]
  %s9 = sld [smem:[#allocation0]]
  $region62: #{tpu_custom_call.1} parent=0
    _
  %s11 = ssub.s32 1, %s9
  %s12 = scalar_select 0, %s11, %s9
  $region1: #{tpu_custom_call.1} parent=0
    #allocation2 [shape = 'u8[16384]{0}', space=vmem, size = 0x4000, scoped, tag = 'input window, operand 0, single buffered']
    #allocation3 [shape = 's32[1]{0}', space=sflag, size = 0x4, scoped, tag = 'scoped memory for tpu_custom_call.1']
    #allocation4 [shape = 's32[1]{0}', space=sflag, size = 0x4, scoped, tag = 'scoped memory for tpu_custom_call.1']
    #allocation5 [shape = 'u8[196608]{0}', space=vmem, size = 0x30000, scoped, tag = 'input window, operand 1, single buffered']
    #allocation6 [shape = 's32[1]{0}', space=sflag, size = 0x4, scoped, tag = 'scoped memory for tpu_custom_call.1']
    #allocation7 [shape = 'u8[65536]{0}', space=vmem, size = 0x10000, scoped, tag = 'input window, operand 3, single buffered']
    #allocation8 [shape = 'u8[262144]{0}', space=vmem, size = 0x40000, scoped, tag = 'input window, operand 4, single buffered']
    #allocation9 [shape = 's32[1]{0}', space=sflag, size = 0x4, scoped, tag = 'scoped memory for tpu_custom_call.1']
    #allocation10 [shape = 'u8[262144]{0}', space=vmem, size = 0x40000, scoped, tag = 'input window, operand 6, single buffered']
    #allocation11 [shape = 'u8[16384]{0}', space=vmem, size = 0x4000, scoped, tag = 'output window, operand 0, single buffered']
    %13 = vsyncpa [#allocation3], 0
    %14 = vsyncpa [#allocation6], 0
    %15 = vsyncpa [#allocation9], 0
    %16 = vsyncpa [#allocation4], 0
    // Predicated region
    $region2: #{tpu_custom_call.1} parent=1 // pred_check
      _
    $region3: #{tpu_custom_call.1} parent=1 // pred_check_branch
      %18 = sbr.rel (0) target = $region5
    $region4: #{tpu_custom_call.1} parent=1 // pred_region
      %s20 = ssub.s32 512, 512
      %21 = vsyncadd [#allocation3], %s20
      %s22 = sshll.u32 [#allocation2], 4
      %s23 = int_to_ptr.vmem [resolvable:$true] %s22
      %28 = dma.hbm_to_vmem [thread:$0]  %s0, 512, %s23, [#allocation3], 128, 128, 8
    $region5: #{tpu_custom_call.1} parent=1 // pred_fallthru
      _
    // Predicated region
    $region6: #{tpu_custom_call.1} parent=1 // pred_check
      _
    $region7: #{tpu_custom_call.1} parent=1 // pred_check_branch
      %30 = sbr.rel (0) target = $region9
    $region8: #{tpu_custom_call.1} parent=1 // pred_region
      %s32 = ssub.s32 6144, 6144
      %33 = vsyncadd [#allocation6], %s32
      %s34 = sshll.u32 [#allocation5], 4
      %s35 = int_to_ptr.vmem [resolvable:$true] %s34
      %40 = dma.hbm_to_vmem [thread:$0]  %s1, 6144, %s35, [#allocation6], 384, 384, 24
    $region9: #{tpu_custom_call.1} parent=1 // pred_fallthru
      _
    // Predicated region
    $region10: #{tpu_custom_call.1} parent=1 // pred_check
      _
    $region11: #{tpu_custom_call.1} parent=1 // pred_check_branch
      %42 = sbr.rel (0) target = $region13
    $region12: #{tpu_custom_call.1} parent=1 // pred_region
      _
    $region13: #{tpu_custom_call.1} parent=1 // pred_fallthru
      _
    // Predicated region
    $region14: #{tpu_custom_call.1} parent=1 // pred_check
      _
    $region15: #{tpu_custom_call.1} parent=1 // pred_check_branch
      %44 = sbr.rel (0) target = $region17
    $region16: #{tpu_custom_call.1} parent=1 // pred_region
      %s46 = ssub.s32 2048, 2048
      %47 = vsyncadd [#allocation6], %s46
      %s48 = sshll.u32 [#allocation7], 4
      %s49 = int_to_ptr.vmem [resolvable:$true] %s48
      %54 = dma.hbm_to_vmem [thread:$0]  %s3, 2048, %s49, [#allocation6], 128, 128, 8
    $region17: #{tpu_custom_call.1} parent=1 // pred_fallthru
      _
    // Predicated region
    $region18: #{tpu_custom_call.1} parent=1 // pred_check
      _
    $region19: #{tpu_custom_call.1} parent=1 // pred_check_branch
      %56 = sbr.rel (0) target = $region21
    $region20: #{tpu_custom_call.1} parent=1 // pred_region
      %s58 = ssub.s32 8192, 8192
      %59 = vsyncadd [#allocation9], %s58
      %s60 = sshll.u32 [#allocation8], 4
      %s61 = int_to_ptr.vmem [resolvable:$true] %s60
      %66 = dma.hbm_to_vmem [thread:$0]  %s4, 8192, %s61, [#allocation9], 512, 512, 32
    $region21: #{tpu_custom_call.1} parent=1 // pred_fallthru
      _
    // Predicated region
    $region22: #{tpu_custom_call.1} parent=1 // pred_check
      _
    $region23: #{tpu_custom_call.1} parent=1 // pred_check_branch
      %68 = sbr.rel (0) target = $region25
    $region24: #{tpu_custom_call.1} parent=1 // pred_region
      _
    $region25: #{tpu_custom_call.1} parent=1 // pred_fallthru
      _
    // Predicated region
    $region26: #{tpu_custom_call.1} parent=1 // pred_check
      _
    $region27: #{tpu_custom_call.1} parent=1 // pred_check_branch
      %70 = sbr.rel (0) target = $region29
    $region28: #{tpu_custom_call.1} parent=1 // pred_region
      %s72 = ssub.s32 8192, 8192
      %73 = vsyncadd [#allocation9], %s72
      %s74 = sshll.u32 [#allocation10], 4
      %s75 = int_to_ptr.vmem [resolvable:$true] %s74
      %80 = dma.hbm_to_vmem [thread:$0]  %s6, 8192, %s75, [#allocation9], 128, 128, 8
    $region29: #{tpu_custom_call.1} parent=1 // pred_fallthru
      _
    // Predicated region
    $region30: #{tpu_custom_call.1} parent=1 // pred_check
      _
    $region31: #{tpu_custom_call.1} parent=1 // pred_check_branch
      %82 = sbr.rel (0) target = $region33
    $region32: #{tpu_custom_call.1} parent=1 // pred_region
      _
    $region33: #{tpu_custom_call.1} parent=1 // pred_fallthru
      _
    // Predicated region
    $region34: #{tpu_custom_call.1} parent=1 // pred_check
      _
    $region35: #{tpu_custom_call.1} parent=1 // pred_check_branch
      %84 = sbr.rel (0) target = $region37
    $region36: #{tpu_custom_call.1} parent=1 // pred_region
      %85 = dma.done [#allocation3], 512
    $region37: #{tpu_custom_call.1} parent=1 // pred_fallthru
      _
    // Predicated region
    $region38: #{tpu_custom_call.1} parent=1 // pred_check
      _
    $region39: #{tpu_custom_call.1} parent=1 // pred_check_branch
      %87 = sbr.rel (0) target = $region41
    $region40: #{tpu_custom_call.1} parent=1 // pred_region
      %88 = dma.done [#allocation6], 6144
    $region41: #{tpu_custom_call.1} parent=1 // pred_fallthru
      _
    // Predicated region
    $region42: #{tpu_custom_call.1} parent=1 // pred_check
      _
    $region43: #{tpu_custom_call.1} parent=1 // pred_check_branch
      %90 = sbr.rel (0) target = $region45
    $region44: #{tpu_custom_call.1} parent=1 // pred_region
      %91 = dma.done [#allocation6], 2048
    $region45: #{tpu_custom_call.1} parent=1 // pred_fallthru
      _
    // Predicated region
    $region46: #{tpu_custom_call.1} parent=1 // pred_check
      _
    $region47: #{tpu_custom_call.1} parent=1 // pred_check_branch
      %93 = sbr.rel (0) target = $region49
    $region48: #{tpu_custom_call.1} parent=1 // pred_region
      %94 = dma.done [#allocation9], 8192
    $region49: #{tpu_custom_call.1} parent=1 // pred_fallthru
      _
    // Predicated region
    $region50: #{tpu_custom_call.1} parent=1 // pred_check
      _
    $region51: #{tpu_custom_call.1} parent=1 // pred_check_branch
      %96 = sbr.rel (0) target = $region53
    $region52: #{tpu_custom_call.1} parent=1 // pred_region
      %97 = dma.done [#allocation9], 8192
    $region53: #{tpu_custom_call.1} parent=1 // pred_fallthru
      _
    %v98 = vld [vmem:[#allocation2] sm:$0xff]
    %v99 = vld [vmem:[#allocation2 + $0x8] sm:$0xff]
    %v100 = vld [vmem:[#allocation2 + $0x10] sm:$0xff]
    %v101 = vld [vmem:[#allocation2 + $0x18] sm:$0xff]
    %v102 = vld [vmem:[%s7] sm:$0x1]
    %v103 = vld [vmem:[%s7 + $0x1] sm:$0x1]
    %v104 = vld [vmem:[%s7 + $0x2] sm:$0x1]
    %v105 = vld [vmem:[%s7 + $0x3] sm:$0x1]
    %v106 = vld [vmem:[%s7 + $0x4] sm:$0x1]
    %v107 = vld [vmem:[%s7 + $0x5] sm:$0x1]
    %108 = vadd.xlane.f32.xlu0 %v98
    %v109 = vpop.xlane.xlu0 %108
    %110 = vadd.xlane.f32.xlu0 %v99
    %v111 = vpop.xlane.xlu0 %110
    %112 = vadd.xlane.f32.xlu0 %v100
    %v113 = vpop.xlane.xlu0 %112
    %114 = vadd.xlane.f32.xlu0 %v101
    %v115 = vpop.xlane.xlu0 %114
    %v116 = vrcp.pop 128.0
    %v117 = vmul.f32 %v109, %v116
    %v118 = vmul.f32 %v111, %v116
    %v119 = vmul.f32 %v113, %v116
    %v120 = vmul.f32 %v115, %v116
    %v121 = vsub.f32 %v98, %v117
    %v122 = vsub.f32 %v99, %v118
    %v123 = vsub.f32 %v100, %v119
    %v124 = vsub.f32 %v101, %v120
    %v125 = vmul.f32 %v121, %v121
    %v126 = vmul.f32 %v122, %v122
    %v127 = vmul.f32 %v123, %v123
    %v128 = vmul.f32 %v124, %v124
    %129 = vadd.xlane.f32.xlu0 %v125
    %v130 = vpop.xlane.xlu0 %129
    %131 = vadd.xlane.f32.xlu0 %v126
    %v132 = vpop.xlane.xlu0 %131
    %133 = vadd.xlane.f32.xlu0 %v127
    %v134 = vpop.xlane.xlu0 %133
    %135 = vadd.xlane.f32.xlu0 %v128
    %v136 = vpop.xlane.xlu0 %135
    %v137 = vmul.f32 %v130, %v116
    %v138 = vmul.f32 %v132, %v116
    %v139 = vmul.f32 %v134, %v116
    %v140 = vmul.f32 %v136, %v116
    %v141 = vadd.f32 %v137, 1e-05
    %v142 = vadd.f32 %v138, 1e-05
    %v143 = vadd.f32 %v139, 1e-05
    %v144 = vadd.f32 %v140, 1e-05
    %v145 = vrsqrt.pop %v141
    %v146 = vrsqrt.pop %v142
    %v147 = vrsqrt.pop %v143
    %v148 = vrsqrt.pop %v144
    %v149 = vmul.f32 %v121, %v145
    %v150 = vmul.f32 %v122, %v146
    %v151 = vmul.f32 %v123, %v147
    %v152 = vmul.f32 %v124, %v148
    %v153 = vlaneseq
    %v154 = vshrl.u32 %v153, 7
    %v155 = vsub.s32 0, %v154
    %v156 = vrot.slane %v102, %v155
    %v157 = vmul.f32 %v149, %v156
    %v158 = vmul.f32 %v150, %v156
    %v159 = vmul.f32 %v151, %v156
    %v160 = vmul.f32 %v152, %v156
    %v161 = vlaneseq
    %v162 = vshrl.u32 %v161, 7
    %v163 = vsub.s32 0, %v162
    %v164 = vrot.slane %v103, %v163
    %v165 = vadd.f32 %v157, %v164
    %v166 = vadd.f32 %v158, %v164
    %v167 = vadd.f32 %v159, %v164
    %v168 = vadd.f32 %v160, %v164
    %v169 = vld [vmem:[#allocation5] sm:$0xff]
    %v170 = vld [vmem:[#allocation5 + $0x8] sm:$0xff]
    %v171 = vld [vmem:[#allocation5 + $0x10] sm:$0xff]
    %v172 = vld [vmem:[#allocation5 + $0x18] sm:$0xff]
    %v173 = vld [vmem:[#allocation5 + $0x20] sm:$0xff]
    %v174 = vld [vmem:[#allocation5 + $0x28] sm:$0xff]
    %v175 = vld [vmem:[#allocation5 + $0x30] sm:$0xff]
    %v176 = vld [vmem:[#allocation5 + $0x38] sm:$0xff]
    %v177 = vld [vmem:[#allocation5 + $0x40] sm:$0xff]
    %v178 = vld [vmem:[#allocation5 + $0x48] sm:$0xff]
    %v179 = vld [vmem:[#allocation5 + $0x50] sm:$0xff]
    %v180 = vld [vmem:[#allocation5 + $0x58] sm:$0xff]
    %v181 = vld [vmem:[#allocation5 + $0x60] sm:$0xff]
    %v182 = vld [vmem:[#allocation5 + $0x68] sm:$0xff]
    %v183 = vld [vmem:[#allocation5 + $0x70] sm:$0xff]
    %v184 = vld [vmem:[#allocation5 + $0x78] sm:$0xff]
    %v185 = vld [vmem:[#allocation5 + $0x80] sm:$0xff]
    %v186 = vld [vmem:[#allocation5 + $0x88] sm:$0xff]
    %v187 = vld [vmem:[#allocation5 + $0x90] sm:$0xff]
    %v188 = vld [vmem:[#allocation5 + $0x98] sm:$0xff]
    %v189 = vld [vmem:[#allocation5 + $0xa0] sm:$0xff]
    %v190 = vld [vmem:[#allocation5 + $0xa8] sm:$0xff]
    %v191 = vld [vmem:[#allocation5 + $0xb0] sm:$0xff]
    %v192 = vld [vmem:[#allocation5 + $0xb8] sm:$0xff]
    %v193 = vld [vmem:[#allocation5 + $0xc0] sm:$0xff]
    %v194 = vld [vmem:[#allocation5 + $0xc8] sm:$0xff]
    %v195 = vld [vmem:[#allocation5 + $0xd0] sm:$0xff]
    %v196 = vld [vmem:[#allocation5 + $0xd8] sm:$0xff]
    %v197 = vld [vmem:[#allocation5 + $0xe0] sm:$0xff]
    %v198 = vld [vmem:[#allocation5 + $0xe8] sm:$0xff]
    %v199 = vld [vmem:[#allocation5 + $0xf0] sm:$0xff]
    %v200 = vld [vmem:[#allocation5 + $0xf8] sm:$0xff]
    %v201 = vld [vmem:[#allocation5 + $0x100] sm:$0xff]
    %v202 = vld [vmem:[#allocation5 + $0x108] sm:$0xff]
    %v203 = vld [vmem:[#allocation5 + $0x110] sm:$0xff]
    %v204 = vld [vmem:[#allocation5 + $0x118] sm:$0xff]
    %v205 = vld [vmem:[#allocation5 + $0x120] sm:$0xff]
    %v206 = vld [vmem:[#allocation5 + $0x128] sm:$0xff]
    %v207 = vld [vmem:[#allocation5 + $0x130] sm:$0xff]
    %v208 = vld [vmem:[#allocation5 + $0x138] sm:$0xff]
    %v209 = vld [vmem:[#allocation5 + $0x140] sm:$0xff]
    %v210 = vld [vmem:[#allocation5 + $0x148] sm:$0xff]
    %v211 = vld [vmem:[#allocation5 + $0x150] sm:$0xff]
    %v212 = vld [vmem:[#allocation5 + $0x158] sm:$0xff]
    %v213 = vld [vmem:[#allocation5 + $0x160] sm:$0xff]
    %v214 = vld [vmem:[#allocation5 + $0x168] sm:$0xff]
    %v215 = vld [vmem:[#allocation5 + $0x170] sm:$0xff]
    %v216 = vld [vmem:[#allocation5 + $0x178] sm:$0xff]
    %v217 = vld [vmem:[%s2] sm:$0x7]
    %v219 = vlaneseq
    %v220 = vshrl.u32 %v219, 7
    %v221 = vsub.s32 0, %v220
    %v222 = vrot.slane %v217, %v221
    %v223 = vlaneseq
    %v224 = vshrl.u32 %v223, 7
    %v225 = vsub.s32 1, %v224
    %v226 = vrot.slane %v217, %v225
    %v227 = vlaneseq
    %v228 = vshrl.u32 %v227, 7
    %v229 = vsub.s32 2, %v228
    %v230 = vrot.slane %v217, %v229
    %234 = vmatprep.subr.mxu0 %v170
    %235 = vmatpush1.msra.mxu0 %v169
    %236 = vmatprep.subr.mxu0 %v173
    %237 = vmatpush1.msra.mxu0 %v172
    %238 = vmatprep.subr.mxu0 %v176
    %239 = vmatpush1.msra.mxu0 %v175
    %240 = vmatprep.subr.mxu0 %v179
    %241 = vmatpush1.msra.mxu0 %v178
    %242 = vmatprep.subr.mxu0 %v182
    %243 = vmatpush1.msra.mxu0 %v181
    %244 = vmatprep.subr.mxu0 %v185
    %245 = vmatpush1.msra.mxu0 %v184
    %246 = vmatprep.subr.mxu0 %v188
    %247 = vmatpush1.msra.mxu0 %v187
    %248 = vmatprep.subr.mxu0 %v191
    %249 = vmatpush1.msra.mxu0 %v190
    %250 = vmatprep.subr.mxu0 %v194
    %251 = vmatpush1.msra.mxu0 %v193
    %252 = vmatprep.subr.mxu0 %v197
    %253 = vmatpush1.msra.mxu0 %v196
    %254 = vmatprep.subr.mxu0 %v200
    %255 = vmatpush1.msra.mxu0 %v199
    %256 = vmatprep.subr.mxu0 %v203
    %257 = vmatpush1.msra.mxu0 %v202
    %258 = vmatprep.subr.mxu0 %v206
    %259 = vmatpush1.msra.mxu0 %v205
    %260 = vmatprep.subr.mxu0 %v209
    %261 = vmatpush1.msra.mxu0 %v208
    %262 = vmatprep.subr.mxu0 %v212
    %263 = vmatpush1.msra.mxu0 %v211
    %264 = vmatprep.subr.mxu0 %v215
    %265 = vmatpush1.msra.mxu0 %v214
    %266 = vmatprep.subr.mxu0 0.0
    %267 = vmatpush1.msra.mxu0 0.0
    %268 = vmatprep.subr.mxu0 0.0
    %269 = vmatpush1.msra.mxu0 0.0
    %270 = vmatprep.subr.mxu0 0.0
    %271 = vmatpush1.msra.mxu0 0.0
    %272 = vmatprep.subr.mxu0 0.0
    %273 = vmatpush1.msra.mxu0 0.0
    %274 = vmatprep.subr.mxu0 0.0
    %275 = vmatpush1.msra.mxu0 0.0
    %276 = vmatprep.subr.mxu0 0.0
    %277 = vmatpush1.msra.mxu0 0.0
    %278 = vmatprep.subr.mxu0 0.0
    %279 = vmatpush1.msra.mxu0 0.0
    %280 = vmatprep.subr.mxu0 0.0
    %281 = vmatpush1.msra.mxu0 0.0
    %282 = vmatprep.subr.mxu0 0.0
    %283 = vmatpush1.msra.mxu0 0.0
    %284 = vmatprep.subr.mxu0 0.0
    %285 = vmatpush1.msra.mxu0 0.0
    %286 = vmatprep.subr.mxu0 0.0
    %287 = vmatpush1.msra.mxu0 0.0
    %288 = vmatprep.subr.mxu0 0.0
    %289 = vmatpush1.msra.mxu0 0.0
    %290 = vmatprep.subr.mxu0 0.0
    %291 = vmatpush1.msra.mxu0 0.0
    %292 = vmatprep.subr.mxu0 0.0
    %293 = vmatpush1.msra.mxu0 0.0
    %294 = vmatprep.subr.mxu0 0.0
    %295 = vmatpush1.msra.mxu0 0.0
    %296 = vmatprep.subr.mxu0 0.0
    %297 = vmatpush1.msra.mxu0 0.0
    %298 = vmatprep.mubr.f32.mxu0 0.0
    %299 = vmatmul.mubr.f32.gmra.mrb[0].mxu0 %v165
    %v300 = vpop.f32.mrb[0].mxu0
    %v301 = vadd.f32 %v222, %v300
    %v302 = vpop.f32.mrb[0].mxu0
    %v303 = vadd.f32 %v226, %v302
    %304 = vmatprep.mubr.f32.mxu0 0.0
    %305 = vmatmul.mubr.f32.gmra.mrb[0].mxu0 %v166
    %v306 = vpop.f32.mrb[0].mxu0
    %v307 = vadd.f32 %v222, %v306
    %v308 = vpop.f32.mrb[0].mxu0
    %v309 = vadd.f32 %v226, %v308
    %310 = vmatprep.mubr.f32.mxu0 0.0
    %311 = vmatmul.mubr.f32.gmra.mrb[0].mxu0 %v167
    %v312 = vpop.f32.mrb[0].mxu0
    %v313 = vadd.f32 %v222, %v312
    %v314 = vpop.f32.mrb[0].mxu0
    %v315 = vadd.f32 %v226, %v314
    %316 = vmatprep.mubr.f32.mxu0 0.0
    %317 = vmatmul.mubr.f32.gmra.mrb[0].mxu0 %v168
    %v318 = vpop.f32.mrb[0].mxu0
    %v319 = vadd.f32 %v222, %v318
    %v320 = vpop.f32.mrb[0].mxu0
    %v321 = vadd.f32 %v226, %v320
    %322 = vdwg.mxu0
    %323 = vmatprep.subr.mxu0 0.0
    %324 = vmatpush1.msra.mxu0 %v171
    %325 = vmatprep.subr.mxu0 0.0
    %326 = vmatpush1.msra.mxu0 %v174
    %327 = vmatprep.subr.mxu0 0.0
    %328 = vmatpush1.msra.mxu0 %v177
    %329 = vmatprep.subr.mxu0 0.0
    %330 = vmatpush1.msra.mxu0 %v180
    %331 = vmatprep.subr.mxu0 0.0
    %332 = vmatpush1.msra.mxu0 %v183
    %333 = vmatprep.subr.mxu0 0.0
    %334 = vmatpush1.msra.mxu0 %v186
    %335 = vmatprep.subr.mxu0 0.0
    %336 = vmatpush1.msra.mxu0 %v189
    %337 = vmatprep.subr.mxu0 0.0
    %338 = vmatpush1.msra.mxu0 %v192
    %339 = vmatprep.subr.mxu0 0.0
    %340 = vmatpush1.msra.mxu0 %v195
    %341 = vmatprep.subr.mxu0 0.0
    %342 = vmatpush1.msra.mxu0 %v198
    %343 = vmatprep.subr.mxu0 0.0
    %344 = vmatpush1.msra.mxu0 %v201
    %345 = vmatprep.subr.mxu0 0.0
    %346 = vmatpush1.msra.mxu0 %v204
    %347 = vmatprep.subr.mxu0 0.0
    %348 = vmatpush1.msra.mxu0 %v207
    %349 = vmatprep.subr.mxu0 0.0
    %350 = vmatpush1.msra.mxu0 %v210
    %351 = vmatprep.subr.mxu0 0.0
    %352 = vmatpush1.msra.mxu0 %v213
    %353 = vmatprep.subr.mxu0 0.0
    %354 = vmatpush1.msra.mxu0 %v216
    %355 = vmatprep.subr.mxu0 0.0
    %356 = vmatpush1.msra.mxu0 0.0
    %357 = vmatprep.subr.mxu0 0.0
    %358 = vmatpush1.msra.mxu0 0.0
    %359 = vmatprep.subr.mxu0 0.0
    %360 = vmatpush1.msra.mxu0 0.0
    %361 = vmatprep.subr.mxu0 0.0
    %362 = vmatpush1.msra.mxu0 0.0
    %363 = vmatprep.subr.mxu0 0.0
    %364 = vmatpush1.msra.mxu0 0.0
    %365 = vmatprep.subr.mxu0 0.0
    %366 = vmatpush1.msra.mxu0 0.0
    %367 = vmatprep.subr.mxu0 0.0
    %368 = vmatpush1.msra.mxu0 0.0
    %369 = vmatprep.subr.mxu0 0.0
    %370 = vmatpush1.msra.mxu0 0.0
    %371 = vmatprep.subr.mxu0 0.0
    %372 = vmatpush1.msra.mxu0 0.0
    %373 = vmatprep.subr.mxu0 0.0
    %374 = vmatpush1.msra.mxu0 0.0
    %375 = vmatprep.subr.mxu0 0.0
    %376 = vmatpush1.msra.mxu0 0.0
    %377 = vmatprep.subr.mxu0 0.0
    %378 = vmatpush1.msra.mxu0 0.0
    %379 = vmatprep.subr.mxu0 0.0
    %380 = vmatpush1.msra.mxu0 0.0
    %381 = vmatprep.subr.mxu0 0.0
    %382 = vmatpush1.msra.mxu0 0.0
    %383 = vmatprep.subr.mxu0 0.0
    %384 = vmatpush1.msra.mxu0 0.0
    %385 = vmatprep.subr.mxu0 0.0
    %386 = vmatpush1.msra.mxu0 0.0
    %387 = vmatprep.mubr.f32.mxu0 0.0
    %388 = vmatmul.mubr.f32.gmra.mrb[0].mxu0 %v165
    %v389 = vpop.f32.mrb[0].mxu0
    %v390 = vadd.f32 %v230, %v389
    %v391 = vpop.f32.mrb[0].mxu0
    %392 = vmatprep.mubr.f32.mxu0 0.0
    %393 = vmatmul.mubr.f32.gmra.mrb[0].mxu0 %v166
    %v394 = vpop.f32.mrb[0].mxu0
    %v395 = vadd.f32 %v230, %v394
    %v396 = vpop.f32.mrb[0].mxu0
    %397 = vmatprep.mubr.f32.mxu0 0.0
    %398 = vmatmul.mubr.f32.gmra.mrb[0].mxu0 %v167
    %v399 = vpop.f32.mrb[0].mxu0
    %v400 = vadd.f32 %v230, %v399
    %v401 = vpop.f32.mrb[0].mxu0
    %402 = vmatprep.mubr.f32.mxu0 0.0
    %403 = vmatmul.mubr.f32.gmra.mrb[0].mxu0 %v168
    %v404 = vpop.f32.mrb[0].mxu0
    %v405 = vadd.f32 %v230, %v404
    %v406 = vpop.f32.mrb[0].mxu0
    %407 = vdwg.mxu0
    %v408 = vlaneseq
    %v409 = vshrl.u32 %v408, 7
    %v410 = vadd.s32 %v409, 8
    %v411 = vlaneseq
    %v412 = vand.u32 %v411, 127
    %vm413 = vcmp.le.s32.totalorder %v412, %v409
    %vm414 = vcmp.le.s32.totalorder %v412, %v410
    %vm415 = vcmask 261120
    %v417 = vsel %vm415, %v303, 0
    %v420 = vsel %vm415, %v309, 0
    %v423 = vsel %vm415, %v301, 0
    %v426 = vsel %vm415, %v307, 0
    %428 = vmatprep.subr.mxu0 0.0
    %429 = vmatpush1.xpose.msra.mxu0 %v423
    %430 = vmatprep.subr.mxu0 0.0
    %431 = vmatpush1.xpose.msra.mxu0 %v426
    %432 = vmatprep.subr.mxu0 0.0
    %433 = vmatpush1.xpose.msra.mxu0 0.0
    %434 = vmatprep.subr.mxu0 0.0
    %435 = vmatpush1.xpose.msra.mxu0 0.0
    %436 = vmatprep.subr.mxu0 0.0
    %437 = vmatpush1.xpose.msra.mxu0 0.0
    %438 = vmatprep.subr.mxu0 0.0
    %439 = vmatpush1.xpose.msra.mxu0 0.0
    %440 = vmatprep.subr.mxu0 0.0
    %441 = vmatpush1.xpose.msra.mxu0 0.0
    %442 = vmatprep.subr.mxu0 0.0
    %443 = vmatpush1.xpose.msra.mxu0 0.0
    %444 = vmatprep.subr.mxu0 0.0
    %445 = vmatpush1.xpose.msra.mxu0 0.0
    %446 = vmatprep.subr.mxu0 0.0
    %447 = vmatpush1.xpose.msra.mxu0 0.0
    %448 = vmatprep.subr.mxu0 0.0
    %449 = vmatpush1.xpose.msra.mxu0 0.0
    %450 = vmatprep.subr.mxu0 0.0
    %451 = vmatpush1.xpose.msra.mxu0 0.0
    %452 = vmatprep.subr.mxu0 0.0
    %453 = vmatpush1.xpose.msra.mxu0 0.0
    %454 = vmatprep.subr.mxu0 0.0
    %455 = vmatpush1.xpose.msra.mxu0 0.0
    %456 = vmatprep.subr.mxu0 0.0
    %457 = vmatpush1.xpose.msra.mxu0 0.0
    %458 = vmatprep.subr.mxu0 0.0
    %459 = vmatpush1.xpose.msra.mxu0 0.0
    %460 = vmatprep.subr.mxu0 0.0
    %461 = vmatpush1.xpose.msra.mxu0 0.0
    %462 = vmatprep.subr.mxu0 0.0
    %463 = vmatpush1.xpose.msra.mxu0 0.0
    %464 = vmatprep.subr.mxu0 0.0
    %465 = vmatpush1.xpose.msra.mxu0 0.0
    %466 = vmatprep.subr.mxu0 0.0
    %467 = vmatpush1.xpose.msra.mxu0 0.0
    %468 = vmatprep.subr.mxu0 0.0
    %469 = vmatpush1.xpose.msra.mxu0 0.0
    %470 = vmatprep.subr.mxu0 0.0
    %471 = vmatpush1.xpose.msra.mxu0 0.0
    %472 = vmatprep.subr.mxu0 0.0
    %473 = vmatpush1.xpose.msra.mxu0 0.0
    %474 = vmatprep.subr.mxu0 0.0
    %475 = vmatpush1.xpose.msra.mxu0 0.0
    %476 = vmatprep.subr.mxu0 0.0
    %477 = vmatpush1.xpose.msra.mxu0 0.0
    %478 = vmatprep.subr.mxu0 0.0
    %479 = vmatpush1.xpose.msra.mxu0 0.0
    %480 = vmatprep.subr.mxu0 0.0
    %481 = vmatpush1.xpose.msra.mxu0 0.0
    %482 = vmatprep.subr.mxu0 0.0
    %483 = vmatpush1.xpose.msra.mxu0 0.0
    %484 = vmatprep.subr.mxu0 0.0
    %485 = vmatpush1.xpose.msra.mxu0 0.0
    %486 = vmatprep.subr.mxu0 0.0
    %487 = vmatpush1.xpose.msra.mxu0 0.0
    %488 = vmatprep.subr.mxu0 0.0
    %489 = vmatpush1.xpose.msra.mxu0 0.0
    %490 = vmatprep.subr.mxu0 0.0
    %491 = vmatpush1.xpose.msra.mxu0 0.0
    %492 = vmatprep.mubr.f32.mxu0 0.0
    %493 = vmatmul.mubr.f32.gmra.mrb[0].mxu0 %v417
    %v494 = vpop.f32.mrb[0].mxu0
    %v495 = vadd.f32 0.0, %v494
    %v496 = vpop.f32.mrb[0].mxu0
    %497 = vmatprep.mubr.f32.mxu0 0.0
    %498 = vmatmul.mubr.f32.gmra.mrb[0].mxu0 %v420
    %v499 = vpop.f32.mrb[0].mxu0
    %v500 = vadd.f32 0.0, %v499
    %v501 = vpop.f32.mrb[0].mxu0
    %502 = vdwg.mxu0
    %v503 = vsel %vm413, %v495, -1e+30
    %v504 = vsel %vm414, %v500, -1e+30
    %505 = vrot.lane.b32.xlu0 %v303, 96
    %v506 = vpop.permute.xlu0 %505
    %507 = vrot.lane.b32.xlu0 %v309, 96
    %v508 = vpop.permute.xlu0 %507
    %509 = vrot.lane.b32.xlu0 %v301, 96
    %v510 = vpop.permute.xlu0 %509
    %511 = vrot.lane.b32.xlu0 %v307, 96
    %v512 = vpop.permute.xlu0 %511
    %v513 = vsel %vm415, %v506, 0
    %v515 = vsel %vm415, %v508, 0
    %v517 = vsel %vm415, %v510, 0
    %v519 = vsel %vm415, %v512, 0
    %521 = vmatprep.subr.mxu0 0.0
    %522 = vmatpush1.xpose.msra.mxu0 %v517
    %523 = vmatprep.subr.mxu0 0.0
    %524 = vmatpush1.xpose.msra.mxu0 %v519
    %525 = vmatprep.subr.mxu0 0.0
    %526 = vmatpush1.xpose.msra.mxu0 0.0
    %527 = vmatprep.subr.mxu0 0.0
    %528 = vmatpush1.xpose.msra.mxu0 0.0
    %529 = vmatprep.subr.mxu0 0.0
    %530 = vmatpush1.xpose.msra.mxu0 0.0
    %531 = vmatprep.subr.mxu0 0.0
    %532 = vmatpush1.xpose.msra.mxu0 0.0
    %533 = vmatprep.subr.mxu0 0.0
    %534 = vmatpush1.xpose.msra.mxu0 0.0
    %535 = vmatprep.subr.mxu0 0.0
    %536 = vmatpush1.xpose.msra.mxu0 0.0
    %537 = vmatprep.subr.mxu0 0.0
    %538 = vmatpush1.xpose.msra.mxu0 0.0
    %539 = vmatprep.subr.mxu0 0.0
    %540 = vmatpush1.xpose.msra.mxu0 0.0
    %541 = vmatprep.subr.mxu0 0.0
    %542 = vmatpush1.xpose.msra.mxu0 0.0
    %543 = vmatprep.subr.mxu0 0.0
    %544 = vmatpush1.xpose.msra.mxu0 0.0
    %545 = vmatprep.subr.mxu0 0.0
    %546 = vmatpush1.xpose.msra.mxu0 0.0
    %547 = vmatprep.subr.mxu0 0.0
    %548 = vmatpush1.xpose.msra.mxu0 0.0
    %549 = vmatprep.subr.mxu0 0.0
    %550 = vmatpush1.xpose.msra.mxu0 0.0
    %551 = vmatprep.subr.mxu0 0.0
    %552 = vmatpush1.xpose.msra.mxu0 0.0
    %553 = vmatprep.subr.mxu0 0.0
    %554 = vmatpush1.xpose.msra.mxu0 0.0
    %555 = vmatprep.subr.mxu0 0.0
    %556 = vmatpush1.xpose.msra.mxu0 0.0
    %557 = vmatprep.subr.mxu0 0.0
    %558 = vmatpush1.xpose.msra.mxu0 0.0
    %559 = vmatprep.subr.mxu0 0.0
    %560 = vmatpush1.xpose.msra.mxu0 0.0
    %561 = vmatprep.subr.mxu0 0.0
    %562 = vmatpush1.xpose.msra.mxu0 0.0
    %563 = vmatprep.subr.mxu0 0.0
    %564 = vmatpush1.xpose.msra.mxu0 0.0
    %565 = vmatprep.subr.mxu0 0.0
    %566 = vmatpush1.xpose.msra.mxu0 0.0
    %567 = vmatprep.subr.mxu0 0.0
    %568 = vmatpush1.xpose.msra.mxu0 0.0
    %569 = vmatprep.subr.mxu0 0.0
    %570 = vmatpush1.xpose.msra.mxu0 0.0
    %571 = vmatprep.subr.mxu0 0.0
    %572 = vmatpush1.xpose.msra.mxu0 0.0
    %573 = vmatprep.subr.mxu0 0.0
    %574 = vmatpush1.xpose.msra.mxu0 0.0
    %575 = vmatprep.subr.mxu0 0.0
    %576 = vmatpush1.xpose.msra.mxu0 0.0
    %577 = vmatprep.subr.mxu0 0.0
    %578 = vmatpush1.xpose.msra.mxu0 0.0
    %579 = vmatprep.subr.mxu0 0.0
    %580 = vmatpush1.xpose.msra.mxu0 0.0
    %581 = vmatprep.subr.mxu0 0.0
    %582 = vmatpush1.xpose.msra.mxu0 0.0
    %583 = vmatprep.subr.mxu0 0.0
    %584 = vmatpush1.xpose.msra.mxu0 0.0
    %585 = vmatprep.mubr.f32.mxu0 0.0
    %586 = vmatmul.mubr.f32.gmra.mrb[0].mxu0 %v513
    %v587 = vpop.f32.mrb[0].mxu0
    %v588 = vadd.f32 0.0, %v587
    %v589 = vpop.f32.mrb[0].mxu0
    %590 = vmatprep.mubr.f32.mxu0 0.0
    %591 = vmatmul.mubr.f32.gmra.mrb[0].mxu0 %v515
    %v592 = vpop.f32.mrb[0].mxu0
    %v593 = vadd.f32 0.0, %v592
    %v594 = vpop.f32.mrb[0].mxu0
    %595 = vdwg.mxu0
    %v596 = vsel %vm413, %v588, -1e+30
    %v597 = vsel %vm414, %v593, -1e+30
    %598 = vrot.lane.b32.xlu0 %v303, 64
    %v599 = vpop.permute.xlu0 %598
    %600 = vrot.lane.b32.xlu0 %v309, 64
    %v601 = vpop.permute.xlu0 %600
    %602 = vrot.lane.b32.xlu0 %v301, 64
    %v603 = vpop.permute.xlu0 %602
    %604 = vrot.lane.b32.xlu0 %v307, 64
    %v605 = vpop.permute.xlu0 %604
    %v606 = vsel %vm415, %v599, 0
    %v608 = vsel %vm415, %v601, 0
    %v610 = vsel %vm415, %v603, 0
    %v612 = vsel %vm415, %v605, 0
    %614 = vmatprep.subr.mxu0 0.0
    %615 = vmatpush1.xpose.msra.mxu0 %v610
    %616 = vmatprep.subr.mxu0 0.0
    %617 = vmatpush1.xpose.msra.mxu0 %v612
    %618 = vmatprep.subr.mxu0 0.0
    %619 = vmatpush1.xpose.msra.mxu0 0.0
    %620 = vmatprep.subr.mxu0 0.0
    %621 = vmatpush1.xpose.msra.mxu0 0.0
    %622 = vmatprep.subr.mxu0 0.0
    %623 = vmatpush1.xpose.msra.mxu0 0.0
    %624 = vmatprep.subr.mxu0 0.0
    %625 = vmatpush1.xpose.msra.mxu0 0.0
    %626 = vmatprep.subr.mxu0 0.0
    %627 = vmatpush1.xpose.msra.mxu0 0.0
    %628 = vmatprep.subr.mxu0 0.0
    %629 = vmatpush1.xpose.msra.mxu0 0.0
    %630 = vmatprep.subr.mxu0 0.0
    %631 = vmatpush1.xpose.msra.mxu0 0.0
    %632 = vmatprep.subr.mxu0 0.0
    %633 = vmatpush1.xpose.msra.mxu0 0.0
    %634 = vmatprep.subr.mxu0 0.0
    %635 = vmatpush1.xpose.msra.mxu0 0.0
    %636 = vmatprep.subr.mxu0 0.0
    %637 = vmatpush1.xpose.msra.mxu0 0.0
    %638 = vmatprep.subr.mxu0 0.0
    %639 = vmatpush1.xpose.msra.mxu0 0.0
    %640 = vmatprep.subr.mxu0 0.0
    %641 = vmatpush1.xpose.msra.mxu0 0.0
    %642 = vmatprep.subr.mxu0 0.0
    %643 = vmatpush1.xpose.msra.mxu0 0.0
    %644 = vmatprep.subr.mxu0 0.0
    %645 = vmatpush1.xpose.msra.mxu0 0.0
    %646 = vmatprep.subr.mxu0 0.0
    %647 = vmatpush1.xpose.msra.mxu0 0.0
    %648 = vmatprep.subr.mxu0 0.0
    %649 = vmatpush1.xpose.msra.mxu0 0.0
    %650 = vmatprep.subr.mxu0 0.0
    %651 = vmatpush1.xpose.msra.mxu0 0.0
    %652 = vmatprep.subr.mxu0 0.0
    %653 = vmatpush1.xpose.msra.mxu0 0.0
    %654 = vmatprep.subr.mxu0 0.0
    %655 = vmatpush1.xpose.msra.mxu0 0.0
    %656 = vmatprep.subr.mxu0 0.0
    %657 = vmatpush1.xpose.msra.mxu0 0.0
    %658 = vmatprep.subr.mxu0 0.0
    %659 = vmatpush1.xpose.msra.mxu0 0.0
    %660 = vmatprep.subr.mxu0 0.0
    %661 = vmatpush1.xpose.msra.mxu0 0.0
    %662 = vmatprep.subr.mxu0 0.0
    %663 = vmatpush1.xpose.msra.mxu0 0.0
    %664 = vmatprep.subr.mxu0 0.0
    %665 = vmatpush1.xpose.msra.mxu0 0.0
    %666 = vmatprep.subr.mxu0 0.0
    %667 = vmatpush1.xpose.msra.mxu0 0.0
    %668 = vmatprep.subr.mxu0 0.0
    %669 = vmatpush1.xpose.msra.mxu0 0.0
    %670 = vmatprep.subr.mxu0 0.0
    %671 = vmatpush1.xpose.msra.mxu0 0.0
    %672 = vmatprep.subr.mxu0 0.0
    %673 = vmatpush1.xpose.msra.mxu0 0.0
    %674 = vmatprep.subr.mxu0 0.0
    %675 = vmatpush1.xpose.msra.mxu0 0.0
    %676 = vmatprep.subr.mxu0 0.0
    %677 = vmatpush1.xpose.msra.mxu0 0.0
    %678 = vmatprep.mubr.f32.mxu0 0.0
    %679 = vmatmul.mubr.f32.gmra.mrb[0].mxu0 %v606
    %v680 = vpop.f32.mrb[0].mxu0
    %v681 = vadd.f32 0.0, %v680
    %v682 = vpop.f32.mrb[0].mxu0
    %683 = vmatprep.mubr.f32.mxu0 0.0
    %684 = vmatmul.mubr.f32.gmra.mrb[0].mxu0 %v608
    %v685 = vpop.f32.mrb[0].mxu0
    %v686 = vadd.f32 0.0, %v685
    %v687 = vpop.f32.mrb[0].mxu0
    %688 = vdwg.mxu0
    %v689 = vsel %vm413, %v681, -1e+30
    %v690 = vsel %vm414, %v686, -1e+30
    %691 = vrot.lane.b32.xlu0 %v303, 32
    %v692 = vpop.permute.xlu0 %691
    %693 = vrot.lane.b32.xlu0 %v309, 32
    %v694 = vpop.permute.xlu0 %693
    %695 = vrot.lane.b32.xlu0 %v301, 32
    %v696 = vpop.permute.xlu0 %695
    %697 = vrot.lane.b32.xlu0 %v307, 32
    %v698 = vpop.permute.xlu0 %697
    %v699 = vsel %vm415, %v692, 0
    %v701 = vsel %vm415, %v694, 0
    %v703 = vsel %vm415, %v696, 0
    %v705 = vsel %vm415, %v698, 0
    %707 = vmatprep.subr.mxu0 0.0
    %708 = vmatpush1.xpose.msra.mxu0 %v703
    %709 = vmatprep.subr.mxu0 0.0
    %710 = vmatpush1.xpose.msra.mxu0 %v705
    %711 = vmatprep.subr.mxu0 0.0
    %712 = vmatpush1.xpose.msra.mxu0 0.0
    %713 = vmatprep.subr.mxu0 0.0
    %714 = vmatpush1.xpose.msra.mxu0 0.0
    %715 = vmatprep.subr.mxu0 0.0
    %716 = vmatpush1.xpose.msra.mxu0 0.0
    %717 = vmatprep.subr.mxu0 0.0
    %718 = vmatpush1.xpose.msra.mxu0 0.0
    %719 = vmatprep.subr.mxu0 0.0
    %720 = vmatpush1.xpose.msra.mxu0 0.0
    %721 = vmatprep.subr.mxu0 0.0
    %722 = vmatpush1.xpose.msra.mxu0 0.0
    %723 = vmatprep.subr.mxu0 0.0
    %724 = vmatpush1.xpose.msra.mxu0 0.0
    %725 = vmatprep.subr.mxu0 0.0
    %726 = vmatpush1.xpose.msra.mxu0 0.0
    %727 = vmatprep.subr.mxu0 0.0
    %728 = vmatpush1.xpose.msra.mxu0 0.0
    %729 = vmatprep.subr.mxu0 0.0
    %730 = vmatpush1.xpose.msra.mxu0 0.0
    %731 = vmatprep.subr.mxu0 0.0
    %732 = vmatpush1.xpose.msra.mxu0 0.0
    %733 = vmatprep.subr.mxu0 0.0
    %734 = vmatpush1.xpose.msra.mxu0 0.0
    %735 = vmatprep.subr.mxu0 0.0
    %736 = vmatpush1.xpose.msra.mxu0 0.0
    %737 = vmatprep.subr.mxu0 0.0
    %738 = vmatpush1.xpose.msra.mxu0 0.0
    %739 = vmatprep.subr.mxu0 0.0
    %740 = vmatpush1.xpose.msra.mxu0 0.0
    %741 = vmatprep.subr.mxu0 0.0
    %742 = vmatpush1.xpose.msra.mxu0 0.0
    %743 = vmatprep.subr.mxu0 0.0
    %744 = vmatpush1.xpose.msra.mxu0 0.0
    %745 = vmatprep.subr.mxu0 0.0
    %746 = vmatpush1.xpose.msra.mxu0 0.0
    %747 = vmatprep.subr.mxu0 0.0
    %748 = vmatpush1.xpose.msra.mxu0 0.0
    %749 = vmatprep.subr.mxu0 0.0
    %750 = vmatpush1.xpose.msra.mxu0 0.0
    %751 = vmatprep.subr.mxu0 0.0
    %752 = vmatpush1.xpose.msra.mxu0 0.0
    %753 = vmatprep.subr.mxu0 0.0
    %754 = vmatpush1.xpose.msra.mxu0 0.0
    %755 = vmatprep.subr.mxu0 0.0
    %756 = vmatpush1.xpose.msra.mxu0 0.0
    %757 = vmatprep.subr.mxu0 0.0
    %758 = vmatpush1.xpose.msra.mxu0 0.0
    %759 = vmatprep.subr.mxu0 0.0
    %760 = vmatpush1.xpose.msra.mxu0 0.0
    %761 = vmatprep.subr.mxu0 0.0
    %762 = vmatpush1.xpose.msra.mxu0 0.0
    %763 = vmatprep.subr.mxu0 0.0
    %764 = vmatpush1.xpose.msra.mxu0 0.0
    %765 = vmatprep.subr.mxu0 0.0
    %766 = vmatpush1.xpose.msra.mxu0 0.0
    %767 = vmatprep.subr.mxu0 0.0
    %768 = vmatpush1.xpose.msra.mxu0 0.0
    %769 = vmatprep.subr.mxu0 0.0
    %770 = vmatpush1.xpose.msra.mxu0 0.0
    %771 = vmatprep.mubr.f32.mxu0 0.0
    %772 = vmatmul.mubr.f32.gmra.mrb[0].mxu0 %v699
    %v773 = vpop.f32.mrb[0].mxu0
    %v774 = vadd.f32 0.0, %v773
    %v775 = vpop.f32.mrb[0].mxu0
    %776 = vmatprep.mubr.f32.mxu0 0.0
    %777 = vmatmul.mubr.f32.gmra.mrb[0].mxu0 %v701
    %v778 = vpop.f32.mrb[0].mxu0
    %v779 = vadd.f32 0.0, %v778
    %v780 = vpop.f32.mrb[0].mxu0
    %781 = vdwg.mxu0
    %v782 = vsel %vm413, %v774, -1e+30
    %v783 = vsel %vm414, %v779, -1e+30
    %v785 = vsel %vm415, %v315, 0
    %v788 = vsel %vm415, %v321, 0
    %v791 = vsel %vm415, %v313, 0
    %v794 = vsel %vm415, %v319, 0
    %796 = vmatprep.subr.mxu0 0.0
    %797 = vmatpush1.xpose.msra.mxu0 %v791
    %798 = vmatprep.subr.mxu0 0.0
    %799 = vmatpush1.xpose.msra.mxu0 %v794
    %800 = vmatprep.subr.mxu0 0.0
    %801 = vmatpush1.xpose.msra.mxu0 0.0
    %802 = vmatprep.subr.mxu0 0.0
    %803 = vmatpush1.xpose.msra.mxu0 0.0
    %804 = vmatprep.subr.mxu0 0.0
    %805 = vmatpush1.xpose.msra.mxu0 0.0
    %806 = vmatprep.subr.mxu0 0.0
    %807 = vmatpush1.xpose.msra.mxu0 0.0
    %808 = vmatprep.subr.mxu0 0.0
    %809 = vmatpush1.xpose.msra.mxu0 0.0
    %810 = vmatprep.subr.mxu0 0.0
    %811 = vmatpush1.xpose.msra.mxu0 0.0
    %812 = vmatprep.subr.mxu0 0.0
    %813 = vmatpush1.xpose.msra.mxu0 0.0
    %814 = vmatprep.subr.mxu0 0.0
    %815 = vmatpush1.xpose.msra.mxu0 0.0
    %816 = vmatprep.subr.mxu0 0.0
    %817 = vmatpush1.xpose.msra.mxu0 0.0
    %818 = vmatprep.subr.mxu0 0.0
    %819 = vmatpush1.xpose.msra.mxu0 0.0
    %820 = vmatprep.subr.mxu0 0.0
    %821 = vmatpush1.xpose.msra.mxu0 0.0
    %822 = vmatprep.subr.mxu0 0.0
    %823 = vmatpush1.xpose.msra.mxu0 0.0
    %824 = vmatprep.subr.mxu0 0.0
    %825 = vmatpush1.xpose.msra.mxu0 0.0
    %826 = vmatprep.subr.mxu0 0.0
    %827 = vmatpush1.xpose.msra.mxu0 0.0
    %828 = vmatprep.subr.mxu0 0.0
    %829 = vmatpush1.xpose.msra.mxu0 0.0
    %830 = vmatprep.subr.mxu0 0.0
    %831 = vmatpush1.xpose.msra.mxu0 0.0
    %832 = vmatprep.subr.mxu0 0.0
    %833 = vmatpush1.xpose.msra.mxu0 0.0
    %834 = vmatprep.subr.mxu0 0.0
    %835 = vmatpush1.xpose.msra.mxu0 0.0
    %836 = vmatprep.subr.mxu0 0.0
    %837 = vmatpush1.xpose.msra.mxu0 0.0
    %838 = vmatprep.subr.mxu0 0.0
    %839 = vmatpush1.xpose.msra.mxu0 0.0
    %840 = vmatprep.subr.mxu0 0.0
    %841 = vmatpush1.xpose.msra.mxu0 0.0
    %842 = vmatprep.subr.mxu0 0.0
    %843 = vmatpush1.xpose.msra.mxu0 0.0
    %844 = vmatprep.subr.mxu0 0.0
    %845 = vmatpush1.xpose.msra.mxu0 0.0
    %846 = vmatprep.subr.mxu0 0.0
    %847 = vmatpush1.xpose.msra.mxu0 0.0
    %848 = vmatprep.subr.mxu0 0.0
    %849 = vmatpush1.xpose.msra.mxu0 0.0
    %850 = vmatprep.subr.mxu0 0.0
    %851 = vmatpush1.xpose.msra.mxu0 0.0
    %852 = vmatprep.subr.mxu0 0.0
    %853 = vmatpush1.xpose.msra.mxu0 0.0
    %854 = vmatprep.subr.mxu0 0.0
    %855 = vmatpush1.xpose.msra.mxu0 0.0
    %856 = vmatprep.subr.mxu0 0.0
    %857 = vmatpush1.xpose.msra.mxu0 0.0
    %858 = vmatprep.subr.mxu0 0.0
    %859 = vmatpush1.xpose.msra.mxu0 0.0
    %860 = vmatprep.mubr.f32.mxu0 0.0
    %861 = vmatmul.mubr.f32.gmra.mrb[0].mxu0 %v785
    %v862 = vpop.f32.mrb[0].mxu0
    %v863 = vadd.f32 0.0, %v862
    %v864 = vpop.f32.mrb[0].mxu0
    %865 = vmatprep.mubr.f32.mxu0 0.0
    %866 = vmatmul.mubr.f32.gmra.mrb[0].mxu0 %v788
    %v867 = vpop.f32.mrb[0].mxu0
    %v868 = vadd.f32 0.0, %v867
    %v869 = vpop.f32.mrb[0].mxu0
    %870 = vdwg.mxu0
    %v871 = vsel %vm413, %v863, -1e+30
    %v872 = vsel %vm414, %v868, -1e+30
    %873 = vrot.lane.b32.xlu0 %v315, 96
    %v874 = vpop.permute.xlu0 %873
    %875 = vrot.lane.b32.xlu0 %v321, 96
    %v876 = vpop.permute.xlu0 %875
    %877 = vrot.lane.b32.xlu0 %v313, 96
    %v878 = vpop.permute.xlu0 %877
    %879 = vrot.lane.b32.xlu0 %v319, 96
    %v880 = vpop.permute.xlu0 %879
    %v881 = vsel %vm415, %v874, 0
    %v883 = vsel %vm415, %v876, 0
    %v885 = vsel %vm415, %v878, 0
    %v887 = vsel %vm415, %v880, 0
    %889 = vmatprep.subr.mxu0 0.0
    %890 = vmatpush1.xpose.msra.mxu0 %v885
    %891 = vmatprep.subr.mxu0 0.0
    %892 = vmatpush1.xpose.msra.mxu0 %v887
    %893 = vmatprep.subr.mxu0 0.0
    %894 = vmatpush1.xpose.msra.mxu0 0.0
    %895 = vmatprep.subr.mxu0 0.0
    %896 = vmatpush1.xpose.msra.mxu0 0.0
    %897 = vmatprep.subr.mxu0 0.0
    %898 = vmatpush1.xpose.msra.mxu0 0.0
    %899 = vmatprep.subr.mxu0 0.0
    %900 = vmatpush1.xpose.msra.mxu0 0.0
    %901 = vmatprep.subr.mxu0 0.0
    %902 = vmatpush1.xpose.msra.mxu0 0.0
    %903 = vmatprep.subr.mxu0 0.0
    %904 = vmatpush1.xpose.msra.mxu0 0.0
    %905 = vmatprep.subr.mxu0 0.0
    %906 = vmatpush1.xpose.msra.mxu0 0.0
    %907 = vmatprep.subr.mxu0 0.0
    %908 = vmatpush1.xpose.msra.mxu0 0.0
    %909 = vmatprep.subr.mxu0 0.0
    %910 = vmatpush1.xpose.msra.mxu0 0.0
    %911 = vmatprep.subr.mxu0 0.0
    %912 = vmatpush1.xpose.msra.mxu0 0.0
    %913 = vmatprep.subr.mxu0 0.0
    %914 = vmatpush1.xpose.msra.mxu0 0.0
    %915 = vmatprep.subr.mxu0 0.0
    %916 = vmatpush1.xpose.msra.mxu0 0.0
    %917 = vmatprep.subr.mxu0 0.0
    %918 = vmatpush1.xpose.msra.mxu0 0.0
    %919 = vmatprep.subr.mxu0 0.0
    %920 = vmatpush1.xpose.msra.mxu0 0.0
    %921 = vmatprep.subr.mxu0 0.0
    %922 = vmatpush1.xpose.msra.mxu0 0.0
    %923 = vmatprep.subr.mxu0 0.0
    %924 = vmatpush1.xpose.msra.mxu0 0.0
    %925 = vmatprep.subr.mxu0 0.0
    %926 = vmatpush1.xpose.msra.mxu0 0.0
    %927 = vmatprep.subr.mxu0 0.0
    %928 = vmatpush1.xpose.msra.mxu0 0.0
    %929 = vmatprep.subr.mxu0 0.0
    %930 = vmatpush1.xpose.msra.mxu0 0.0
    %931 = vmatprep.subr.mxu0 0.0
    %932 = vmatpush1.xpose.msra.mxu0 0.0
    %933 = vmatprep.subr.mxu0 0.0
    %934 = vmatpush1.xpose.msra.mxu0 0.0
    %935 = vmatprep.subr.mxu0 0.0
    %936 = vmatpush1.xpose.msra.mxu0 0.0
    %937 = vmatprep.subr.mxu0 0.0
    %938 = vmatpush1.xpose.msra.mxu0 0.0
    %939 = vmatprep.subr.mxu0 0.0
    %940 = vmatpush1.xpose.msra.mxu0 0.0
    %941 = vmatprep.subr.mxu0 0.0
    %942 = vmatpush1.xpose.msra.mxu0 0.0
    %943 = vmatprep.subr.mxu0 0.0
    %944 = vmatpush1.xpose.msra.mxu0 0.0
    %945 = vmatprep.subr.mxu0 0.0
    %946 = vmatpush1.xpose.msra.mxu0 0.0
    %947 = vmatprep.subr.mxu0 0.0
    %948 = vmatpush1.xpose.msra.mxu0 0.0
    %949 = vmatprep.subr.mxu0 0.0
    %950 = vmatpush1.xpose.msra.mxu0 0.0
    %951 = vmatprep.subr.mxu0 0.0
    %952 = vmatpush1.xpose.msra.mxu0 0.0
    %953 = vmatprep.mubr.f32.mxu0 0.0
    %954 = vmatmul.mubr.f32.gmra.mrb[0].mxu0 %v881
    %v955 = vpop.f32.mrb[0].mxu0
    %v956 = vadd.f32 0.0, %v955
    %v957 = vpop.f32.mrb[0].mxu0
    %958 = vmatprep.mubr.f32.mxu0 0.0
    %959 = vmatmul.mubr.f32.gmra.mrb[0].mxu0 %v883
    %v960 = vpop.f32.mrb[0].mxu0
    %v961 = vadd.f32 0.0, %v960
    %v962 = vpop.f32.mrb[0].mxu0
    %963 = vdwg.mxu0
    %v964 = vsel %vm413, %v956, -1e+30
    %v965 = vsel %vm414, %v961, -1e+30
    %966 = vrot.lane.b32.xlu0 %v315, 64
    %v967 = vpop.permute.xlu0 %966
    %968 = vrot.lane.b32.xlu0 %v321, 64
    %v969 = vpop.permute.xlu0 %968
    %970 = vrot.lane.b32.xlu0 %v313, 64
    %v971 = vpop.permute.xlu0 %970
    %972 = vrot.lane.b32.xlu0 %v319, 64
    %v973 = vpop.permute.xlu0 %972
    %v974 = vsel %vm415, %v967, 0
    %v976 = vsel %vm415, %v969, 0
    %v978 = vsel %vm415, %v971, 0
    %v980 = vsel %vm415, %v973, 0
    %982 = vmatprep.subr.mxu0 0.0
    %983 = vmatpush1.xpose.msra.mxu0 %v978
    %984 = vmatprep.subr.mxu0 0.0
    %985 = vmatpush1.xpose.msra.mxu0 %v980
    %986 = vmatprep.subr.mxu0 0.0
    %987 = vmatpush1.xpose.msra.mxu0 0.0
    %988 = vmatprep.subr.mxu0 0.0
    %989 = vmatpush1.xpose.msra.mxu0 0.0
    %990 = vmatprep.subr.mxu0 0.0
    %991 = vmatpush1.xpose.msra.mxu0 0.0
    %992 = vmatprep.subr.mxu0 0.0
    %993 = vmatpush1.xpose.msra.mxu0 0.0
    %994 = vmatprep.subr.mxu0 0.0
    %995 = vmatpush1.xpose.msra.mxu0 0.0
    %996 = vmatprep.subr.mxu0 0.0
    %997 = vmatpush1.xpose.msra.mxu0 0.0
    %998 = vmatprep.subr.mxu0 0.0
    %999 = vmatpush1.xpose.msra.mxu0 0.0
    %1000 = vmatprep.subr.mxu0 0.0
    %1001 = vmatpush1.xpose.msra.mxu0 0.0
    %1002 = vmatprep.subr.mxu0 0.0
    %1003 = vmatpush1.xpose.msra.mxu0 0.0
    %1004 = vmatprep.subr.mxu0 0.0
    %1005 = vmatpush1.xpose.msra.mxu0 0.0
    %1006 = vmatprep.subr.mxu0 0.0
    %1007 = vmatpush1.xpose.msra.mxu0 0.0
    %1008 = vmatprep.subr.mxu0 0.0
    %1009 = vmatpush1.xpose.msra.mxu0 0.0
    %1010 = vmatprep.subr.mxu0 0.0
    %1011 = vmatpush1.xpose.msra.mxu0 0.0
    %1012 = vmatprep.subr.mxu0 0.0
    %1013 = vmatpush1.xpose.msra.mxu0 0.0
    %1014 = vmatprep.subr.mxu0 0.0
    %1015 = vmatpush1.xpose.msra.mxu0 0.0
    %1016 = vmatprep.subr.mxu0 0.0
    %1017 = vmatpush1.xpose.msra.mxu0 0.0
    %1018 = vmatprep.subr.mxu0 0.0
    %1019 = vmatpush1.xpose.msra.mxu0 0.0
    %1020 = vmatprep.subr.mxu0 0.0
    %1021 = vmatpush1.xpose.msra.mxu0 0.0
    %1022 = vmatprep.subr.mxu0 0.0
    %1023 = vmatpush1.xpose.msra.mxu0 0.0
    %1024 = vmatprep.subr.mxu0 0.0
    %1025 = vmatpush1.xpose.msra.mxu0 0.0
    %1026 = vmatprep.subr.mxu0 0.0
    %1027 = vmatpush1.xpose.msra.mxu0 0.0
    %1028 = vmatprep.subr.mxu0 0.0
    %1029 = vmatpush1.xpose.msra.mxu0 0.0
    %1030 = vmatprep.subr.mxu0 0.0
    %1031 = vmatpush1.xpose.msra.mxu0 0.0
    %1032 = vmatprep.subr.mxu0 0.0
    %1033 = vmatpush1.xpose.msra.mxu0 0.0
    %1034 = vmatprep.subr.mxu0 0.0
    %1035 = vmatpush1.xpose.msra.mxu0 0.0
    %1036 = vmatprep.subr.mxu0 0.0
    %1037 = vmatpush1.xpose.msra.mxu0 0.0
    %1038 = vmatprep.subr.mxu0 0.0
    %1039 = vmatpush1.xpose.msra.mxu0 0.0
    %1040 = vmatprep.subr.mxu0 0.0
    %1041 = vmatpush1.xpose.msra.mxu0 0.0
    %1042 = vmatprep.subr.mxu0 0.0
    %1043 = vmatpush1.xpose.msra.mxu0 0.0
    %1044 = vmatprep.subr.mxu0 0.0
    %1045 = vmatpush1.xpose.msra.mxu0 0.0
    %1046 = vmatprep.mubr.f32.mxu0 0.0
    %1047 = vmatmul.mubr.f32.gmra.mrb[0].mxu0 %v974
    %v1048 = vpop.f32.mrb[0].mxu0
    %v1049 = vadd.f32 0.0, %v1048
    %v1050 = vpop.f32.mrb[0].mxu0
    %1051 = vmatprep.mubr.f32.mxu0 0.0
    %1052 = vmatmul.mubr.f32.gmra.mrb[0].mxu0 %v976
    %v1053 = vpop.f32.mrb[0].mxu0
    %v1054 = vadd.f32 0.0, %v1053
    %v1055 = vpop.f32.mrb[0].mxu0
    %1056 = vdwg.mxu0
    %v1057 = vsel %vm413, %v1049, -1e+30
    %v1058 = vsel %vm414, %v1054, -1e+30
    %1059 = vrot.lane.b32.xlu0 %v315, 32
    %v1060 = vpop.permute.xlu0 %1059
    %1061 = vrot.lane.b32.xlu0 %v321, 32
    %v1062 = vpop.permute.xlu0 %1061
    %1063 = vrot.lane.b32.xlu0 %v313, 32
    %v1064 = vpop.permute.xlu0 %1063
    %1065 = vrot.lane.b32.xlu0 %v319, 32
    %v1066 = vpop.permute.xlu0 %1065
    %v1067 = vsel %vm415, %v1060, 0
    %v1069 = vsel %vm415, %v1062, 0
    %v1071 = vsel %vm415, %v1064, 0
    %v1073 = vsel %vm415, %v1066, 0
    %1075 = vmatprep.subr.mxu0 0.0
    %1076 = vmatpush1.xpose.msra.mxu0 %v1071
    %1077 = vmatprep.subr.mxu0 0.0
    %1078 = vmatpush1.xpose.msra.mxu0 %v1073
    %1079 = vmatprep.subr.mxu0 0.0
    %1080 = vmatpush1.xpose.msra.mxu0 0.0
    %1081 = vmatprep.subr.mxu0 0.0
    %1082 = vmatpush1.xpose.msra.mxu0 0.0
    %1083 = vmatprep.subr.mxu0 0.0
    %1084 = vmatpush1.xpose.msra.mxu0 0.0
    %1085 = vmatprep.subr.mxu0 0.0
    %1086 = vmatpush1.xpose.msra.mxu0 0.0
    %1087 = vmatprep.subr.mxu0 0.0
    %1088 = vmatpush1.xpose.msra.mxu0 0.0
    %1089 = vmatprep.subr.mxu0 0.0
    %1090 = vmatpush1.xpose.msra.mxu0 0.0
    %1091 = vmatprep.subr.mxu0 0.0
    %1092 = vmatpush1.xpose.msra.mxu0 0.0
    %1093 = vmatprep.subr.mxu0 0.0
    %1094 = vmatpush1.xpose.msra.mxu0 0.0
    %1095 = vmatprep.subr.mxu0 0.0
    %1096 = vmatpush1.xpose.msra.mxu0 0.0
    %1097 = vmatprep.subr.mxu0 0.0
    %1098 = vmatpush1.xpose.msra.mxu0 0.0
    %1099 = vmatprep.subr.mxu0 0.0
    %1100 = vmatpush1.xpose.msra.mxu0 0.0
    %1101 = vmatprep.subr.mxu0 0.0
    %1102 = vmatpush1.xpose.msra.mxu0 0.0
    %1103 = vmatprep.subr.mxu0 0.0
    %1104 = vmatpush1.xpose.msra.mxu0 0.0
    %1105 = vmatprep.subr.mxu0 0.0
    %1106 = vmatpush1.xpose.msra.mxu0 0.0
    %1107 = vmatprep.subr.mxu0 0.0
    %1108 = vmatpush1.xpose.msra.mxu0 0.0
    %1109 = vmatprep.subr.mxu0 0.0
    %1110 = vmatpush1.xpose.msra.mxu0 0.0
    %1111 = vmatprep.subr.mxu0 0.0
    %1112 = vmatpush1.xpose.msra.mxu0 0.0
    %1113 = vmatprep.subr.mxu0 0.0
    %1114 = vmatpush1.xpose.msra.mxu0 0.0
    %1115 = vmatprep.subr.mxu0 0.0
    %1116 = vmatpush1.xpose.msra.mxu0 0.0
    %1117 = vmatprep.subr.mxu0 0.0
    %1118 = vmatpush1.xpose.msra.mxu0 0.0
    %1119 = vmatprep.subr.mxu0 0.0
    %1120 = vmatpush1.xpose.msra.mxu0 0.0
    %1121 = vmatprep.subr.mxu0 0.0
    %1122 = vmatpush1.xpose.msra.mxu0 0.0
    %1123 = vmatprep.subr.mxu0 0.0
    %1124 = vmatpush1.xpose.msra.mxu0 0.0
    %1125 = vmatprep.subr.mxu0 0.0
    %1126 = vmatpush1.xpose.msra.mxu0 0.0
    %1127 = vmatprep.subr.mxu0 0.0
    %1128 = vmatpush1.xpose.msra.mxu0 0.0
    %1129 = vmatprep.subr.mxu0 0.0
    %1130 = vmatpush1.xpose.msra.mxu0 0.0
    %1131 = vmatprep.subr.mxu0 0.0
    %1132 = vmatpush1.xpose.msra.mxu0 0.0
    %1133 = vmatprep.subr.mxu0 0.0
    %1134 = vmatpush1.xpose.msra.mxu0 0.0
    %1135 = vmatprep.subr.mxu0 0.0
    %1136 = vmatpush1.xpose.msra.mxu0 0.0
    %1137 = vmatprep.subr.mxu0 0.0
    %1138 = vmatpush1.xpose.msra.mxu0 0.0
    %1139 = vmatprep.mubr.f32.mxu0 0.0
    %1140 = vmatmul.mubr.f32.gmra.mrb[0].mxu0 %v1067
    %v1141 = vpop.f32.mrb[0].mxu0
    %v1142 = vadd.f32 0.0, %v1141
    %v1143 = vpop.f32.mrb[0].mxu0
    %1144 = vmatprep.mubr.f32.mxu0 0.0
    %1145 = vmatmul.mubr.f32.gmra.mrb[0].mxu0 %v1069
    %v1146 = vpop.f32.mrb[0].mxu0
    %v1147 = vadd.f32 0.0, %v1146
    %v1148 = vpop.f32.mrb[0].mxu0
    %1149 = vdwg.mxu0
    %v1150 = vsel %vm413, %v1142, -1e+30
    %v1151 = vsel %vm414, %v1147, -1e+30
    %vm1152 = vcmask 130048
    %v1153 = vsel %vm1152, %v503, -inf
    %1154 = vmax.xlane.f32.xlu0 %v1153
    %v1155 = vpop.xlane.xlu0 %1154
    %v1156 = vsel %vm1152, %v504, -inf
    %1157 = vmax.xlane.f32.xlu0 %v1156
    %v1158 = vpop.xlane.xlu0 %1157
    %v1159 = vsel %vm1152, %v596, -inf
    %1160 = vmax.xlane.f32.xlu0 %v1159
    %v1161 = vpop.xlane.xlu0 %1160
    %v1162 = vsel %vm1152, %v597, -inf
    %1163 = vmax.xlane.f32.xlu0 %v1162
    %v1164 = vpop.xlane.xlu0 %1163
    %v1165 = vsel %vm1152, %v689, -inf
    %1166 = vmax.xlane.f32.xlu0 %v1165
    %v1167 = vpop.xlane.xlu0 %1166
    %v1168 = vsel %vm1152, %v690, -inf
    %1169 = vmax.xlane.f32.xlu0 %v1168
    %v1170 = vpop.xlane.xlu0 %1169
    %v1171 = vsel %vm1152, %v782, -inf
    %1172 = vmax.xlane.f32.xlu0 %v1171
    %v1173 = vpop.xlane.xlu0 %1172
    %v1174 = vsel %vm1152, %v783, -inf
    %1175 = vmax.xlane.f32.xlu0 %v1174
    %v1176 = vpop.xlane.xlu0 %1175
    %v1177 = vsel %vm1152, %v871, -inf
    %1178 = vmax.xlane.f32.xlu0 %v1177
    %v1179 = vpop.xlane.xlu0 %1178
    %v1180 = vsel %vm1152, %v872, -inf
    %1181 = vmax.xlane.f32.xlu0 %v1180
    %v1182 = vpop.xlane.xlu0 %1181
    %v1183 = vsel %vm1152, %v964, -inf
    %1184 = vmax.xlane.f32.xlu0 %v1183
    %v1185 = vpop.xlane.xlu0 %1184
    %v1186 = vsel %vm1152, %v965, -inf
    %1187 = vmax.xlane.f32.xlu0 %v1186
    %v1188 = vpop.xlane.xlu0 %1187
    %v1189 = vsel %vm1152, %v1057, -inf
    %1190 = vmax.xlane.f32.xlu0 %v1189
    %v1191 = vpop.xlane.xlu0 %1190
    %v1192 = vsel %vm1152, %v1058, -inf
    %1193 = vmax.xlane.f32.xlu0 %v1192
    %v1194 = vpop.xlane.xlu0 %1193
    %v1195 = vsel %vm1152, %v1150, -inf
    %1196 = vmax.xlane.f32.xlu0 %v1195
    %v1197 = vpop.xlane.xlu0 %1196
    %v1198 = vsel %vm1152, %v1151, -inf
    %1199 = vmax.xlane.f32.xlu0 %v1198
    %v1200 = vpop.xlane.xlu0 %1199
    %v1201 = vsub.f32 %v503, %v1155
    %v1202 = vsub.f32 %v504, %v1158
    %v1203 = vsub.f32 %v596, %v1161
    %v1204 = vsub.f32 %v597, %v1164
    %v1205 = vsub.f32 %v689, %v1167
    %v1206 = vsub.f32 %v690, %v1170
    %v1207 = vsub.f32 %v782, %v1173
    %v1208 = vsub.f32 %v783, %v1176
    %v1209 = vsub.f32 %v871, %v1179
    %v1210 = vsub.f32 %v872, %v1182
    %v1211 = vsub.f32 %v964, %v1185
    %v1212 = vsub.f32 %v965, %v1188
    %v1213 = vsub.f32 %v1057, %v1191
    %v1214 = vsub.f32 %v1058, %v1194
    %v1215 = vsub.f32 %v1150, %v1197
    %v1216 = vsub.f32 %v1151, %v1200
    %v1217 = vmul.f32 %v1201, 1.442695
    %v1218 = vpow.pop %v1217
    %v1219 = vmul.f32 %v1202, 1.442695
    %v1220 = vpow.pop %v1219
    %v1221 = vmul.f32 %v1203, 1.442695
    %v1222 = vpow.pop %v1221
    %v1223 = vmul.f32 %v1204, 1.442695
    %v1224 = vpow.pop %v1223
    %v1225 = vmul.f32 %v1205, 1.442695
    %v1226 = vpow.pop %v1225
    %v1227 = vmul.f32 %v1206, 1.442695
    %v1228 = vpow.pop %v1227
    %v1229 = vmul.f32 %v1207, 1.442695
    %v1230 = vpow.pop %v1229
    %v1231 = vmul.f32 %v1208, 1.442695
    %v1232 = vpow.pop %v1231
    %v1233 = vmul.f32 %v1209, 1.442695
    %v1234 = vpow.pop %v1233
    %v1235 = vmul.f32 %v1210, 1.442695
    %v1236 = vpow.pop %v1235
    %v1237 = vmul.f32 %v1211, 1.442695
    %v1238 = vpow.pop %v1237
    %v1239 = vmul.f32 %v1212, 1.442695
    %v1240 = vpow.pop %v1239
    %v1241 = vmul.f32 %v1213, 1.442695
    %v1242 = vpow.pop %v1241
    %v1243 = vmul.f32 %v1214, 1.442695
    %v1244 = vpow.pop %v1243
    %v1245 = vmul.f32 %v1215, 1.442695
    %v1246 = vpow.pop %v1245
    %v1247 = vmul.f32 %v1216, 1.442695
    %v1248 = vpow.pop %v1247
    %v1249 = vsel %vm1152, %v1218, 0.0
    %1250 = vadd.xlane.f32.xlu0 %v1249
    %v1251 = vpop.xlane.xlu0 %1250
    %v1252 = vsel %vm1152, %v1220, 0.0
    %1253 = vadd.xlane.f32.xlu0 %v1252
    %v1254 = vpop.xlane.xlu0 %1253
    %v1255 = vsel %vm1152, %v1222, 0.0
    %1256 = vadd.xlane.f32.xlu0 %v1255
    %v1257 = vpop.xlane.xlu0 %1256
    %v1258 = vsel %vm1152, %v1224, 0.0
    %1259 = vadd.xlane.f32.xlu0 %v1258
    %v1260 = vpop.xlane.xlu0 %1259
    %v1261 = vsel %vm1152, %v1226, 0.0
    %1262 = vadd.xlane.f32.xlu0 %v1261
    %v1263 = vpop.xlane.xlu0 %1262
    %v1264 = vsel %vm1152, %v1228, 0.0
    %1265 = vadd.xlane.f32.xlu0 %v1264
    %v1266 = vpop.xlane.xlu0 %1265
    %v1267 = vsel %vm1152, %v1230, 0.0
    %1268 = vadd.xlane.f32.xlu0 %v1267
    %v1269 = vpop.xlane.xlu0 %1268
    %v1270 = vsel %vm1152, %v1232, 0.0
    %1271 = vadd.xlane.f32.xlu0 %v1270
    %v1272 = vpop.xlane.xlu0 %1271
    %v1273 = vsel %vm1152, %v1234, 0.0
    %1274 = vadd.xlane.f32.xlu0 %v1273
    %v1275 = vpop.xlane.xlu0 %1274
    %v1276 = vsel %vm1152, %v1236, 0.0
    %1277 = vadd.xlane.f32.xlu0 %v1276
    %v1278 = vpop.xlane.xlu0 %1277
    %v1279 = vsel %vm1152, %v1238, 0.0
    %1280 = vadd.xlane.f32.xlu0 %v1279
    %v1281 = vpop.xlane.xlu0 %1280
    %v1282 = vsel %vm1152, %v1240, 0.0
    %1283 = vadd.xlane.f32.xlu0 %v1282
    %v1284 = vpop.xlane.xlu0 %1283
    %v1285 = vsel %vm1152, %v1242, 0.0
    %1286 = vadd.xlane.f32.xlu0 %v1285
    %v1287 = vpop.xlane.xlu0 %1286
    %v1288 = vsel %vm1152, %v1244, 0.0
    %1289 = vadd.xlane.f32.xlu0 %v1288
    %v1290 = vpop.xlane.xlu0 %1289
    %v1291 = vsel %vm1152, %v1246, 0.0
    %1292 = vadd.xlane.f32.xlu0 %v1291
    %v1293 = vpop.xlane.xlu0 %1292
    %v1294 = vsel %vm1152, %v1248, 0.0
    %1295 = vadd.xlane.f32.xlu0 %v1294
    %v1296 = vpop.xlane.xlu0 %1295
    %v1297 = vrcp.pop %v1251
    %v1298 = vrcp.pop %v1254
    %v1299 = vrcp.pop %v1257
    %v1300 = vrcp.pop %v1260
    %v1301 = vrcp.pop %v1263
    %v1302 = vrcp.pop %v1266
    %v1303 = vrcp.pop %v1269
    %v1304 = vrcp.pop %v1272
    %v1305 = vrcp.pop %v1275
    %v1306 = vrcp.pop %v1278
    %v1307 = vrcp.pop %v1281
    %v1308 = vrcp.pop %v1284
    %v1309 = vrcp.pop %v1287
    %v1310 = vrcp.pop %v1290
    %v1311 = vrcp.pop %v1293
    %v1312 = vrcp.pop %v1296
    %v1313 = vmul.f32 %v1218, %v1297
    %v1314 = vmul.f32 %v1220, %v1298
    %v1315 = vmul.f32 %v1222, %v1299
    %v1316 = vmul.f32 %v1224, %v1300
    %v1317 = vmul.f32 %v1226, %v1301
    %v1318 = vmul.f32 %v1228, %v1302
    %v1319 = vmul.f32 %v1230, %v1303
    %v1320 = vmul.f32 %v1232, %v1304
    %v1321 = vmul.f32 %v1234, %v1305
    %v1322 = vmul.f32 %v1236, %v1306
    %v1323 = vmul.f32 %v1238, %v1307
    %v1324 = vmul.f32 %v1240, %v1308
    %v1325 = vmul.f32 %v1242, %v1309
    %v1326 = vmul.f32 %v1244, %v1310
    %v1327 = vmul.f32 %v1246, %v1311
    %v1328 = vmul.f32 %v1248, %v1312
    %v1330 = vsel %vm1152, %v1313, 0
    %v1333 = vsel %vm1152, %v1314, 0
    %1335 = vmatprep.subr.mxu0 0.0
    %1336 = vmatpush1.msra.mxu0 %v390
    %1337 = vmatprep.subr.mxu0 0.0
    %1338 = vmatpush1.msra.mxu0 %v395
    %1339 = vmatprep.subr.mxu0 0.0
    %1340 = vmatpush1.msra.mxu0 0.0
    %1341 = vmatprep.subr.mxu0 0.0
    %1342 = vmatpush1.msra.mxu0 0.0
    %1343 = vmatprep.subr.mxu0 0.0
    %1344 = vmatpush1.msra.mxu0 0.0
    %1345 = vmatprep.subr.mxu0 0.0
    %1346 = vmatpush1.msra.mxu0 0.0
    %1347 = vmatprep.subr.mxu0 0.0
    %1348 = vmatpush1.msra.mxu0 0.0
    %1349 = vmatprep.subr.mxu0 0.0
    %1350 = vmatpush1.msra.mxu0 0.0
    %1351 = vmatprep.subr.mxu0 0.0
    %1352 = vmatpush1.msra.mxu0 0.0
    %1353 = vmatprep.subr.mxu0 0.0
    %1354 = vmatpush1.msra.mxu0 0.0
    %1355 = vmatprep.subr.mxu0 0.0
    %1356 = vmatpush1.msra.mxu0 0.0
    %1357 = vmatprep.subr.mxu0 0.0
    %1358 = vmatpush1.msra.mxu0 0.0
    %1359 = vmatprep.subr.mxu0 0.0
    %1360 = vmatpush1.msra.mxu0 0.0
    %1361 = vmatprep.subr.mxu0 0.0
    %1362 = vmatpush1.msra.mxu0 0.0
    %1363 = vmatprep.subr.mxu0 0.0
    %1364 = vmatpush1.msra.mxu0 0.0
    %1365 = vmatprep.subr.mxu0 0.0
    %1366 = vmatpush1.msra.mxu0 0.0
    %1367 = vmatprep.subr.mxu0 0.0
    %1368 = vmatpush1.msra.mxu0 0.0
    %1369 = vmatprep.subr.mxu0 0.0
    %1370 = vmatpush1.msra.mxu0 0.0
    %1371 = vmatprep.subr.mxu0 0.0
    %1372 = vmatpush1.msra.mxu0 0.0
    %1373 = vmatprep.subr.mxu0 0.0
    %1374 = vmatpush1.msra.mxu0 0.0
    %1375 = vmatprep.subr.mxu0 0.0
    %1376 = vmatpush1.msra.mxu0 0.0
    %1377 = vmatprep.subr.mxu0 0.0
    %1378 = vmatpush1.msra.mxu0 0.0
    %1379 = vmatprep.subr.mxu0 0.0
    %1380 = vmatpush1.msra.mxu0 0.0
    %1381 = vmatprep.subr.mxu0 0.0
    %1382 = vmatpush1.msra.mxu0 0.0
    %1383 = vmatprep.subr.mxu0 0.0
    %1384 = vmatpush1.msra.mxu0 0.0
    %1385 = vmatprep.subr.mxu0 0.0
    %1386 = vmatpush1.msra.mxu0 0.0
    %1387 = vmatprep.subr.mxu0 0.0
    %1388 = vmatpush1.msra.mxu0 0.0
    %1389 = vmatprep.subr.mxu0 0.0
    %1390 = vmatpush1.msra.mxu0 0.0
    %1391 = vmatprep.subr.mxu0 0.0
    %1392 = vmatpush1.msra.mxu0 0.0
    %1393 = vmatprep.subr.mxu0 0.0
    %1394 = vmatpush1.msra.mxu0 0.0
    %1395 = vmatprep.subr.mxu0 0.0
    %1396 = vmatpush1.msra.mxu0 0.0
    %1397 = vmatprep.subr.mxu0 0.0
    %1398 = vmatpush1.msra.mxu0 0.0
    %1399 = vmatprep.mubr.f32.mxu0 0.0
    %1400 = vmatmul.mubr.f32.gmra.mrb[0].mxu0 %v1330
    %v1401 = vpop.f32.mrb[0].mxu0
    %v1402 = vadd.f32 0.0, %v1401
    %v1403 = vpop.f32.mrb[0].mxu0
    %1404 = vmatprep.mubr.f32.mxu0 0.0
    %1405 = vmatmul.mubr.f32.gmra.mrb[0].mxu0 %v1333
    %v1406 = vpop.f32.mrb[0].mxu0
    %v1407 = vadd.f32 0.0, %v1406
    %v1408 = vpop.f32.mrb[0].mxu0
    %1409 = vdwg.mxu0
    %v1410 = vld [vmem:[#allocation7] sm:$0xff]
    %v1411 = vld [vmem:[#allocation7 + $0x8] sm:$0xff]
    %v1412 = vld [vmem:[#allocation7 + $0x10] sm:$0xff]
    %v1413 = vld [vmem:[#allocation7 + $0x18] sm:$0xff]
    %1416 = vrot.lane.b32.xlu0 %v390, 96
    %v1417 = vpop.permute.xlu0 %1416
    %1418 = vrot.lane.b32.xlu0 %v395, 96
    %v1419 = vpop.permute.xlu0 %1418
    %v1423 = vsel %vm1152, %v1315, 0
    %v1426 = vsel %vm1152, %v1316, 0
    %1428 = vmatprep.subr.mxu0 0.0
    %1429 = vmatpush1.msra.mxu0 %v1417
    %1430 = vmatprep.subr.mxu0 0.0
    %1431 = vmatpush1.msra.mxu0 %v1419
    %1432 = vmatprep.subr.mxu0 0.0
    %1433 = vmatpush1.msra.mxu0 0.0
    %1434 = vmatprep.subr.mxu0 0.0
    %1435 = vmatpush1.msra.mxu0 0.0
    %1436 = vmatprep.subr.mxu0 0.0
    %1437 = vmatpush1.msra.mxu0 0.0
    %1438 = vmatprep.subr.mxu0 0.0
    %1439 = vmatpush1.msra.mxu0 0.0
    %1440 = vmatprep.subr.mxu0 0.0
    %1441 = vmatpush1.msra.mxu0 0.0
    %1442 = vmatprep.subr.mxu0 0.0
    %1443 = vmatpush1.msra.mxu0 0.0
    %1444 = vmatprep.subr.mxu0 0.0
    %1445 = vmatpush1.msra.mxu0 0.0
    %1446 = vmatprep.subr.mxu0 0.0
    %1447 = vmatpush1.msra.mxu0 0.0
    %1448 = vmatprep.subr.mxu0 0.0
    %1449 = vmatpush1.msra.mxu0 0.0
    %1450 = vmatprep.subr.mxu0 0.0
    %1451 = vmatpush1.msra.mxu0 0.0
    %1452 = vmatprep.subr.mxu0 0.0
    %1453 = vmatpush1.msra.mxu0 0.0
    %1454 = vmatprep.subr.mxu0 0.0
    %1455 = vmatpush1.msra.mxu0 0.0
    %1456 = vmatprep.subr.mxu0 0.0
    %1457 = vmatpush1.msra.mxu0 0.0
    %1458 = vmatprep.subr.mxu0 0.0
    %1459 = vmatpush1.msra.mxu0 0.0
    %1460 = vmatprep.subr.mxu0 0.0
    %1461 = vmatpush1.msra.mxu0 0.0
    %1462 = vmatprep.subr.mxu0 0.0
    %1463 = vmatpush1.msra.mxu0 0.0
    %1464 = vmatprep.subr.mxu0 0.0
    %1465 = vmatpush1.msra.mxu0 0.0
    %1466 = vmatprep.subr.mxu0 0.0
    %1467 = vmatpush1.msra.mxu0 0.0
    %1468 = vmatprep.subr.mxu0 0.0
    %1469 = vmatpush1.msra.mxu0 0.0
    %1470 = vmatprep.subr.mxu0 0.0
    %1471 = vmatpush1.msra.mxu0 0.0
    %1472 = vmatprep.subr.mxu0 0.0
    %1473 = vmatpush1.msra.mxu0 0.0
    %1474 = vmatprep.subr.mxu0 0.0
    %1475 = vmatpush1.msra.mxu0 0.0
    %1476 = vmatprep.subr.mxu0 0.0
    %1477 = vmatpush1.msra.mxu0 0.0
    %1478 = vmatprep.subr.mxu0 0.0
    %1479 = vmatpush1.msra.mxu0 0.0
    %1480 = vmatprep.subr.mxu0 0.0
    %1481 = vmatpush1.msra.mxu0 0.0
    %1482 = vmatprep.subr.mxu0 0.0
    %1483 = vmatpush1.msra.mxu0 0.0
    %1484 = vmatprep.subr.mxu0 0.0
    %1485 = vmatpush1.msra.mxu0 0.0
    %1486 = vmatprep.subr.mxu0 0.0
    %1487 = vmatpush1.msra.mxu0 0.0
    %1488 = vmatprep.subr.mxu0 0.0
    %1489 = vmatpush1.msra.mxu0 0.0
    %1490 = vmatprep.subr.mxu0 0.0
    %1491 = vmatpush1.msra.mxu0 0.0
    %1492 = vmatprep.mubr.f32.mxu0 0.0
    %1493 = vmatmul.mubr.f32.gmra.mrb[0].mxu0 %v1423
    %v1494 = vpop.f32.mrb[0].mxu0
    %v1495 = vadd.f32 0.0, %v1494
    %v1496 = vpop.f32.mrb[0].mxu0
    %1497 = vmatprep.mubr.f32.mxu0 0.0
    %1498 = vmatmul.mubr.f32.gmra.mrb[0].mxu0 %v1426
    %v1499 = vpop.f32.mrb[0].mxu0
    %v1500 = vadd.f32 0.0, %v1499
    %v1501 = vpop.f32.mrb[0].mxu0
    %1502 = vdwg.mxu0
    %v1503 = vld [vmem:[#allocation7 + $0x20] sm:$0xff]
    %v1504 = vld [vmem:[#allocation7 + $0x28] sm:$0xff]
    %v1505 = vld [vmem:[#allocation7 + $0x30] sm:$0xff]
    %v1506 = vld [vmem:[#allocation7 + $0x38] sm:$0xff]
    %v1508 = vsel %vm415, %v1495, 0
    %v1511 = vsel %vm415, %v1500, 0
    %1513 = vmatprep.subr.mxu0 0.0
    %1514 = vmatpush1.msra.mxu0 %v1503
    %1515 = vmatprep.subr.mxu0 0.0
    %1516 = vmatpush1.msra.mxu0 %v1504
    %1517 = vmatprep.subr.mxu0 0.0
    %1518 = vmatpush1.msra.mxu0 %v1505
    %1519 = vmatprep.subr.mxu0 0.0
    %1520 = vmatpush1.msra.mxu0 %v1506
    %1521 = vmatprep.subr.mxu0 0.0
    %1522 = vmatpush1.msra.mxu0 0.0
    %1523 = vmatprep.subr.mxu0 0.0
    %1524 = vmatpush1.msra.mxu0 0.0
    %1525 = vmatprep.subr.mxu0 0.0
    %1526 = vmatpush1.msra.mxu0 0.0
    %1527 = vmatprep.subr.mxu0 0.0
    %1528 = vmatpush1.msra.mxu0 0.0
    %1529 = vmatprep.subr.mxu0 0.0
    %1530 = vmatpush1.msra.mxu0 0.0
    %1531 = vmatprep.subr.mxu0 0.0
    %1532 = vmatpush1.msra.mxu0 0.0
    %1533 = vmatprep.subr.mxu0 0.0
    %1534 = vmatpush1.msra.mxu0 0.0
    %1535 = vmatprep.subr.mxu0 0.0
    %1536 = vmatpush1.msra.mxu0 0.0
    %1537 = vmatprep.subr.mxu0 0.0
    %1538 = vmatpush1.msra.mxu0 0.0
    %1539 = vmatprep.subr.mxu0 0.0
    %1540 = vmatpush1.msra.mxu0 0.0
    %1541 = vmatprep.subr.mxu0 0.0
    %1542 = vmatpush1.msra.mxu0 0.0
    %1543 = vmatprep.subr.mxu0 0.0
    %1544 = vmatpush1.msra.mxu0 0.0
    %1545 = vmatprep.subr.mxu0 0.0
    %1546 = vmatpush1.msra.mxu0 0.0
    %1547 = vmatprep.subr.mxu0 0.0
    %1548 = vmatpush1.msra.mxu0 0.0
    %1549 = vmatprep.subr.mxu0 0.0
    %1550 = vmatpush1.msra.mxu0 0.0
    %1551 = vmatprep.subr.mxu0 0.0
    %1552 = vmatpush1.msra.mxu0 0.0
    %1553 = vmatprep.subr.mxu0 0.0
    %1554 = vmatpush1.msra.mxu0 0.0
    %1555 = vmatprep.subr.mxu0 0.0
    %1556 = vmatpush1.msra.mxu0 0.0
    %1557 = vmatprep.subr.mxu0 0.0
    %1558 = vmatpush1.msra.mxu0 0.0
    %1559 = vmatprep.subr.mxu0 0.0
    %1560 = vmatpush1.msra.mxu0 0.0
    %1561 = vmatprep.subr.mxu0 0.0
    %1562 = vmatpush1.msra.mxu0 0.0
    %1563 = vmatprep.subr.mxu0 0.0
    %1564 = vmatpush1.msra.mxu0 0.0
    %1565 = vmatprep.subr.mxu0 0.0
    %1566 = vmatpush1.msra.mxu0 0.0
    %1567 = vmatprep.subr.mxu0 0.0
    %1568 = vmatpush1.msra.mxu0 0.0
    %1569 = vmatprep.subr.mxu0 0.0
    %1570 = vmatpush1.msra.mxu0 0.0
    %1571 = vmatprep.subr.mxu0 0.0
    %1572 = vmatpush1.msra.mxu0 0.0
    %1573 = vmatprep.subr.mxu0 0.0
    %1574 = vmatpush1.msra.mxu0 0.0
    %1575 = vmatprep.subr.mxu0 0.0
    %1576 = vmatpush1.msra.mxu0 0.0
    %1577 = vmatprep.mubr.f32.mxu0 0.0
    %1578 = vmatmul.mubr.f32.gmra.mrb[0].mxu0 %v1508
    %v1579 = vpop.f32.mrb[0].mxu0
    %v1580 = vadd.f32 0.0, %v1579
    %v1581 = vpop.f32.mrb[0].mxu0
    %1582 = vmatprep.mubr.f32.mxu0 0.0
    %1583 = vmatmul.mubr.f32.gmra.mrb[0].mxu0 %v1511
    %v1584 = vpop.f32.mrb[0].mxu0
    %v1585 = vadd.f32 0.0, %v1584
    %v1586 = vpop.f32.mrb[0].mxu0
    %1587 = vdwg.mxu0
    %v1589 = vsel %vm415, %v1402, 0
    %v1592 = vsel %vm415, %v1407, 0
    %1594 = vmatprep.subr.mxu0 0.0
    %1595 = vmatpush1.msra.mxu0 %v1410
    %1596 = vmatprep.subr.mxu0 0.0
    %1597 = vmatpush1.msra.mxu0 %v1411
    %1598 = vmatprep.subr.mxu0 0.0
    %1599 = vmatpush1.msra.mxu0 %v1412
    %1600 = vmatprep.subr.mxu0 0.0
    %1601 = vmatpush1.msra.mxu0 %v1413
    %1602 = vmatprep.subr.mxu0 0.0
    %1603 = vmatpush1.msra.mxu0 0.0
    %1604 = vmatprep.subr.mxu0 0.0
    %1605 = vmatpush1.msra.mxu0 0.0
    %1606 = vmatprep.subr.mxu0 0.0
    %1607 = vmatpush1.msra.mxu0 0.0
    %1608 = vmatprep.subr.mxu0 0.0
    %1609 = vmatpush1.msra.mxu0 0.0
    %1610 = vmatprep.subr.mxu0 0.0
    %1611 = vmatpush1.msra.mxu0 0.0
    %1612 = vmatprep.subr.mxu0 0.0
    %1613 = vmatpush1.msra.mxu0 0.0
    %1614 = vmatprep.subr.mxu0 0.0
    %1615 = vmatpush1.msra.mxu0 0.0
    %1616 = vmatprep.subr.mxu0 0.0
    %1617 = vmatpush1.msra.mxu0 0.0
    %1618 = vmatprep.subr.mxu0 0.0
    %1619 = vmatpush1.msra.mxu0 0.0
    %1620 = vmatprep.subr.mxu0 0.0
    %1621 = vmatpush1.msra.mxu0 0.0
    %1622 = vmatprep.subr.mxu0 0.0
    %1623 = vmatpush1.msra.mxu0 0.0
    %1624 = vmatprep.subr.mxu0 0.0
    %1625 = vmatpush1.msra.mxu0 0.0
    %1626 = vmatprep.subr.mxu0 0.0
    %1627 = vmatpush1.msra.mxu0 0.0
    %1628 = vmatprep.subr.mxu0 0.0
    %1629 = vmatpush1.msra.mxu0 0.0
    %1630 = vmatprep.subr.mxu0 0.0
    %1631 = vmatpush1.msra.mxu0 0.0
    %1632 = vmatprep.subr.mxu0 0.0
    %1633 = vmatpush1.msra.mxu0 0.0
    %1634 = vmatprep.subr.mxu0 0.0
    %1635 = vmatpush1.msra.mxu0 0.0
    %1636 = vmatprep.subr.mxu0 0.0
    %1637 = vmatpush1.msra.mxu0 0.0
    %1638 = vmatprep.subr.mxu0 0.0
    %1639 = vmatpush1.msra.mxu0 0.0
    %1640 = vmatprep.subr.mxu0 0.0
    %1641 = vmatpush1.msra.mxu0 0.0
    %1642 = vmatprep.subr.mxu0 0.0
    %1643 = vmatpush1.msra.mxu0 0.0
    %1644 = vmatprep.subr.mxu0 0.0
    %1645 = vmatpush1.msra.mxu0 0.0
    %1646 = vmatprep.subr.mxu0 0.0
    %1647 = vmatpush1.msra.mxu0 0.0
    %1648 = vmatprep.subr.mxu0 0.0
    %1649 = vmatpush1.msra.mxu0 0.0
    %1650 = vmatprep.subr.mxu0 0.0
    %1651 = vmatpush1.msra.mxu0 0.0
    %1652 = vmatprep.subr.mxu0 0.0
    %1653 = vmatpush1.msra.mxu0 0.0
    %1654 = vmatprep.subr.mxu0 0.0
    %1655 = vmatpush1.msra.mxu0 0.0
    %1656 = vmatprep.subr.mxu0 0.0
    %1657 = vmatpush1.msra.mxu0 0.0
    %1658 = vmatprep.mubr.f32.mxu0 0.0
    %1659 = vmatmul.mubr.f32.gmra.mrb[0].mxu0 %v1589
    %v1660 = vpop.f32.mrb[0].mxu0
    %v1661 = vadd.f32 %v1580, %v1660
    %v1662 = vpop.f32.mrb[0].mxu0
    %1663 = vmatprep.mubr.f32.mxu0 0.0
    %1664 = vmatmul.mubr.f32.gmra.mrb[0].mxu0 %v1592
    %v1665 = vpop.f32.mrb[0].mxu0
    %v1666 = vadd.f32 %v1585, %v1665
    %v1667 = vpop.f32.mrb[0].mxu0
    %1668 = vdwg.mxu0
    %1669 = vrot.lane.b32.xlu0 %v390, 64
    %v1670 = vpop.permute.xlu0 %1669
    %1671 = vrot.lane.b32.xlu0 %v395, 64
    %v1672 = vpop.permute.xlu0 %1671
    %v1676 = vsel %vm1152, %v1317, 0
    %v1679 = vsel %vm1152, %v1318, 0
    %1681 = vmatprep.subr.mxu0 0.0
    %1682 = vmatpush1.msra.mxu0 %v1670
    %1683 = vmatprep.subr.mxu0 0.0
    %1684 = vmatpush1.msra.mxu0 %v1672
    %1685 = vmatprep.subr.mxu0 0.0
    %1686 = vmatpush1.msra.mxu0 0.0
    %1687 = vmatprep.subr.mxu0 0.0
    %1688 = vmatpush1.msra.mxu0 0.0
    %1689 = vmatprep.subr.mxu0 0.0
    %1690 = vmatpush1.msra.mxu0 0.0
    %1691 = vmatprep.subr.mxu0 0.0
    %1692 = vmatpush1.msra.mxu0 0.0
    %1693 = vmatprep.subr.mxu0 0.0
    %1694 = vmatpush1.msra.mxu0 0.0
    %1695 = vmatprep.subr.mxu0 0.0
    %1696 = vmatpush1.msra.mxu0 0.0
    %1697 = vmatprep.subr.mxu0 0.0
    %1698 = vmatpush1.msra.mxu0 0.0
    %1699 = vmatprep.subr.mxu0 0.0
    %1700 = vmatpush1.msra.mxu0 0.0
    %1701 = vmatprep.subr.mxu0 0.0
    %1702 = vmatpush1.msra.mxu0 0.0
    %1703 = vmatprep.subr.mxu0 0.0
    %1704 = vmatpush1.msra.mxu0 0.0
    %1705 = vmatprep.subr.mxu0 0.0
    %1706 = vmatpush1.msra.mxu0 0.0
    %1707 = vmatprep.subr.mxu0 0.0
    %1708 = vmatpush1.msra.mxu0 0.0
    %1709 = vmatprep.subr.mxu0 0.0
    %1710 = vmatpush1.msra.mxu0 0.0
    %1711 = vmatprep.subr.mxu0 0.0
    %1712 = vmatpush1.msra.mxu0 0.0
    %1713 = vmatprep.subr.mxu0 0.0
    %1714 = vmatpush1.msra.mxu0 0.0
    %1715 = vmatprep.subr.mxu0 0.0
    %1716 = vmatpush1.msra.mxu0 0.0
    %1717 = vmatprep.subr.mxu0 0.0
    %1718 = vmatpush1.msra.mxu0 0.0
    %1719 = vmatprep.subr.mxu0 0.0
    %1720 = vmatpush1.msra.mxu0 0.0
    %1721 = vmatprep.subr.mxu0 0.0
    %1722 = vmatpush1.msra.mxu0 0.0
    %1723 = vmatprep.subr.mxu0 0.0
    %1724 = vmatpush1.msra.mxu0 0.0
    %1725 = vmatprep.subr.mxu0 0.0
    %1726 = vmatpush1.msra.mxu0 0.0
    %1727 = vmatprep.subr.mxu0 0.0
    %1728 = vmatpush1.msra.mxu0 0.0
    %1729 = vmatprep.subr.mxu0 0.0
    %1730 = vmatpush1.msra.mxu0 0.0
    %1731 = vmatprep.subr.mxu0 0.0
    %1732 = vmatpush1.msra.mxu0 0.0
    %1733 = vmatprep.subr.mxu0 0.0
    %1734 = vmatpush1.msra.mxu0 0.0
    %1735 = vmatprep.subr.mxu0 0.0
    %1736 = vmatpush1.msra.mxu0 0.0
    %1737 = vmatprep.subr.mxu0 0.0
    %1738 = vmatpush1.msra.mxu0 0.0
    %1739 = vmatprep.subr.mxu0 0.0
    %1740 = vmatpush1.msra.mxu0 0.0
    %1741 = vmatprep.subr.mxu0 0.0
    %1742 = vmatpush1.msra.mxu0 0.0
    %1743 = vmatprep.subr.mxu0 0.0
    %1744 = vmatpush1.msra.mxu0 0.0
    %1745 = vmatprep.mubr.f32.mxu0 0.0
    %1746 = vmatmul.mubr.f32.gmra.mrb[0].mxu0 %v1676
    %v1747 = vpop.f32.mrb[0].mxu0
    %v1748 = vadd.f32 0.0, %v1747
    %v1749 = vpop.f32.mrb[0].mxu0
    %1750 = vmatprep.mubr.f32.mxu0 0.0
    %1751 = vmatmul.mubr.f32.gmra.mrb[0].mxu0 %v1679
    %v1752 = vpop.f32.mrb[0].mxu0
    %v1753 = vadd.f32 0.0, %v1752
    %v1754 = vpop.f32.mrb[0].mxu0
    %1755 = vdwg.mxu0
    %v1756 = vld [vmem:[#allocation7 + $0x40] sm:$0xff]
    %v1757 = vld [vmem:[#allocation7 + $0x48] sm:$0xff]
    %v1758 = vld [vmem:[#allocation7 + $0x50] sm:$0xff]
    %v1759 = vld [vmem:[#allocation7 + $0x58] sm:$0xff]
    %v1761 = vsel %vm415, %v1748, 0
    %v1764 = vsel %vm415, %v1753, 0
    %1766 = vmatprep.subr.mxu0 0.0
    %1767 = vmatpush1.msra.mxu0 %v1756
    %1768 = vmatprep.subr.mxu0 0.0
    %1769 = vmatpush1.msra.mxu0 %v1757
    %1770 = vmatprep.subr.mxu0 0.0
    %1771 = vmatpush1.msra.mxu0 %v1758
    %1772 = vmatprep.subr.mxu0 0.0
    %1773 = vmatpush1.msra.mxu0 %v1759
    %1774 = vmatprep.subr.mxu0 0.0
    %1775 = vmatpush1.msra.mxu0 0.0
    %1776 = vmatprep.subr.mxu0 0.0
    %1777 = vmatpush1.msra.mxu0 0.0
    %1778 = vmatprep.subr.mxu0 0.0
    %1779 = vmatpush1.msra.mxu0 0.0
    %1780 = vmatprep.subr.mxu0 0.0
    %1781 = vmatpush1.msra.mxu0 0.0
    %1782 = vmatprep.subr.mxu0 0.0
    %1783 = vmatpush1.msra.mxu0 0.0
    %1784 = vmatprep.subr.mxu0 0.0
    %1785 = vmatpush1.msra.mxu0 0.0
    %1786 = vmatprep.subr.mxu0 0.0
    %1787 = vmatpush1.msra.mxu0 0.0
    %1788 = vmatprep.subr.mxu0 0.0
    %1789 = vmatpush1.msra.mxu0 0.0
    %1790 = vmatprep.subr.mxu0 0.0
    %1791 = vmatpush1.msra.mxu0 0.0
    %1792 = vmatprep.subr.mxu0 0.0
    %1793 = vmatpush1.msra.mxu0 0.0
    %1794 = vmatprep.subr.mxu0 0.0
    %1795 = vmatpush1.msra.mxu0 0.0
    %1796 = vmatprep.subr.mxu0 0.0
    %1797 = vmatpush1.msra.mxu0 0.0
    %1798 = vmatprep.subr.mxu0 0.0
    %1799 = vmatpush1.msra.mxu0 0.0
    %1800 = vmatprep.subr.mxu0 0.0
    %1801 = vmatpush1.msra.mxu0 0.0
    %1802 = vmatprep.subr.mxu0 0.0
    %1803 = vmatpush1.msra.mxu0 0.0
    %1804 = vmatprep.subr.mxu0 0.0
    %1805 = vmatpush1.msra.mxu0 0.0
    %1806 = vmatprep.subr.mxu0 0.0
    %1807 = vmatpush1.msra.mxu0 0.0
    %1808 = vmatprep.subr.mxu0 0.0
    %1809 = vmatpush1.msra.mxu0 0.0
    %1810 = vmatprep.subr.mxu0 0.0
    %1811 = vmatpush1.msra.mxu0 0.0
    %1812 = vmatprep.subr.mxu0 0.0
    %1813 = vmatpush1.msra.mxu0 0.0
    %1814 = vmatprep.subr.mxu0 0.0
    %1815 = vmatpush1.msra.mxu0 0.0
    %1816 = vmatprep.subr.mxu0 0.0
    %1817 = vmatpush1.msra.mxu0 0.0
    %1818 = vmatprep.subr.mxu0 0.0
    %1819 = vmatpush1.msra.mxu0 0.0
    %1820 = vmatprep.subr.mxu0 0.0
    %1821 = vmatpush1.msra.mxu0 0.0
    %1822 = vmatprep.subr.mxu0 0.0
    %1823 = vmatpush1.msra.mxu0 0.0
    %1824 = vmatprep.subr.mxu0 0.0
    %1825 = vmatpush1.msra.mxu0 0.0
    %1826 = vmatprep.subr.mxu0 0.0
    %1827 = vmatpush1.msra.mxu0 0.0
    %1828 = vmatprep.subr.mxu0 0.0
    %1829 = vmatpush1.msra.mxu0 0.0
    %1830 = vmatprep.mubr.f32.mxu0 0.0
    %1831 = vmatmul.mubr.f32.gmra.mrb[0].mxu0 %v1761
    %v1832 = vpop.f32.mrb[0].mxu0
    %v1833 = vadd.f32 0.0, %v1832
    %v1834 = vpop.f32.mrb[0].mxu0
    %1835 = vmatprep.mubr.f32.mxu0 0.0
    %1836 = vmatmul.mubr.f32.gmra.mrb[0].mxu0 %v1764
    %v1837 = vpop.f32.mrb[0].mxu0
    %v1838 = vadd.f32 0.0, %v1837
    %v1839 = vpop.f32.mrb[0].mxu0
    %1840 = vdwg.mxu0
    %v1841 = vadd.f32 %v1661, %v1833
    %v1842 = vadd.f32 %v1666, %v1838
    %1843 = vrot.lane.b32.xlu0 %v390, 32
    %v1844 = vpop.permute.xlu0 %1843
    %1845 = vrot.lane.b32.xlu0 %v395, 32
    %v1846 = vpop.permute.xlu0 %1845
    %v1850 = vsel %vm1152, %v1319, 0
    %v1853 = vsel %vm1152, %v1320, 0
    %1855 = vmatprep.subr.mxu0 0.0
    %1856 = vmatpush1.msra.mxu0 %v1844
    %1857 = vmatprep.subr.mxu0 0.0
    %1858 = vmatpush1.msra.mxu0 %v1846
    %1859 = vmatprep.subr.mxu0 0.0
    %1860 = vmatpush1.msra.mxu0 0.0
    %1861 = vmatprep.subr.mxu0 0.0
    %1862 = vmatpush1.msra.mxu0 0.0
    %1863 = vmatprep.subr.mxu0 0.0
    %1864 = vmatpush1.msra.mxu0 0.0
    %1865 = vmatprep.subr.mxu0 0.0
    %1866 = vmatpush1.msra.mxu0 0.0
    %1867 = vmatprep.subr.mxu0 0.0
    %1868 = vmatpush1.msra.mxu0 0.0
    %1869 = vmatprep.subr.mxu0 0.0
    %1870 = vmatpush1.msra.mxu0 0.0
    %1871 = vmatprep.subr.mxu0 0.0
    %1872 = vmatpush1.msra.mxu0 0.0
    %1873 = vmatprep.subr.mxu0 0.0
    %1874 = vmatpush1.msra.mxu0 0.0
    %1875 = vmatprep.subr.mxu0 0.0
    %1876 = vmatpush1.msra.mxu0 0.0
    %1877 = vmatprep.subr.mxu0 0.0
    %1878 = vmatpush1.msra.mxu0 0.0
    %1879 = vmatprep.subr.mxu0 0.0
    %1880 = vmatpush1.msra.mxu0 0.0
    %1881 = vmatprep.subr.mxu0 0.0
    %1882 = vmatpush1.msra.mxu0 0.0
    %1883 = vmatprep.subr.mxu0 0.0
    %1884 = vmatpush1.msra.mxu0 0.0
    %1885 = vmatprep.subr.mxu0 0.0
    %1886 = vmatpush1.msra.mxu0 0.0
    %1887 = vmatprep.subr.mxu0 0.0
    %1888 = vmatpush1.msra.mxu0 0.0
    %1889 = vmatprep.subr.mxu0 0.0
    %1890 = vmatpush1.msra.mxu0 0.0
    %1891 = vmatprep.subr.mxu0 0.0
    %1892 = vmatpush1.msra.mxu0 0.0
    %1893 = vmatprep.subr.mxu0 0.0
    %1894 = vmatpush1.msra.mxu0 0.0
    %1895 = vmatprep.subr.mxu0 0.0
    %1896 = vmatpush1.msra.mxu0 0.0
    %1897 = vmatprep.subr.mxu0 0.0
    %1898 = vmatpush1.msra.mxu0 0.0
    %1899 = vmatprep.subr.mxu0 0.0
    %1900 = vmatpush1.msra.mxu0 0.0
    %1901 = vmatprep.subr.mxu0 0.0
    %1902 = vmatpush1.msra.mxu0 0.0
    %1903 = vmatprep.subr.mxu0 0.0
    %1904 = vmatpush1.msra.mxu0 0.0
    %1905 = vmatprep.subr.mxu0 0.0
    %1906 = vmatpush1.msra.mxu0 0.0
    %1907 = vmatprep.subr.mxu0 0.0
    %1908 = vmatpush1.msra.mxu0 0.0
    %1909 = vmatprep.subr.mxu0 0.0
    %1910 = vmatpush1.msra.mxu0 0.0
    %1911 = vmatprep.subr.mxu0 0.0
    %1912 = vmatpush1.msra.mxu0 0.0
    %1913 = vmatprep.subr.mxu0 0.0
    %1914 = vmatpush1.msra.mxu0 0.0
    %1915 = vmatprep.subr.mxu0 0.0
    %1916 = vmatpush1.msra.mxu0 0.0
    %1917 = vmatprep.subr.mxu0 0.0
    %1918 = vmatpush1.msra.mxu0 0.0
    %1919 = vmatprep.mubr.f32.mxu0 0.0
    %1920 = vmatmul.mubr.f32.gmra.mrb[0].mxu0 %v1850
    %v1921 = vpop.f32.mrb[0].mxu0
    %v1922 = vadd.f32 0.0, %v1921
    %v1923 = vpop.f32.mrb[0].mxu0
    %1924 = vmatprep.mubr.f32.mxu0 0.0
    %1925 = vmatmul.mubr.f32.gmra.mrb[0].mxu0 %v1853
    %v1926 = vpop.f32.mrb[0].mxu0
    %v1927 = vadd.f32 0.0, %v1926
    %v1928 = vpop.f32.mrb[0].mxu0
    %1929 = vdwg.mxu0
    %v1930 = vld [vmem:[#allocation7 + $0x60] sm:$0xff]
    %v1931 = vld [vmem:[#allocation7 + $0x68] sm:$0xff]
    %v1932 = vld [vmem:[#allocation7 + $0x70] sm:$0xff]
    %v1933 = vld [vmem:[#allocation7 + $0x78] sm:$0xff]
    %v1935 = vsel %vm415, %v1922, 0
    %v1938 = vsel %vm415, %v1927, 0
    %1940 = vmatprep.subr.mxu0 0.0
    %1941 = vmatpush1.msra.mxu0 %v1930
    %1942 = vmatprep.subr.mxu0 0.0
    %1943 = vmatpush1.msra.mxu0 %v1931
    %1944 = vmatprep.subr.mxu0 0.0
    %1945 = vmatpush1.msra.mxu0 %v1932
    %1946 = vmatprep.subr.mxu0 0.0
    %1947 = vmatpush1.msra.mxu0 %v1933
    %1948 = vmatprep.subr.mxu0 0.0
    %1949 = vmatpush1.msra.mxu0 0.0
    %1950 = vmatprep.subr.mxu0 0.0
    %1951 = vmatpush1.msra.mxu0 0.0
    %1952 = vmatprep.subr.mxu0 0.0
    %1953 = vmatpush1.msra.mxu0 0.0
    %1954 = vmatprep.subr.mxu0 0.0
    %1955 = vmatpush1.msra.mxu0 0.0
    %1956 = vmatprep.subr.mxu0 0.0
    %1957 = vmatpush1.msra.mxu0 0.0
    %1958 = vmatprep.subr.mxu0 0.0
    %1959 = vmatpush1.msra.mxu0 0.0
    %1960 = vmatprep.subr.mxu0 0.0
    %1961 = vmatpush1.msra.mxu0 0.0
    %1962 = vmatprep.subr.mxu0 0.0
    %1963 = vmatpush1.msra.mxu0 0.0
    %1964 = vmatprep.subr.mxu0 0.0
    %1965 = vmatpush1.msra.mxu0 0.0
    %1966 = vmatprep.subr.mxu0 0.0
    %1967 = vmatpush1.msra.mxu0 0.0
    %1968 = vmatprep.subr.mxu0 0.0
    %1969 = vmatpush1.msra.mxu0 0.0
    %1970 = vmatprep.subr.mxu0 0.0
    %1971 = vmatpush1.msra.mxu0 0.0
    %1972 = vmatprep.subr.mxu0 0.0
    %1973 = vmatpush1.msra.mxu0 0.0
    %1974 = vmatprep.subr.mxu0 0.0
    %1975 = vmatpush1.msra.mxu0 0.0
    %1976 = vmatprep.subr.mxu0 0.0
    %1977 = vmatpush1.msra.mxu0 0.0
    %1978 = vmatprep.subr.mxu0 0.0
    %1979 = vmatpush1.msra.mxu0 0.0
    %1980 = vmatprep.subr.mxu0 0.0
    %1981 = vmatpush1.msra.mxu0 0.0
    %1982 = vmatprep.subr.mxu0 0.0
    %1983 = vmatpush1.msra.mxu0 0.0
    %1984 = vmatprep.subr.mxu0 0.0
    %1985 = vmatpush1.msra.mxu0 0.0
    %1986 = vmatprep.subr.mxu0 0.0
    %1987 = vmatpush1.msra.mxu0 0.0
    %1988 = vmatprep.subr.mxu0 0.0
    %1989 = vmatpush1.msra.mxu0 0.0
    %1990 = vmatprep.subr.mxu0 0.0
    %1991 = vmatpush1.msra.mxu0 0.0
    %1992 = vmatprep.subr.mxu0 0.0
    %1993 = vmatpush1.msra.mxu0 0.0
    %1994 = vmatprep.subr.mxu0 0.0
    %1995 = vmatpush1.msra.mxu0 0.0
    %1996 = vmatprep.subr.mxu0 0.0
    %1997 = vmatpush1.msra.mxu0 0.0
    %1998 = vmatprep.subr.mxu0 0.0
    %1999 = vmatpush1.msra.mxu0 0.0
    %2000 = vmatprep.subr.mxu0 0.0
    %2001 = vmatpush1.msra.mxu0 0.0
    %2002 = vmatprep.subr.mxu0 0.0
    %2003 = vmatpush1.msra.mxu0 0.0
    %2004 = vmatprep.mubr.f32.mxu0 0.0
    %2005 = vmatmul.mubr.f32.gmra.mrb[0].mxu0 %v1935
    %v2006 = vpop.f32.mrb[0].mxu0
    %v2007 = vadd.f32 0.0, %v2006
    %v2008 = vpop.f32.mrb[0].mxu0
    %2009 = vmatprep.mubr.f32.mxu0 0.0
    %2010 = vmatmul.mubr.f32.gmra.mrb[0].mxu0 %v1938
    %v2011 = vpop.f32.mrb[0].mxu0
    %v2012 = vadd.f32 0.0, %v2011
    %v2013 = vpop.f32.mrb[0].mxu0
    %2014 = vdwg.mxu0
    %v2015 = vadd.f32 %v1841, %v2007
    %v2016 = vadd.f32 %v1842, %v2012
    %v2018 = vsel %vm1152, %v1321, 0
    %v2021 = vsel %vm1152, %v1322, 0
    %2023 = vmatprep.subr.mxu0 0.0
    %2024 = vmatpush1.msra.mxu0 %v400
    %2025 = vmatprep.subr.mxu0 0.0
    %2026 = vmatpush1.msra.mxu0 %v405
    %2027 = vmatprep.subr.mxu0 0.0
    %2028 = vmatpush1.msra.mxu0 0.0
    %2029 = vmatprep.subr.mxu0 0.0
    %2030 = vmatpush1.msra.mxu0 0.0
    %2031 = vmatprep.subr.mxu0 0.0
    %2032 = vmatpush1.msra.mxu0 0.0
    %2033 = vmatprep.subr.mxu0 0.0
    %2034 = vmatpush1.msra.mxu0 0.0
    %2035 = vmatprep.subr.mxu0 0.0
    %2036 = vmatpush1.msra.mxu0 0.0
    %2037 = vmatprep.subr.mxu0 0.0
    %2038 = vmatpush1.msra.mxu0 0.0
    %2039 = vmatprep.subr.mxu0 0.0
    %2040 = vmatpush1.msra.mxu0 0.0
    %2041 = vmatprep.subr.mxu0 0.0
    %2042 = vmatpush1.msra.mxu0 0.0
    %2043 = vmatprep.subr.mxu0 0.0
    %2044 = vmatpush1.msra.mxu0 0.0
    %2045 = vmatprep.subr.mxu0 0.0
    %2046 = vmatpush1.msra.mxu0 0.0
    %2047 = vmatprep.subr.mxu0 0.0
    %2048 = vmatpush1.msra.mxu0 0.0
    %2049 = vmatprep.subr.mxu0 0.0
    %2050 = vmatpush1.msra.mxu0 0.0
    %2051 = vmatprep.subr.mxu0 0.0
    %2052 = vmatpush1.msra.mxu0 0.0
    %2053 = vmatprep.subr.mxu0 0.0
    %2054 = vmatpush1.msra.mxu0 0.0
    %2055 = vmatprep.subr.mxu0 0.0
    %2056 = vmatpush1.msra.mxu0 0.0
    %2057 = vmatprep.subr.mxu0 0.0
    %2058 = vmatpush1.msra.mxu0 0.0
    %2059 = vmatprep.subr.mxu0 0.0
    %2060 = vmatpush1.msra.mxu0 0.0
    %2061 = vmatprep.subr.mxu0 0.0
    %2062 = vmatpush1.msra.mxu0 0.0
    %2063 = vmatprep.subr.mxu0 0.0
    %2064 = vmatpush1.msra.mxu0 0.0
    %2065 = vmatprep.subr.mxu0 0.0
    %2066 = vmatpush1.msra.mxu0 0.0
    %2067 = vmatprep.subr.mxu0 0.0
    %2068 = vmatpush1.msra.mxu0 0.0
    %2069 = vmatprep.subr.mxu0 0.0
    %2070 = vmatpush1.msra.mxu0 0.0
    %2071 = vmatprep.subr.mxu0 0.0
    %2072 = vmatpush1.msra.mxu0 0.0
    %2073 = vmatprep.subr.mxu0 0.0
    %2074 = vmatpush1.msra.mxu0 0.0
    %2075 = vmatprep.subr.mxu0 0.0
    %2076 = vmatpush1.msra.mxu0 0.0
    %2077 = vmatprep.subr.mxu0 0.0
    %2078 = vmatpush1.msra.mxu0 0.0
    %2079 = vmatprep.subr.mxu0 0.0
    %2080 = vmatpush1.msra.mxu0 0.0
    %2081 = vmatprep.subr.mxu0 0.0
    %2082 = vmatpush1.msra.mxu0 0.0
    %2083 = vmatprep.subr.mxu0 0.0
    %2084 = vmatpush1.msra.mxu0 0.0
    %2085 = vmatprep.subr.mxu0 0.0
    %2086 = vmatpush1.msra.mxu0 0.0
    %2087 = vmatprep.mubr.f32.mxu0 0.0
    %2088 = vmatmul.mubr.f32.gmra.mrb[0].mxu0 %v2018
    %v2089 = vpop.f32.mrb[0].mxu0
    %v2090 = vadd.f32 0.0, %v2089
    %v2091 = vpop.f32.mrb[0].mxu0
    %2092 = vmatprep.mubr.f32.mxu0 0.0
    %2093 = vmatmul.mubr.f32.gmra.mrb[0].mxu0 %v2021
    %v2094 = vpop.f32.mrb[0].mxu0
    %v2095 = vadd.f32 0.0, %v2094
    %v2096 = vpop.f32.mrb[0].mxu0
    %2097 = vdwg.mxu0
    %2100 = vrot.lane.b32.xlu0 %v400, 96
    %v2101 = vpop.permute.xlu0 %2100
    %2102 = vrot.lane.b32.xlu0 %v405, 96
    %v2103 = vpop.permute.xlu0 %2102
    %v2107 = vsel %vm1152, %v1323, 0
    %v2110 = vsel %vm1152, %v1324, 0
    %2112 = vmatprep.subr.mxu0 0.0
    %2113 = vmatpush1.msra.mxu0 %v2101
    %2114 = vmatprep.subr.mxu0 0.0
    %2115 = vmatpush1.msra.mxu0 %v2103
    %2116 = vmatprep.subr.mxu0 0.0
    %2117 = vmatpush1.msra.mxu0 0.0
    %2118 = vmatprep.subr.mxu0 0.0
    %2119 = vmatpush1.msra.mxu0 0.0
    %2120 = vmatprep.subr.mxu0 0.0
    %2121 = vmatpush1.msra.mxu0 0.0
    %2122 = vmatprep.subr.mxu0 0.0
    %2123 = vmatpush1.msra.mxu0 0.0
    %2124 = vmatprep.subr.mxu0 0.0
    %2125 = vmatpush1.msra.mxu0 0.0
    %2126 = vmatprep.subr.mxu0 0.0
    %2127 = vmatpush1.msra.mxu0 0.0
    %2128 = vmatprep.subr.mxu0 0.0
    %2129 = vmatpush1.msra.mxu0 0.0
    %2130 = vmatprep.subr.mxu0 0.0
    %2131 = vmatpush1.msra.mxu0 0.0
    %2132 = vmatprep.subr.mxu0 0.0
    %2133 = vmatpush1.msra.mxu0 0.0
    %2134 = vmatprep.subr.mxu0 0.0
    %2135 = vmatpush1.msra.mxu0 0.0
    %2136 = vmatprep.subr.mxu0 0.0
    %2137 = vmatpush1.msra.mxu0 0.0
    %2138 = vmatprep.subr.mxu0 0.0
    %2139 = vmatpush1.msra.mxu0 0.0
    %2140 = vmatprep.subr.mxu0 0.0
    %2141 = vmatpush1.msra.mxu0 0.0
    %2142 = vmatprep.subr.mxu0 0.0
    %2143 = vmatpush1.msra.mxu0 0.0
    %2144 = vmatprep.subr.mxu0 0.0
    %2145 = vmatpush1.msra.mxu0 0.0
    %2146 = vmatprep.subr.mxu0 0.0
    %2147 = vmatpush1.msra.mxu0 0.0
    %2148 = vmatprep.subr.mxu0 0.0
    %2149 = vmatpush1.msra.mxu0 0.0
    %2150 = vmatprep.subr.mxu0 0.0
    %2151 = vmatpush1.msra.mxu0 0.0
    %2152 = vmatprep.subr.mxu0 0.0
    %2153 = vmatpush1.msra.mxu0 0.0
    %2154 = vmatprep.subr.mxu0 0.0
    %2155 = vmatpush1.msra.mxu0 0.0
    %2156 = vmatprep.subr.mxu0 0.0
    %2157 = vmatpush1.msra.mxu0 0.0
    %2158 = vmatprep.subr.mxu0 0.0
    %2159 = vmatpush1.msra.mxu0 0.0
    %2160 = vmatprep.subr.mxu0 0.0
    %2161 = vmatpush1.msra.mxu0 0.0
    %2162 = vmatprep.subr.mxu0 0.0
    %2163 = vmatpush1.msra.mxu0 0.0
    %2164 = vmatprep.subr.mxu0 0.0
    %2165 = vmatpush1.msra.mxu0 0.0
    %2166 = vmatprep.subr.mxu0 0.0
    %2167 = vmatpush1.msra.mxu0 0.0
    %2168 = vmatprep.subr.mxu0 0.0
    %2169 = vmatpush1.msra.mxu0 0.0
    %2170 = vmatprep.subr.mxu0 0.0
    %2171 = vmatpush1.msra.mxu0 0.0
    %2172 = vmatprep.subr.mxu0 0.0
    %2173 = vmatpush1.msra.mxu0 0.0
    %2174 = vmatprep.subr.mxu0 0.0
    %2175 = vmatpush1.msra.mxu0 0.0
    %2176 = vmatprep.mubr.f32.mxu0 0.0
    %2177 = vmatmul.mubr.f32.gmra.mrb[0].mxu0 %v2107
    %v2178 = vpop.f32.mrb[0].mxu0
    %v2179 = vadd.f32 0.0, %v2178
    %v2180 = vpop.f32.mrb[0].mxu0
    %2181 = vmatprep.mubr.f32.mxu0 0.0
    %2182 = vmatmul.mubr.f32.gmra.mrb[0].mxu0 %v2110
    %v2183 = vpop.f32.mrb[0].mxu0
    %v2184 = vadd.f32 0.0, %v2183
    %v2185 = vpop.f32.mrb[0].mxu0
    %2186 = vdwg.mxu0
    %v2188 = vsel %vm415, %v2179, 0
    %v2191 = vsel %vm415, %v2184, 0
    %2193 = vmatprep.subr.mxu0 0.0
    %2194 = vmatpush1.msra.mxu0 %v1503
    %2195 = vmatprep.subr.mxu0 0.0
    %2196 = vmatpush1.msra.mxu0 %v1504
    %2197 = vmatprep.subr.mxu0 0.0
    %2198 = vmatpush1.msra.mxu0 %v1505
    %2199 = vmatprep.subr.mxu0 0.0
    %2200 = vmatpush1.msra.mxu0 %v1506
    %2201 = vmatprep.subr.mxu0 0.0
    %2202 = vmatpush1.msra.mxu0 0.0
    %2203 = vmatprep.subr.mxu0 0.0
    %2204 = vmatpush1.msra.mxu0 0.0
    %2205 = vmatprep.subr.mxu0 0.0
    %2206 = vmatpush1.msra.mxu0 0.0
    %2207 = vmatprep.subr.mxu0 0.0
    %2208 = vmatpush1.msra.mxu0 0.0
    %2209 = vmatprep.subr.mxu0 0.0
    %2210 = vmatpush1.msra.mxu0 0.0
    %2211 = vmatprep.subr.mxu0 0.0
    %2212 = vmatpush1.msra.mxu0 0.0
    %2213 = vmatprep.subr.mxu0 0.0
    %2214 = vmatpush1.msra.mxu0 0.0
    %2215 = vmatprep.subr.mxu0 0.0
    %2216 = vmatpush1.msra.mxu0 0.0
    %2217 = vmatprep.subr.mxu0 0.0
    %2218 = vmatpush1.msra.mxu0 0.0
    %2219 = vmatprep.subr.mxu0 0.0
    %2220 = vmatpush1.msra.mxu0 0.0
    %2221 = vmatprep.subr.mxu0 0.0
    %2222 = vmatpush1.msra.mxu0 0.0
    %2223 = vmatprep.subr.mxu0 0.0
    %2224 = vmatpush1.msra.mxu0 0.0
    %2225 = vmatprep.subr.mxu0 0.0
    %2226 = vmatpush1.msra.mxu0 0.0
    %2227 = vmatprep.subr.mxu0 0.0
    %2228 = vmatpush1.msra.mxu0 0.0
    %2229 = vmatprep.subr.mxu0 0.0
    %2230 = vmatpush1.msra.mxu0 0.0
    %2231 = vmatprep.subr.mxu0 0.0
    %2232 = vmatpush1.msra.mxu0 0.0
    %2233 = vmatprep.subr.mxu0 0.0
    %2234 = vmatpush1.msra.mxu0 0.0
    %2235 = vmatprep.subr.mxu0 0.0
    %2236 = vmatpush1.msra.mxu0 0.0
    %2237 = vmatprep.subr.mxu0 0.0
    %2238 = vmatpush1.msra.mxu0 0.0
    %2239 = vmatprep.subr.mxu0 0.0
    %2240 = vmatpush1.msra.mxu0 0.0
    %2241 = vmatprep.subr.mxu0 0.0
    %2242 = vmatpush1.msra.mxu0 0.0
    %2243 = vmatprep.subr.mxu0 0.0
    %2244 = vmatpush1.msra.mxu0 0.0
    %2245 = vmatprep.subr.mxu0 0.0
    %2246 = vmatpush1.msra.mxu0 0.0
    %2247 = vmatprep.subr.mxu0 0.0
    %2248 = vmatpush1.msra.mxu0 0.0
    %2249 = vmatprep.subr.mxu0 0.0
    %2250 = vmatpush1.msra.mxu0 0.0
    %2251 = vmatprep.subr.mxu0 0.0
    %2252 = vmatpush1.msra.mxu0 0.0
    %2253 = vmatprep.subr.mxu0 0.0
    %2254 = vmatpush1.msra.mxu0 0.0
    %2255 = vmatprep.subr.mxu0 0.0
    %2256 = vmatpush1.msra.mxu0 0.0
    %2257 = vmatprep.mubr.f32.mxu0 0.0
    %2258 = vmatmul.mubr.f32.gmra.mrb[0].mxu0 %v2188
    %v2259 = vpop.f32.mrb[0].mxu0
    %v2260 = vadd.f32 0.0, %v2259
    %v2261 = vpop.f32.mrb[0].mxu0
    %2262 = vmatprep.mubr.f32.mxu0 0.0
    %2263 = vmatmul.mubr.f32.gmra.mrb[0].mxu0 %v2191
    %v2264 = vpop.f32.mrb[0].mxu0
    %v2265 = vadd.f32 0.0, %v2264
    %v2266 = vpop.f32.mrb[0].mxu0
    %2267 = vdwg.mxu0
    %v2269 = vsel %vm415, %v2090, 0
    %v2272 = vsel %vm415, %v2095, 0
    %2274 = vmatprep.subr.mxu0 0.0
    %2275 = vmatpush1.msra.mxu0 %v1410
    %2276 = vmatprep.subr.mxu0 0.0
    %2277 = vmatpush1.msra.mxu0 %v1411
    %2278 = vmatprep.subr.mxu0 0.0
    %2279 = vmatpush1.msra.mxu0 %v1412
    %2280 = vmatprep.subr.mxu0 0.0
    %2281 = vmatpush1.msra.mxu0 %v1413
    %2282 = vmatprep.subr.mxu0 0.0
    %2283 = vmatpush1.msra.mxu0 0.0
    %2284 = vmatprep.subr.mxu0 0.0
    %2285 = vmatpush1.msra.mxu0 0.0
    %2286 = vmatprep.subr.mxu0 0.0
    %2287 = vmatpush1.msra.mxu0 0.0
    %2288 = vmatprep.subr.mxu0 0.0
    %2289 = vmatpush1.msra.mxu0 0.0
    %2290 = vmatprep.subr.mxu0 0.0
    %2291 = vmatpush1.msra.mxu0 0.0
    %2292 = vmatprep.subr.mxu0 0.0
    %2293 = vmatpush1.msra.mxu0 0.0
    %2294 = vmatprep.subr.mxu0 0.0
    %2295 = vmatpush1.msra.mxu0 0.0
    %2296 = vmatprep.subr.mxu0 0.0
    %2297 = vmatpush1.msra.mxu0 0.0
    %2298 = vmatprep.subr.mxu0 0.0
    %2299 = vmatpush1.msra.mxu0 0.0
    %2300 = vmatprep.subr.mxu0 0.0
    %2301 = vmatpush1.msra.mxu0 0.0
    %2302 = vmatprep.subr.mxu0 0.0
    %2303 = vmatpush1.msra.mxu0 0.0
    %2304 = vmatprep.subr.mxu0 0.0
    %2305 = vmatpush1.msra.mxu0 0.0
    %2306 = vmatprep.subr.mxu0 0.0
    %2307 = vmatpush1.msra.mxu0 0.0
    %2308 = vmatprep.subr.mxu0 0.0
    %2309 = vmatpush1.msra.mxu0 0.0
    %2310 = vmatprep.subr.mxu0 0.0
    %2311 = vmatpush1.msra.mxu0 0.0
    %2312 = vmatprep.subr.mxu0 0.0
    %2313 = vmatpush1.msra.mxu0 0.0
    %2314 = vmatprep.subr.mxu0 0.0
    %2315 = vmatpush1.msra.mxu0 0.0
    %2316 = vmatprep.subr.mxu0 0.0
    %2317 = vmatpush1.msra.mxu0 0.0
    %2318 = vmatprep.subr.mxu0 0.0
    %2319 = vmatpush1.msra.mxu0 0.0
    %2320 = vmatprep.subr.mxu0 0.0
    %2321 = vmatpush1.msra.mxu0 0.0
    %2322 = vmatprep.subr.mxu0 0.0
    %2323 = vmatpush1.msra.mxu0 0.0
    %2324 = vmatprep.subr.mxu0 0.0
    %2325 = vmatpush1.msra.mxu0 0.0
    %2326 = vmatprep.subr.mxu0 0.0
    %2327 = vmatpush1.msra.mxu0 0.0
    %2328 = vmatprep.subr.mxu0 0.0
    %2329 = vmatpush1.msra.mxu0 0.0
    %2330 = vmatprep.subr.mxu0 0.0
    %2331 = vmatpush1.msra.mxu0 0.0
    %2332 = vmatprep.subr.mxu0 0.0
    %2333 = vmatpush1.msra.mxu0 0.0
    %2334 = vmatprep.subr.mxu0 0.0
    %2335 = vmatpush1.msra.mxu0 0.0
    %2336 = vmatprep.subr.mxu0 0.0
    %2337 = vmatpush1.msra.mxu0 0.0
    %2338 = vmatprep.mubr.f32.mxu0 0.0
    %2339 = vmatmul.mubr.f32.gmra.mrb[0].mxu0 %v2269
    %v2340 = vpop.f32.mrb[0].mxu0
    %v2341 = vadd.f32 %v2260, %v2340
    %v2342 = vpop.f32.mrb[0].mxu0
    %2343 = vmatprep.mubr.f32.mxu0 0.0
    %2344 = vmatmul.mubr.f32.gmra.mrb[0].mxu0 %v2272
    %v2345 = vpop.f32.mrb[0].mxu0
    %v2346 = vadd.f32 %v2265, %v2345
    %v2347 = vpop.f32.mrb[0].mxu0
    %2348 = vdwg.mxu0
    %2349 = vrot.lane.b32.xlu0 %v400, 64
    %v2350 = vpop.permute.xlu0 %2349
    %2351 = vrot.lane.b32.xlu0 %v405, 64
    %v2352 = vpop.permute.xlu0 %2351
    %v2356 = vsel %vm1152, %v1325, 0
    %v2359 = vsel %vm1152, %v1326, 0
    %2361 = vmatprep.subr.mxu0 0.0
    %2362 = vmatpush1.msra.mxu0 %v2350
    %2363 = vmatprep.subr.mxu0 0.0
    %2364 = vmatpush1.msra.mxu0 %v2352
    %2365 = vmatprep.subr.mxu0 0.0
    %2366 = vmatpush1.msra.mxu0 0.0
    %2367 = vmatprep.subr.mxu0 0.0
    %2368 = vmatpush1.msra.mxu0 0.0
    %2369 = vmatprep.subr.mxu0 0.0
    %2370 = vmatpush1.msra.mxu0 0.0
    %2371 = vmatprep.subr.mxu0 0.0
    %2372 = vmatpush1.msra.mxu0 0.0
    %2373 = vmatprep.subr.mxu0 0.0
    %2374 = vmatpush1.msra.mxu0 0.0
    %2375 = vmatprep.subr.mxu0 0.0
    %2376 = vmatpush1.msra.mxu0 0.0
    %2377 = vmatprep.subr.mxu0 0.0
    %2378 = vmatpush1.msra.mxu0 0.0
    %2379 = vmatprep.subr.mxu0 0.0
    %2380 = vmatpush1.msra.mxu0 0.0
    %2381 = vmatprep.subr.mxu0 0.0
    %2382 = vmatpush1.msra.mxu0 0.0
    %2383 = vmatprep.subr.mxu0 0.0
    %2384 = vmatpush1.msra.mxu0 0.0
    %2385 = vmatprep.subr.mxu0 0.0
    %2386 = vmatpush1.msra.mxu0 0.0
    %2387 = vmatprep.subr.mxu0 0.0
    %2388 = vmatpush1.msra.mxu0 0.0
    %2389 = vmatprep.subr.mxu0 0.0
    %2390 = vmatpush1.msra.mxu0 0.0
    %2391 = vmatprep.subr.mxu0 0.0
    %2392 = vmatpush1.msra.mxu0 0.0
    %2393 = vmatprep.subr.mxu0 0.0
    %2394 = vmatpush1.msra.mxu0 0.0
    %2395 = vmatprep.subr.mxu0 0.0
    %2396 = vmatpush1.msra.mxu0 0.0
    %2397 = vmatprep.subr.mxu0 0.0
    %2398 = vmatpush1.msra.mxu0 0.0
    %2399 = vmatprep.subr.mxu0 0.0
    %2400 = vmatpush1.msra.mxu0 0.0
    %2401 = vmatprep.subr.mxu0 0.0
    %2402 = vmatpush1.msra.mxu0 0.0
    %2403 = vmatprep.subr.mxu0 0.0
    %2404 = vmatpush1.msra.mxu0 0.0
    %2405 = vmatprep.subr.mxu0 0.0
    %2406 = vmatpush1.msra.mxu0 0.0
    %2407 = vmatprep.subr.mxu0 0.0
    %2408 = vmatpush1.msra.mxu0 0.0
    %2409 = vmatprep.subr.mxu0 0.0
    %2410 = vmatpush1.msra.mxu0 0.0
    %2411 = vmatprep.subr.mxu0 0.0
    %2412 = vmatpush1.msra.mxu0 0.0
    %2413 = vmatprep.subr.mxu0 0.0
    %2414 = vmatpush1.msra.mxu0 0.0
    %2415 = vmatprep.subr.mxu0 0.0
    %2416 = vmatpush1.msra.mxu0 0.0
    %2417 = vmatprep.subr.mxu0 0.0
    %2418 = vmatpush1.msra.mxu0 0.0
    %2419 = vmatprep.subr.mxu0 0.0
    %2420 = vmatpush1.msra.mxu0 0.0
    %2421 = vmatprep.subr.mxu0 0.0
    %2422 = vmatpush1.msra.mxu0 0.0
    %2423 = vmatprep.subr.mxu0 0.0
    %2424 = vmatpush1.msra.mxu0 0.0
    %2425 = vmatprep.mubr.f32.mxu0 0.0
    %2426 = vmatmul.mubr.f32.gmra.mrb[0].mxu0 %v2356
    %v2427 = vpop.f32.mrb[0].mxu0
    %v2428 = vadd.f32 0.0, %v2427
    %v2429 = vpop.f32.mrb[0].mxu0
    %2430 = vmatprep.mubr.f32.mxu0 0.0
    %2431 = vmatmul.mubr.f32.gmra.mrb[0].mxu0 %v2359
    %v2432 = vpop.f32.mrb[0].mxu0
    %v2433 = vadd.f32 0.0, %v2432
    %v2434 = vpop.f32.mrb[0].mxu0
    %2435 = vdwg.mxu0
    %v2437 = vsel %vm415, %v2428, 0
    %v2440 = vsel %vm415, %v2433, 0
    %2442 = vmatprep.subr.mxu0 0.0
    %2443 = vmatpush1.msra.mxu0 %v1756
    %2444 = vmatprep.subr.mxu0 0.0
    %2445 = vmatpush1.msra.mxu0 %v1757
    %2446 = vmatprep.subr.mxu0 0.0
    %2447 = vmatpush1.msra.mxu0 %v1758
    %2448 = vmatprep.subr.mxu0 0.0
    %2449 = vmatpush1.msra.mxu0 %v1759
    %2450 = vmatprep.subr.mxu0 0.0
    %2451 = vmatpush1.msra.mxu0 0.0
    %2452 = vmatprep.subr.mxu0 0.0
    %2453 = vmatpush1.msra.mxu0 0.0
    %2454 = vmatprep.subr.mxu0 0.0
    %2455 = vmatpush1.msra.mxu0 0.0
    %2456 = vmatprep.subr.mxu0 0.0
    %2457 = vmatpush1.msra.mxu0 0.0
    %2458 = vmatprep.subr.mxu0 0.0
    %2459 = vmatpush1.msra.mxu0 0.0
    %2460 = vmatprep.subr.mxu0 0.0
    %2461 = vmatpush1.msra.mxu0 0.0
    %2462 = vmatprep.subr.mxu0 0.0
    %2463 = vmatpush1.msra.mxu0 0.0
    %2464 = vmatprep.subr.mxu0 0.0
    %2465 = vmatpush1.msra.mxu0 0.0
    %2466 = vmatprep.subr.mxu0 0.0
    %2467 = vmatpush1.msra.mxu0 0.0
    %2468 = vmatprep.subr.mxu0 0.0
    %2469 = vmatpush1.msra.mxu0 0.0
    %2470 = vmatprep.subr.mxu0 0.0
    %2471 = vmatpush1.msra.mxu0 0.0
    %2472 = vmatprep.subr.mxu0 0.0
    %2473 = vmatpush1.msra.mxu0 0.0
    %2474 = vmatprep.subr.mxu0 0.0
    %2475 = vmatpush1.msra.mxu0 0.0
    %2476 = vmatprep.subr.mxu0 0.0
    %2477 = vmatpush1.msra.mxu0 0.0
    %2478 = vmatprep.subr.mxu0 0.0
    %2479 = vmatpush1.msra.mxu0 0.0
    %2480 = vmatprep.subr.mxu0 0.0
    %2481 = vmatpush1.msra.mxu0 0.0
    %2482 = vmatprep.subr.mxu0 0.0
    %2483 = vmatpush1.msra.mxu0 0.0
    %2484 = vmatprep.subr.mxu0 0.0
    %2485 = vmatpush1.msra.mxu0 0.0
    %2486 = vmatprep.subr.mxu0 0.0
    %2487 = vmatpush1.msra.mxu0 0.0
    %2488 = vmatprep.subr.mxu0 0.0
    %2489 = vmatpush1.msra.mxu0 0.0
    %2490 = vmatprep.subr.mxu0 0.0
    %2491 = vmatpush1.msra.mxu0 0.0
    %2492 = vmatprep.subr.mxu0 0.0
    %2493 = vmatpush1.msra.mxu0 0.0
    %2494 = vmatprep.subr.mxu0 0.0
    %2495 = vmatpush1.msra.mxu0 0.0
    %2496 = vmatprep.subr.mxu0 0.0
    %2497 = vmatpush1.msra.mxu0 0.0
    %2498 = vmatprep.subr.mxu0 0.0
    %2499 = vmatpush1.msra.mxu0 0.0
    %2500 = vmatprep.subr.mxu0 0.0
    %2501 = vmatpush1.msra.mxu0 0.0
    %2502 = vmatprep.subr.mxu0 0.0
    %2503 = vmatpush1.msra.mxu0 0.0
    %2504 = vmatprep.subr.mxu0 0.0
    %2505 = vmatpush1.msra.mxu0 0.0
    %2506 = vmatprep.mubr.f32.mxu0 0.0
    %2507 = vmatmul.mubr.f32.gmra.mrb[0].mxu0 %v2437
    %v2508 = vpop.f32.mrb[0].mxu0
    %v2509 = vadd.f32 0.0, %v2508
    %v2510 = vpop.f32.mrb[0].mxu0
    %2511 = vmatprep.mubr.f32.mxu0 0.0
    %2512 = vmatmul.mubr.f32.gmra.mrb[0].mxu0 %v2440
    %v2513 = vpop.f32.mrb[0].mxu0
    %v2514 = vadd.f32 0.0, %v2513
    %v2515 = vpop.f32.mrb[0].mxu0
    %2516 = vdwg.mxu0
    %v2517 = vadd.f32 %v2341, %v2509
    %v2518 = vadd.f32 %v2346, %v2514
    %2519 = vrot.lane.b32.xlu0 %v400, 32
    %v2520 = vpop.permute.xlu0 %2519
    %2521 = vrot.lane.b32.xlu0 %v405, 32
    %v2522 = vpop.permute.xlu0 %2521
    %v2526 = vsel %vm1152, %v1327, 0
    %v2529 = vsel %vm1152, %v1328, 0
    %2531 = vmatprep.subr.mxu0 0.0
    %2532 = vmatpush1.msra.mxu0 %v2520
    %2533 = vmatprep.subr.mxu0 0.0
    %2534 = vmatpush1.msra.mxu0 %v2522
    %2535 = vmatprep.subr.mxu0 0.0
    %2536 = vmatpush1.msra.mxu0 0.0
    %2537 = vmatprep.subr.mxu0 0.0
    %2538 = vmatpush1.msra.mxu0 0.0
    %2539 = vmatprep.subr.mxu0 0.0
    %2540 = vmatpush1.msra.mxu0 0.0
    %2541 = vmatprep.subr.mxu0 0.0
    %2542 = vmatpush1.msra.mxu0 0.0
    %2543 = vmatprep.subr.mxu0 0.0
    %2544 = vmatpush1.msra.mxu0 0.0
    %2545 = vmatprep.subr.mxu0 0.0
    %2546 = vmatpush1.msra.mxu0 0.0
    %2547 = vmatprep.subr.mxu0 0.0
    %2548 = vmatpush1.msra.mxu0 0.0
    %2549 = vmatprep.subr.mxu0 0.0
    %2550 = vmatpush1.msra.mxu0 0.0
    %2551 = vmatprep.subr.mxu0 0.0
    %2552 = vmatpush1.msra.mxu0 0.0
    %2553 = vmatprep.subr.mxu0 0.0
    %2554 = vmatpush1.msra.mxu0 0.0
    %2555 = vmatprep.subr.mxu0 0.0
    %2556 = vmatpush1.msra.mxu0 0.0
    %2557 = vmatprep.subr.mxu0 0.0
    %2558 = vmatpush1.msra.mxu0 0.0
    %2559 = vmatprep.subr.mxu0 0.0
    %2560 = vmatpush1.msra.mxu0 0.0
    %2561 = vmatprep.subr.mxu0 0.0
    %2562 = vmatpush1.msra.mxu0 0.0
    %2563 = vmatprep.subr.mxu0 0.0
    %2564 = vmatpush1.msra.mxu0 0.0
    %2565 = vmatprep.subr.mxu0 0.0
    %2566 = vmatpush1.msra.mxu0 0.0
    %2567 = vmatprep.subr.mxu0 0.0
    %2568 = vmatpush1.msra.mxu0 0.0
    %2569 = vmatprep.subr.mxu0 0.0
    %2570 = vmatpush1.msra.mxu0 0.0
    %2571 = vmatprep.subr.mxu0 0.0
    %2572 = vmatpush1.msra.mxu0 0.0
    %2573 = vmatprep.subr.mxu0 0.0
    %2574 = vmatpush1.msra.mxu0 0.0
    %2575 = vmatprep.subr.mxu0 0.0
    %2576 = vmatpush1.msra.mxu0 0.0
    %2577 = vmatprep.subr.mxu0 0.0
    %2578 = vmatpush1.msra.mxu0 0.0
    %2579 = vmatprep.subr.mxu0 0.0
    %2580 = vmatpush1.msra.mxu0 0.0
    %2581 = vmatprep.subr.mxu0 0.0
    %2582 = vmatpush1.msra.mxu0 0.0
    %2583 = vmatprep.subr.mxu0 0.0
    %2584 = vmatpush1.msra.mxu0 0.0
    %2585 = vmatprep.subr.mxu0 0.0
    %2586 = vmatpush1.msra.mxu0 0.0
    %2587 = vmatprep.subr.mxu0 0.0
    %2588 = vmatpush1.msra.mxu0 0.0
    %2589 = vmatprep.subr.mxu0 0.0
    %2590 = vmatpush1.msra.mxu0 0.0
    %2591 = vmatprep.subr.mxu0 0.0
    %2592 = vmatpush1.msra.mxu0 0.0
    %2593 = vmatprep.subr.mxu0 0.0
    %2594 = vmatpush1.msra.mxu0 0.0
    %2595 = vmatprep.mubr.f32.mxu0 0.0
    %2596 = vmatmul.mubr.f32.gmra.mrb[0].mxu0 %v2526
    %v2597 = vpop.f32.mrb[0].mxu0
    %v2598 = vadd.f32 0.0, %v2597
    %v2599 = vpop.f32.mrb[0].mxu0
    %2600 = vmatprep.mubr.f32.mxu0 0.0
    %2601 = vmatmul.mubr.f32.gmra.mrb[0].mxu0 %v2529
    %v2602 = vpop.f32.mrb[0].mxu0
    %v2603 = vadd.f32 0.0, %v2602
    %v2604 = vpop.f32.mrb[0].mxu0
    %2605 = vdwg.mxu0
    %v2607 = vsel %vm415, %v2598, 0
    %v2610 = vsel %vm415, %v2603, 0
    %2612 = vmatprep.subr.mxu0 0.0
    %2613 = vmatpush1.msra.mxu0 %v1930
    %2614 = vmatprep.subr.mxu0 0.0
    %2615 = vmatpush1.msra.mxu0 %v1931
    %2616 = vmatprep.subr.mxu0 0.0
    %2617 = vmatpush1.msra.mxu0 %v1932
    %2618 = vmatprep.subr.mxu0 0.0
    %2619 = vmatpush1.msra.mxu0 %v1933
    %2620 = vmatprep.subr.mxu0 0.0
    %2621 = vmatpush1.msra.mxu0 0.0
    %2622 = vmatprep.subr.mxu0 0.0
    %2623 = vmatpush1.msra.mxu0 0.0
    %2624 = vmatprep.subr.mxu0 0.0
    %2625 = vmatpush1.msra.mxu0 0.0
    %2626 = vmatprep.subr.mxu0 0.0
    %2627 = vmatpush1.msra.mxu0 0.0
    %2628 = vmatprep.subr.mxu0 0.0
    %2629 = vmatpush1.msra.mxu0 0.0
    %2630 = vmatprep.subr.mxu0 0.0
    %2631 = vmatpush1.msra.mxu0 0.0
    %2632 = vmatprep.subr.mxu0 0.0
    %2633 = vmatpush1.msra.mxu0 0.0
    %2634 = vmatprep.subr.mxu0 0.0
    %2635 = vmatpush1.msra.mxu0 0.0
    %2636 = vmatprep.subr.mxu0 0.0
    %2637 = vmatpush1.msra.mxu0 0.0
    %2638 = vmatprep.subr.mxu0 0.0
    %2639 = vmatpush1.msra.mxu0 0.0
    %2640 = vmatprep.subr.mxu0 0.0
    %2641 = vmatpush1.msra.mxu0 0.0
    %2642 = vmatprep.subr.mxu0 0.0
    %2643 = vmatpush1.msra.mxu0 0.0
    %2644 = vmatprep.subr.mxu0 0.0
    %2645 = vmatpush1.msra.mxu0 0.0
    %2646 = vmatprep.subr.mxu0 0.0
    %2647 = vmatpush1.msra.mxu0 0.0
    %2648 = vmatprep.subr.mxu0 0.0
    %2649 = vmatpush1.msra.mxu0 0.0
    %2650 = vmatprep.subr.mxu0 0.0
    %2651 = vmatpush1.msra.mxu0 0.0
    %2652 = vmatprep.subr.mxu0 0.0
    %2653 = vmatpush1.msra.mxu0 0.0
    %2654 = vmatprep.subr.mxu0 0.0
    %2655 = vmatpush1.msra.mxu0 0.0
    %2656 = vmatprep.subr.mxu0 0.0
    %2657 = vmatpush1.msra.mxu0 0.0
    %2658 = vmatprep.subr.mxu0 0.0
    %2659 = vmatpush1.msra.mxu0 0.0
    %2660 = vmatprep.subr.mxu0 0.0
    %2661 = vmatpush1.msra.mxu0 0.0
    %2662 = vmatprep.subr.mxu0 0.0
    %2663 = vmatpush1.msra.mxu0 0.0
    %2664 = vmatprep.subr.mxu0 0.0
    %2665 = vmatpush1.msra.mxu0 0.0
    %2666 = vmatprep.subr.mxu0 0.0
    %2667 = vmatpush1.msra.mxu0 0.0
    %2668 = vmatprep.subr.mxu0 0.0
    %2669 = vmatpush1.msra.mxu0 0.0
    %2670 = vmatprep.subr.mxu0 0.0
    %2671 = vmatpush1.msra.mxu0 0.0
    %2672 = vmatprep.subr.mxu0 0.0
    %2673 = vmatpush1.msra.mxu0 0.0
    %2674 = vmatprep.subr.mxu0 0.0
    %2675 = vmatpush1.msra.mxu0 0.0
    %2676 = vmatprep.mubr.f32.mxu0 0.0
    %2677 = vmatmul.mubr.f32.gmra.mrb[0].mxu0 %v2607
    %v2678 = vpop.f32.mrb[0].mxu0
    %v2679 = vadd.f32 0.0, %v2678
    %v2680 = vpop.f32.mrb[0].mxu0
    %2681 = vmatprep.mubr.f32.mxu0 0.0
    %2682 = vmatmul.mubr.f32.gmra.mrb[0].mxu0 %v2610
    %v2683 = vpop.f32.mrb[0].mxu0
    %v2684 = vadd.f32 0.0, %v2683
    %v2685 = vpop.f32.mrb[0].mxu0
    %2686 = vdwg.mxu0
    %v2687 = vadd.f32 %v2517, %v2679
    %v2688 = vadd.f32 %v2518, %v2684
    %v2689 = vlaneseq
    %v2690 = vshrl.u32 %v2689, 7
    %v2691 = vsub.s32 0, %v2690
    %v2692 = vrot.slane %v106, %v2691
    %v2693 = vadd.f32 %v2015, %v2692
    %v2694 = vadd.f32 %v2016, %v2692
    %v2695 = vadd.f32 %v2687, %v2692
    %v2696 = vadd.f32 %v2688, %v2692
    %v2697 = vadd.f32 %v98, %v2693
    %v2698 = vadd.f32 %v99, %v2694
    %v2699 = vadd.f32 %v100, %v2695
    %v2700 = vadd.f32 %v101, %v2696
    %2701 = vadd.xlane.f32.xlu0 %v2697
    %v2702 = vpop.xlane.xlu0 %2701
    %2703 = vadd.xlane.f32.xlu0 %v2698
    %v2704 = vpop.xlane.xlu0 %2703
    %2705 = vadd.xlane.f32.xlu0 %v2699
    %v2706 = vpop.xlane.xlu0 %2705
    %2707 = vadd.xlane.f32.xlu0 %v2700
    %v2708 = vpop.xlane.xlu0 %2707
    %v2709 = vmul.f32 %v2702, %v116
    %v2710 = vmul.f32 %v2704, %v116
    %v2711 = vmul.f32 %v2706, %v116
    %v2712 = vmul.f32 %v2708, %v116
    %v2713 = vsub.f32 %v2697, %v2709
    %v2714 = vsub.f32 %v2698, %v2710
    %v2715 = vsub.f32 %v2699, %v2711
    %v2716 = vsub.f32 %v2700, %v2712
    %v2717 = vmul.f32 %v2713, %v2713
    %v2718 = vmul.f32 %v2714, %v2714
    %v2719 = vmul.f32 %v2715, %v2715
    %v2720 = vmul.f32 %v2716, %v2716
    %2721 = vadd.xlane.f32.xlu0 %v2717
    %v2722 = vpop.xlane.xlu0 %2721
    %2723 = vadd.xlane.f32.xlu0 %v2718
    %v2724 = vpop.xlane.xlu0 %2723
    %2725 = vadd.xlane.f32.xlu0 %v2719
    %v2726 = vpop.xlane.xlu0 %2725
    %2727 = vadd.xlane.f32.xlu0 %v2720
    %v2728 = vpop.xlane.xlu0 %2727
    %v2729 = vmul.f32 %v2722, %v116
    %v2730 = vmul.f32 %v2724, %v116
    %v2731 = vmul.f32 %v2726, %v116
    %v2732 = vmul.f32 %v2728, %v116
    %v2733 = vadd.f32 %v2729, 1e-05
    %v2734 = vadd.f32 %v2730, 1e-05
    %v2735 = vadd.f32 %v2731, 1e-05
    %v2736 = vadd.f32 %v2732, 1e-05
    %v2737 = vrsqrt.pop %v2733
    %v2738 = vrsqrt.pop %v2734
    %v2739 = vrsqrt.pop %v2735
    %v2740 = vrsqrt.pop %v2736
    %v2741 = vmul.f32 %v2713, %v2737
    %v2742 = vmul.f32 %v2714, %v2738
    %v2743 = vmul.f32 %v2715, %v2739
    %v2744 = vmul.f32 %v2716, %v2740
    %v2745 = vlaneseq
    %v2746 = vshrl.u32 %v2745, 7
    %v2747 = vsub.s32 0, %v2746
    %v2748 = vrot.slane %v104, %v2747
    %v2749 = vmul.f32 %v2741, %v2748
    %v2750 = vmul.f32 %v2742, %v2748
    %v2751 = vmul.f32 %v2743, %v2748
    %v2752 = vmul.f32 %v2744, %v2748
    %v2753 = vlaneseq
    %v2754 = vshrl.u32 %v2753, 7
    %v2755 = vsub.s32 0, %v2754
    %v2756 = vrot.slane %v105, %v2755
    %v2757 = vadd.f32 %v2749, %v2756
    %v2758 = vadd.f32 %v2750, %v2756
    %v2759 = vadd.f32 %v2751, %v2756
    %v2760 = vadd.f32 %v2752, %v2756
    %v2761 = vld [vmem:[#allocation8] sm:$0xff]
    %v2762 = vld [vmem:[#allocation8 + $0x8] sm:$0xff]
    %v2763 = vld [vmem:[#allocation8 + $0x10] sm:$0xff]
    %v2764 = vld [vmem:[#allocation8 + $0x18] sm:$0xff]
    %v2765 = vld [vmem:[#allocation8 + $0x20] sm:$0xff]
    %v2766 = vld [vmem:[#allocation8 + $0x28] sm:$0xff]
    %v2767 = vld [vmem:[#allocation8 + $0x30] sm:$0xff]
    %v2768 = vld [vmem:[#allocation8 + $0x38] sm:$0xff]
    %v2769 = vld [vmem:[#allocation8 + $0x40] sm:$0xff]
    %v2770 = vld [vmem:[#allocation8 + $0x48] sm:$0xff]
    %v2771 = vld [vmem:[#allocation8 + $0x50] sm:$0xff]
    %v2772 = vld [vmem:[#allocation8 + $0x58] sm:$0xff]
    %v2773 = vld [vmem:[#allocation8 + $0x60] sm:$0xff]
    %v2774 = vld [vmem:[#allocation8 + $0x68] sm:$0xff]
    %v2775 = vld [vmem:[#allocation8 + $0x70] sm:$0xff]
    %v2776 = vld [vmem:[#allocation8 + $0x78] sm:$0xff]
    %v2777 = vld [vmem:[#allocation8 + $0x80] sm:$0xff]
    %v2778 = vld [vmem:[#allocation8 + $0x88] sm:$0xff]
    %v2779 = vld [vmem:[#allocation8 + $0x90] sm:$0xff]
    %v2780 = vld [vmem:[#allocation8 + $0x98] sm:$0xff]
    %v2781 = vld [vmem:[#allocation8 + $0xa0] sm:$0xff]
    %v2782 = vld [vmem:[#allocation8 + $0xa8] sm:$0xff]
    %v2783 = vld [vmem:[#allocation8 + $0xb0] sm:$0xff]
    %v2784 = vld [vmem:[#allocation8 + $0xb8] sm:$0xff]
    %v2785 = vld [vmem:[#allocation8 + $0xc0] sm:$0xff]
    %v2786 = vld [vmem:[#allocation8 + $0xc8] sm:$0xff]
    %v2787 = vld [vmem:[#allocation8 + $0xd0] sm:$0xff]
    %v2788 = vld [vmem:[#allocation8 + $0xd8] sm:$0xff]
    %v2789 = vld [vmem:[#allocation8 + $0xe0] sm:$0xff]
    %v2790 = vld [vmem:[#allocation8 + $0xe8] sm:$0xff]
    %v2791 = vld [vmem:[#allocation8 + $0xf0] sm:$0xff]
    %v2792 = vld [vmem:[#allocation8 + $0xf8] sm:$0xff]
    %v2793 = vld [vmem:[#allocation8 + $0x100] sm:$0xff]
    %v2794 = vld [vmem:[#allocation8 + $0x108] sm:$0xff]
    %v2795 = vld [vmem:[#allocation8 + $0x110] sm:$0xff]
    %v2796 = vld [vmem:[#allocation8 + $0x118] sm:$0xff]
    %v2797 = vld [vmem:[#allocation8 + $0x120] sm:$0xff]
    %v2798 = vld [vmem:[#allocation8 + $0x128] sm:$0xff]
    %v2799 = vld [vmem:[#allocation8 + $0x130] sm:$0xff]
    %v2800 = vld [vmem:[#allocation8 + $0x138] sm:$0xff]
    %v2801 = vld [vmem:[#allocation8 + $0x140] sm:$0xff]
    %v2802 = vld [vmem:[#allocation8 + $0x148] sm:$0xff]
    %v2803 = vld [vmem:[#allocation8 + $0x150] sm:$0xff]
    %v2804 = vld [vmem:[#allocation8 + $0x158] sm:$0xff]
    %v2805 = vld [vmem:[#allocation8 + $0x160] sm:$0xff]
    %v2806 = vld [vmem:[#allocation8 + $0x168] sm:$0xff]
    %v2807 = vld [vmem:[#allocation8 + $0x170] sm:$0xff]
    %v2808 = vld [vmem:[#allocation8 + $0x178] sm:$0xff]
    %v2809 = vld [vmem:[#allocation8 + $0x180] sm:$0xff]
    %v2810 = vld [vmem:[#allocation8 + $0x188] sm:$0xff]
    %v2811 = vld [vmem:[#allocation8 + $0x190] sm:$0xff]
    %v2812 = vld [vmem:[#allocation8 + $0x198] sm:$0xff]
    %v2813 = vld [vmem:[#allocation8 + $0x1a0] sm:$0xff]
    %v2814 = vld [vmem:[#allocation8 + $0x1a8] sm:$0xff]
    %v2815 = vld [vmem:[#allocation8 + $0x1b0] sm:$0xff]
    %v2816 = vld [vmem:[#allocation8 + $0x1b8] sm:$0xff]
    %v2817 = vld [vmem:[#allocation8 + $0x1c0] sm:$0xff]
    %v2818 = vld [vmem:[#allocation8 + $0x1c8] sm:$0xff]
    %v2819 = vld [vmem:[#allocation8 + $0x1d0] sm:$0xff]
    %v2820 = vld [vmem:[#allocation8 + $0x1d8] sm:$0xff]
    %v2821 = vld [vmem:[#allocation8 + $0x1e0] sm:$0xff]
    %v2822 = vld [vmem:[#allocation8 + $0x1e8] sm:$0xff]
    %v2823 = vld [vmem:[#allocation8 + $0x1f0] sm:$0xff]
    %v2824 = vld [vmem:[#allocation8 + $0x1f8] sm:$0xff]
    %v2825 = vld [vmem:[%s5] sm:$0xf]
    %v2827 = vlaneseq
    %v2828 = vshrl.u32 %v2827, 7
    %v2829 = vsub.s32 0, %v2828
    %v2830 = vrot.slane %v2825, %v2829
    %v2831 = vlaneseq
    %v2832 = vshrl.u32 %v2831, 7
    %v2833 = vsub.s32 1, %v2832
    %v2834 = vrot.slane %v2825, %v2833
    %v2835 = vlaneseq
    %v2836 = vshrl.u32 %v2835, 7
    %v2837 = vsub.s32 2, %v2836
    %v2838 = vrot.slane %v2825, %v2837
    %v2839 = vlaneseq
    %v2840 = vshrl.u32 %v2839, 7
    %v2841 = vsub.s32 3, %v2840
    %v2842 = vrot.slane %v2825, %v2841
    %2847 = vmatprep.subr.mxu0 %v2762
    %2848 = vmatpush1.msra.mxu0 %v2761
    %2849 = vmatprep.subr.mxu0 %v2766
    %2850 = vmatpush1.msra.mxu0 %v2765
    %2851 = vmatprep.subr.mxu0 %v2770
    %2852 = vmatpush1.msra.mxu0 %v2769
    %2853 = vmatprep.subr.mxu0 %v2774
    %2854 = vmatpush1.msra.mxu0 %v2773
    %2855 = vmatprep.subr.mxu0 %v2778
    %2856 = vmatpush1.msra.mxu0 %v2777
    %2857 = vmatprep.subr.mxu0 %v2782
    %2858 = vmatpush1.msra.mxu0 %v2781
    %2859 = vmatprep.subr.mxu0 %v2786
    %2860 = vmatpush1.msra.mxu0 %v2785
    %2861 = vmatprep.subr.mxu0 %v2790
    %2862 = vmatpush1.msra.mxu0 %v2789
    %2863 = vmatprep.subr.mxu0 %v2794
    %2864 = vmatpush1.msra.mxu0 %v2793
    %2865 = vmatprep.subr.mxu0 %v2798
    %2866 = vmatpush1.msra.mxu0 %v2797
    %2867 = vmatprep.subr.mxu0 %v2802
    %2868 = vmatpush1.msra.mxu0 %v2801
    %2869 = vmatprep.subr.mxu0 %v2806
    %2870 = vmatpush1.msra.mxu0 %v2805
    %2871 = vmatprep.subr.mxu0 %v2810
    %2872 = vmatpush1.msra.mxu0 %v2809
    %2873 = vmatprep.subr.mxu0 %v2814
    %2874 = vmatpush1.msra.mxu0 %v2813
    %2875 = vmatprep.subr.mxu0 %v2818
    %2876 = vmatpush1.msra.mxu0 %v2817
    %2877 = vmatprep.subr.mxu0 %v2822
    %2878 = vmatpush1.msra.mxu0 %v2821
    %2879 = vmatprep.subr.mxu0 0.0
    %2880 = vmatpush1.msra.mxu0 0.0
    %2881 = vmatprep.subr.mxu0 0.0
    %2882 = vmatpush1.msra.mxu0 0.0
    %2883 = vmatprep.subr.mxu0 0.0
    %2884 = vmatpush1.msra.mxu0 0.0
    %2885 = vmatprep.subr.mxu0 0.0
    %2886 = vmatpush1.msra.mxu0 0.0
    %2887 = vmatprep.subr.mxu0 0.0
    %2888 = vmatpush1.msra.mxu0 0.0
    %2889 = vmatprep.subr.mxu0 0.0
    %2890 = vmatpush1.msra.mxu0 0.0
    %2891 = vmatprep.subr.mxu0 0.0
    %2892 = vmatpush1.msra.mxu0 0.0
    %2893 = vmatprep.subr.mxu0 0.0
    %2894 = vmatpush1.msra.mxu0 0.0
    %2895 = vmatprep.subr.mxu0 0.0
    %2896 = vmatpush1.msra.mxu0 0.0
    %2897 = vmatprep.subr.mxu0 0.0
    %2898 = vmatpush1.msra.mxu0 0.0
    %2899 = vmatprep.subr.mxu0 0.0
    %2900 = vmatpush1.msra.mxu0 0.0
    %2901 = vmatprep.subr.mxu0 0.0
    %2902 = vmatpush1.msra.mxu0 0.0
    %2903 = vmatprep.subr.mxu0 0.0
    %2904 = vmatpush1.msra.mxu0 0.0
    %2905 = vmatprep.subr.mxu0 0.0
    %2906 = vmatpush1.msra.mxu0 0.0
    %2907 = vmatprep.subr.mxu0 0.0
    %2908 = vmatpush1.msra.mxu0 0.0
    %2909 = vmatprep.subr.mxu0 0.0
    %2910 = vmatpush1.msra.mxu0 0.0
    %2911 = vmatprep.mubr.f32.mxu0 0.0
    %2912 = vmatmul.mubr.f32.gmra.mrb[0].mxu0 %v2757
    %v2913 = vpop.f32.mrb[0].mxu0
    %v2914 = vadd.f32 %v2830, %v2913
    %v2915 = vpop.f32.mrb[0].mxu0
    %v2916 = vadd.f32 %v2834, %v2915
    %2917 = vmatprep.mubr.f32.mxu0 0.0
    %2918 = vmatmul.mubr.f32.gmra.mrb[0].mxu0 %v2758
    %v2919 = vpop.f32.mrb[0].mxu0
    %v2920 = vadd.f32 %v2830, %v2919
    %v2921 = vpop.f32.mrb[0].mxu0
    %v2922 = vadd.f32 %v2834, %v2921
    %2923 = vmatprep.mubr.f32.mxu0 0.0
    %2924 = vmatmul.mubr.f32.gmra.mrb[0].mxu0 %v2759
    %v2925 = vpop.f32.mrb[0].mxu0
    %v2926 = vadd.f32 %v2830, %v2925
    %v2927 = vpop.f32.mrb[0].mxu0
    %v2928 = vadd.f32 %v2834, %v2927
    %2929 = vmatprep.mubr.f32.mxu0 0.0
    %2930 = vmatmul.mubr.f32.gmra.mrb[0].mxu0 %v2760
    %v2931 = vpop.f32.mrb[0].mxu0
    %v2932 = vadd.f32 %v2830, %v2931
    %v2933 = vpop.f32.mrb[0].mxu0
    %v2934 = vadd.f32 %v2834, %v2933
    %2935 = vdwg.mxu0
    %2936 = vmatprep.subr.mxu0 %v2764
    %2937 = vmatpush1.msra.mxu0 %v2763
    %2938 = vmatprep.subr.mxu0 %v2768
    %2939 = vmatpush1.msra.mxu0 %v2767
    %2940 = vmatprep.subr.mxu0 %v2772
    %2941 = vmatpush1.msra.mxu0 %v2771
    %2942 = vmatprep.subr.mxu0 %v2776
    %2943 = vmatpush1.msra.mxu0 %v2775
    %2944 = vmatprep.subr.mxu0 %v2780
    %2945 = vmatpush1.msra.mxu0 %v2779
    %2946 = vmatprep.subr.mxu0 %v2784
    %2947 = vmatpush1.msra.mxu0 %v2783
    %2948 = vmatprep.subr.mxu0 %v2788
    %2949 = vmatpush1.msra.mxu0 %v2787
    %2950 = vmatprep.subr.mxu0 %v2792
    %2951 = vmatpush1.msra.mxu0 %v2791
    %2952 = vmatprep.subr.mxu0 %v2796
    %2953 = vmatpush1.msra.mxu0 %v2795
    %2954 = vmatprep.subr.mxu0 %v2800
    %2955 = vmatpush1.msra.mxu0 %v2799
    %2956 = vmatprep.subr.mxu0 %v2804
    %2957 = vmatpush1.msra.mxu0 %v2803
    %2958 = vmatprep.subr.mxu0 %v2808
    %2959 = vmatpush1.msra.mxu0 %v2807
    %2960 = vmatprep.subr.mxu0 %v2812
    %2961 = vmatpush1.msra.mxu0 %v2811
    %2962 = vmatprep.subr.mxu0 %v2816
    %2963 = vmatpush1.msra.mxu0 %v2815
    %2964 = vmatprep.subr.mxu0 %v2820
    %2965 = vmatpush1.msra.mxu0 %v2819
    %2966 = vmatprep.subr.mxu0 %v2824
    %2967 = vmatpush1.msra.mxu0 %v2823
    %2968 = vmatprep.subr.mxu0 0.0
    %2969 = vmatpush1.msra.mxu0 0.0
    %2970 = vmatprep.subr.mxu0 0.0
    %2971 = vmatpush1.msra.mxu0 0.0
    %2972 = vmatprep.subr.mxu0 0.0
    %2973 = vmatpush1.msra.mxu0 0.0
    %2974 = vmatprep.subr.mxu0 0.0
    %2975 = vmatpush1.msra.mxu0 0.0
    %2976 = vmatprep.subr.mxu0 0.0
    %2977 = vmatpush1.msra.mxu0 0.0
    %2978 = vmatprep.subr.mxu0 0.0
    %2979 = vmatpush1.msra.mxu0 0.0
    %2980 = vmatprep.subr.mxu0 0.0
    %2981 = vmatpush1.msra.mxu0 0.0
    %2982 = vmatprep.subr.mxu0 0.0
    %2983 = vmatpush1.msra.mxu0 0.0
    %2984 = vmatprep.subr.mxu0 0.0
    %2985 = vmatpush1.msra.mxu0 0.0
    %2986 = vmatprep.subr.mxu0 0.0
    %2987 = vmatpush1.msra.mxu0 0.0
    %2988 = vmatprep.subr.mxu0 0.0
    %2989 = vmatpush1.msra.mxu0 0.0
    %2990 = vmatprep.subr.mxu0 0.0
    %2991 = vmatpush1.msra.mxu0 0.0
    %2992 = vmatprep.subr.mxu0 0.0
    %2993 = vmatpush1.msra.mxu0 0.0
    %2994 = vmatprep.subr.mxu0 0.0
    %2995 = vmatpush1.msra.mxu0 0.0
    %2996 = vmatprep.subr.mxu0 0.0
    %2997 = vmatpush1.msra.mxu0 0.0
    %2998 = vmatprep.subr.mxu0 0.0
    %2999 = vmatpush1.msra.mxu0 0.0
    %3000 = vmatprep.mubr.f32.mxu0 0.0
    %3001 = vmatmul.mubr.f32.gmra.mrb[0].mxu0 %v2757
    %v3002 = vpop.f32.mrb[0].mxu0
    %v3003 = vadd.f32 %v2838, %v3002
    %v3004 = vpop.f32.mrb[0].mxu0
    %v3005 = vadd.f32 %v2842, %v3004
    %3006 = vmatprep.mubr.f32.mxu0 0.0
    %3007 = vmatmul.mubr.f32.gmra.mrb[0].mxu0 %v2758
    %v3008 = vpop.f32.mrb[0].mxu0
    %v3009 = vadd.f32 %v2838, %v3008
    %v3010 = vpop.f32.mrb[0].mxu0
    %v3011 = vadd.f32 %v2842, %v3010
    %3012 = vmatprep.mubr.f32.mxu0 0.0
    %3013 = vmatmul.mubr.f32.gmra.mrb[0].mxu0 %v2759
    %v3014 = vpop.f32.mrb[0].mxu0
    %v3015 = vadd.f32 %v2838, %v3014
    %v3016 = vpop.f32.mrb[0].mxu0
    %v3017 = vadd.f32 %v2842, %v3016
    %3018 = vmatprep.mubr.f32.mxu0 0.0
    %3019 = vmatmul.mubr.f32.gmra.mrb[0].mxu0 %v2760
    %v3020 = vpop.f32.mrb[0].mxu0
    %v3021 = vadd.f32 %v2838, %v3020
    %v3022 = vpop.f32.mrb[0].mxu0
    %v3023 = vadd.f32 %v2842, %v3022
    %3024 = vdwg.mxu0
    %v3025 = vmax.f32 %v2914, 0.0
    %v3026 = vmax.f32 %v2916, 0.0
    %v3027 = vmax.f32 %v3003, 0.0
    %v3028 = vmax.f32 %v3005, 0.0
    %v3029 = vmax.f32 %v2920, 0.0
    %v3030 = vmax.f32 %v2922, 0.0
    %v3031 = vmax.f32 %v3009, 0.0
    %v3032 = vmax.f32 %v3011, 0.0
    %v3033 = vmax.f32 %v2926, 0.0
    %v3034 = vmax.f32 %v2928, 0.0
    %v3035 = vmax.f32 %v3015, 0.0
    %v3036 = vmax.f32 %v3017, 0.0
    %v3037 = vmax.f32 %v2932, 0.0
    %v3038 = vmax.f32 %v2934, 0.0
    %v3039 = vmax.f32 %v3021, 0.0
    %v3040 = vmax.f32 %v3023, 0.0
    %v3041 = vld [vmem:[#allocation10] sm:$0xff]
    %v3042 = vld [vmem:[#allocation10 + $0x8] sm:$0xff]
    %v3043 = vld [vmem:[#allocation10 + $0x10] sm:$0xff]
    %v3044 = vld [vmem:[#allocation10 + $0x18] sm:$0xff]
    %v3045 = vld [vmem:[#allocation10 + $0x20] sm:$0xff]
    %v3046 = vld [vmem:[#allocation10 + $0x28] sm:$0xff]
    %v3047 = vld [vmem:[#allocation10 + $0x30] sm:$0xff]
    %v3048 = vld [vmem:[#allocation10 + $0x38] sm:$0xff]
    %v3049 = vld [vmem:[#allocation10 + $0x40] sm:$0xff]
    %v3050 = vld [vmem:[#allocation10 + $0x48] sm:$0xff]
    %v3051 = vld [vmem:[#allocation10 + $0x50] sm:$0xff]
    %v3052 = vld [vmem:[#allocation10 + $0x58] sm:$0xff]
    %v3053 = vld [vmem:[#allocation10 + $0x60] sm:$0xff]
    %v3054 = vld [vmem:[#allocation10 + $0x68] sm:$0xff]
    %v3055 = vld [vmem:[#allocation10 + $0x70] sm:$0xff]
    %v3056 = vld [vmem:[#allocation10 + $0x78] sm:$0xff]
    %v3057 = vld [vmem:[#allocation10 + $0x80] sm:$0xff]
    %v3058 = vld [vmem:[#allocation10 + $0x88] sm:$0xff]
    %v3059 = vld [vmem:[#allocation10 + $0x90] sm:$0xff]
    %v3060 = vld [vmem:[#allocation10 + $0x98] sm:$0xff]
    %v3061 = vld [vmem:[#allocation10 + $0xa0] sm:$0xff]
    %v3062 = vld [vmem:[#allocation10 + $0xa8] sm:$0xff]
    %v3063 = vld [vmem:[#allocation10 + $0xb0] sm:$0xff]
    %v3064 = vld [vmem:[#allocation10 + $0xb8] sm:$0xff]
    %v3065 = vld [vmem:[#allocation10 + $0xc0] sm:$0xff]
    %v3066 = vld [vmem:[#allocation10 + $0xc8] sm:$0xff]
    %v3067 = vld [vmem:[#allocation10 + $0xd0] sm:$0xff]
    %v3068 = vld [vmem:[#allocation10 + $0xd8] sm:$0xff]
    %v3069 = vld [vmem:[#allocation10 + $0xe0] sm:$0xff]
    %v3070 = vld [vmem:[#allocation10 + $0xe8] sm:$0xff]
    %v3071 = vld [vmem:[#allocation10 + $0xf0] sm:$0xff]
    %v3072 = vld [vmem:[#allocation10 + $0xf8] sm:$0xff]
    %v3073 = vld [vmem:[#allocation10 + $0x100] sm:$0xff]
    %v3074 = vld [vmem:[#allocation10 + $0x108] sm:$0xff]
    %v3075 = vld [vmem:[#allocation10 + $0x110] sm:$0xff]
    %v3076 = vld [vmem:[#allocation10 + $0x118] sm:$0xff]
    %v3077 = vld [vmem:[#allocation10 + $0x120] sm:$0xff]
    %v3078 = vld [vmem:[#allocation10 + $0x128] sm:$0xff]
    %v3079 = vld [vmem:[#allocation10 + $0x130] sm:$0xff]
    %v3080 = vld [vmem:[#allocation10 + $0x138] sm:$0xff]
    %v3081 = vld [vmem:[#allocation10 + $0x140] sm:$0xff]
    %v3082 = vld [vmem:[#allocation10 + $0x148] sm:$0xff]
    %v3083 = vld [vmem:[#allocation10 + $0x150] sm:$0xff]
    %v3084 = vld [vmem:[#allocation10 + $0x158] sm:$0xff]
    %v3085 = vld [vmem:[#allocation10 + $0x160] sm:$0xff]
    %v3086 = vld [vmem:[#allocation10 + $0x168] sm:$0xff]
    %v3087 = vld [vmem:[#allocation10 + $0x170] sm:$0xff]
    %v3088 = vld [vmem:[#allocation10 + $0x178] sm:$0xff]
    %v3089 = vld [vmem:[#allocation10 + $0x180] sm:$0xff]
    %v3090 = vld [vmem:[#allocation10 + $0x188] sm:$0xff]
    %v3091 = vld [vmem:[#allocation10 + $0x190] sm:$0xff]
    %v3092 = vld [vmem:[#allocation10 + $0x198] sm:$0xff]
    %v3093 = vld [vmem:[#allocation10 + $0x1a0] sm:$0xff]
    %v3094 = vld [vmem:[#allocation10 + $0x1a8] sm:$0xff]
    %v3095 = vld [vmem:[#allocation10 + $0x1b0] sm:$0xff]
    %v3096 = vld [vmem:[#allocation10 + $0x1b8] sm:$0xff]
    %v3097 = vld [vmem:[#allocation10 + $0x1c0] sm:$0xff]
    %v3098 = vld [vmem:[#allocation10 + $0x1c8] sm:$0xff]
    %v3099 = vld [vmem:[#allocation10 + $0x1d0] sm:$0xff]
    %v3100 = vld [vmem:[#allocation10 + $0x1d8] sm:$0xff]
    %v3101 = vld [vmem:[#allocation10 + $0x1e0] sm:$0xff]
    %v3102 = vld [vmem:[#allocation10 + $0x1e8] sm:$0xff]
    %v3103 = vld [vmem:[#allocation10 + $0x1f0] sm:$0xff]
    %v3104 = vld [vmem:[#allocation10 + $0x1f8] sm:$0xff]
    %v3105 = vlaneseq
    %v3106 = vshrl.u32 %v3105, 7
    %v3107 = vsub.s32 0, %v3106
    %v3108 = vrot.slane %v107, %v3107
    %3109 = vmatprep.subr.mxu0 0.0
    %3110 = vmatpush1.msra.mxu0 %v3041
    %3111 = vmatprep.subr.mxu0 0.0
    %3112 = vmatpush1.msra.mxu0 %v3042
    %3113 = vmatprep.subr.mxu0 0.0
    %3114 = vmatpush1.msra.mxu0 %v3043
    %3115 = vmatprep.subr.mxu0 0.0
    %3116 = vmatpush1.msra.mxu0 %v3044
    %3117 = vmatprep.subr.mxu0 0.0
    %3118 = vmatpush1.msra.mxu0 %v3045
    %3119 = vmatprep.subr.mxu0 0.0
    %3120 = vmatpush1.msra.mxu0 %v3046
    %3121 = vmatprep.subr.mxu0 0.0
    %3122 = vmatpush1.msra.mxu0 %v3047
    %3123 = vmatprep.subr.mxu0 0.0
    %3124 = vmatpush1.msra.mxu0 %v3048
    %3125 = vmatprep.subr.mxu0 0.0
    %3126 = vmatpush1.msra.mxu0 %v3049
    %3127 = vmatprep.subr.mxu0 0.0
    %3128 = vmatpush1.msra.mxu0 %v3050
    %3129 = vmatprep.subr.mxu0 0.0
    %3130 = vmatpush1.msra.mxu0 %v3051
    %3131 = vmatprep.subr.mxu0 0.0
    %3132 = vmatpush1.msra.mxu0 %v3052
    %3133 = vmatprep.subr.mxu0 0.0
    %3134 = vmatpush1.msra.mxu0 %v3053
    %3135 = vmatprep.subr.mxu0 0.0
    %3136 = vmatpush1.msra.mxu0 %v3054
    %3137 = vmatprep.subr.mxu0 0.0
    %3138 = vmatpush1.msra.mxu0 %v3055
    %3139 = vmatprep.subr.mxu0 0.0
    %3140 = vmatpush1.msra.mxu0 %v3056
    %3141 = vmatprep.subr.mxu0 0.0
    %3142 = vmatpush1.msra.mxu0 %v3057
    %3143 = vmatprep.subr.mxu0 0.0
    %3144 = vmatpush1.msra.mxu0 %v3058
    %3145 = vmatprep.subr.mxu0 0.0
    %3146 = vmatpush1.msra.mxu0 %v3059
    %3147 = vmatprep.subr.mxu0 0.0
    %3148 = vmatpush1.msra.mxu0 %v3060
    %3149 = vmatprep.subr.mxu0 0.0
    %3150 = vmatpush1.msra.mxu0 %v3061
    %3151 = vmatprep.subr.mxu0 0.0
    %3152 = vmatpush1.msra.mxu0 %v3062
    %3153 = vmatprep.subr.mxu0 0.0
    %3154 = vmatpush1.msra.mxu0 %v3063
    %3155 = vmatprep.subr.mxu0 0.0
    %3156 = vmatpush1.msra.mxu0 %v3064
    %3157 = vmatprep.subr.mxu0 0.0
    %3158 = vmatpush1.msra.mxu0 %v3065
    %3159 = vmatprep.subr.mxu0 0.0
    %3160 = vmatpush1.msra.mxu0 %v3066
    %3161 = vmatprep.subr.mxu0 0.0
    %3162 = vmatpush1.msra.mxu0 %v3067
    %3163 = vmatprep.subr.mxu0 0.0
    %3164 = vmatpush1.msra.mxu0 %v3068
    %3165 = vmatprep.subr.mxu0 0.0
    %3166 = vmatpush1.msra.mxu0 %v3069
    %3167 = vmatprep.subr.mxu0 0.0
    %3168 = vmatpush1.msra.mxu0 %v3070
    %3169 = vmatprep.subr.mxu0 0.0
    %3170 = vmatpush1.msra.mxu0 %v3071
    %3171 = vmatprep.subr.mxu0 0.0
    %3172 = vmatpush1.msra.mxu0 %v3072
    %3173 = vmatprep.mubr.f32.mxu0 %v3026
    %3174 = vmatmul.mubr.f32.gmra.mrb[0].mxu0 %v3025
    %v3175 = vpop.f32.mrb[0].mxu0
    %v3176 = vadd.f32 %v3108, %v3175
    %v3177 = vpop.f32.mrb[0].mxu0
    %3178 = vmatprep.mubr.f32.mxu0 %v3030
    %3179 = vmatmul.mubr.f32.gmra.mrb[0].mxu0 %v3029
    %v3180 = vpop.f32.mrb[0].mxu0
    %v3181 = vadd.f32 %v3108, %v3180
    %v3182 = vpop.f32.mrb[0].mxu0
    %3183 = vmatprep.mubr.f32.mxu0 %v3034
    %3184 = vmatmul.mubr.f32.gmra.mrb[0].mxu0 %v3033
    %v3185 = vpop.f32.mrb[0].mxu0
    %v3186 = vadd.f32 %v3108, %v3185
    %v3187 = vpop.f32.mrb[0].mxu0
    %3188 = vmatprep.mubr.f32.mxu0 %v3038
    %3189 = vmatmul.mubr.f32.gmra.mrb[0].mxu0 %v3037
    %v3190 = vpop.f32.mrb[0].mxu0
    %v3191 = vadd.f32 %v3108, %v3190
    %v3192 = vpop.f32.mrb[0].mxu0
    %3193 = vdwg.mxu0
    %3194 = vmatprep.subr.mxu0 0.0
    %3195 = vmatpush1.msra.mxu0 %v3073
    %3196 = vmatprep.subr.mxu0 0.0
    %3197 = vmatpush1.msra.mxu0 %v3074
    %3198 = vmatprep.subr.mxu0 0.0
    %3199 = vmatpush1.msra.mxu0 %v3075
    %3200 = vmatprep.subr.mxu0 0.0
    %3201 = vmatpush1.msra.mxu0 %v3076
    %3202 = vmatprep.subr.mxu0 0.0
    %3203 = vmatpush1.msra.mxu0 %v3077
    %3204 = vmatprep.subr.mxu0 0.0
    %3205 = vmatpush1.msra.mxu0 %v3078
    %3206 = vmatprep.subr.mxu0 0.0
    %3207 = vmatpush1.msra.mxu0 %v3079
    %3208 = vmatprep.subr.mxu0 0.0
    %3209 = vmatpush1.msra.mxu0 %v3080
    %3210 = vmatprep.subr.mxu0 0.0
    %3211 = vmatpush1.msra.mxu0 %v3081
    %3212 = vmatprep.subr.mxu0 0.0
    %3213 = vmatpush1.msra.mxu0 %v3082
    %3214 = vmatprep.subr.mxu0 0.0
    %3215 = vmatpush1.msra.mxu0 %v3083
    %3216 = vmatprep.subr.mxu0 0.0
    %3217 = vmatpush1.msra.mxu0 %v3084
    %3218 = vmatprep.subr.mxu0 0.0
    %3219 = vmatpush1.msra.mxu0 %v3085
    %3220 = vmatprep.subr.mxu0 0.0
    %3221 = vmatpush1.msra.mxu0 %v3086
    %3222 = vmatprep.subr.mxu0 0.0
    %3223 = vmatpush1.msra.mxu0 %v3087
    %3224 = vmatprep.subr.mxu0 0.0
    %3225 = vmatpush1.msra.mxu0 %v3088
    %3226 = vmatprep.subr.mxu0 0.0
    %3227 = vmatpush1.msra.mxu0 %v3089
    %3228 = vmatprep.subr.mxu0 0.0
    %3229 = vmatpush1.msra.mxu0 %v3090
    %3230 = vmatprep.subr.mxu0 0.0
    %3231 = vmatpush1.msra.mxu0 %v3091
    %3232 = vmatprep.subr.mxu0 0.0
    %3233 = vmatpush1.msra.mxu0 %v3092
    %3234 = vmatprep.subr.mxu0 0.0
    %3235 = vmatpush1.msra.mxu0 %v3093
    %3236 = vmatprep.subr.mxu0 0.0
    %3237 = vmatpush1.msra.mxu0 %v3094
    %3238 = vmatprep.subr.mxu0 0.0
    %3239 = vmatpush1.msra.mxu0 %v3095
    %3240 = vmatprep.subr.mxu0 0.0
    %3241 = vmatpush1.msra.mxu0 %v3096
    %3242 = vmatprep.subr.mxu0 0.0
    %3243 = vmatpush1.msra.mxu0 %v3097
    %3244 = vmatprep.subr.mxu0 0.0
    %3245 = vmatpush1.msra.mxu0 %v3098
    %3246 = vmatprep.subr.mxu0 0.0
    %3247 = vmatpush1.msra.mxu0 %v3099
    %3248 = vmatprep.subr.mxu0 0.0
    %3249 = vmatpush1.msra.mxu0 %v3100
    %3250 = vmatprep.subr.mxu0 0.0
    %3251 = vmatpush1.msra.mxu0 %v3101
    %3252 = vmatprep.subr.mxu0 0.0
    %3253 = vmatpush1.msra.mxu0 %v3102
    %3254 = vmatprep.subr.mxu0 0.0
    %3255 = vmatpush1.msra.mxu0 %v3103
    %3256 = vmatprep.subr.mxu0 0.0
    %3257 = vmatpush1.msra.mxu0 %v3104
    %3258 = vmatprep.mubr.f32.mxu0 %v3028
    %3259 = vmatmul.mubr.f32.gmra.mrb[0].mxu0 %v3027
    %v3260 = vpop.f32.mrb[0].mxu0
    %v3261 = vadd.f32 %v3176, %v3260
    %v3262 = vpop.f32.mrb[0].mxu0
    %3263 = vmatprep.mubr.f32.mxu0 %v3032
    %3264 = vmatmul.mubr.f32.gmra.mrb[0].mxu0 %v3031
    %v3265 = vpop.f32.mrb[0].mxu0
    %v3266 = vadd.f32 %v3181, %v3265
    %v3267 = vpop.f32.mrb[0].mxu0
    %3268 = vmatprep.mubr.f32.mxu0 %v3036
    %3269 = vmatmul.mubr.f32.gmra.mrb[0].mxu0 %v3035
    %v3270 = vpop.f32.mrb[0].mxu0
    %v3271 = vadd.f32 %v3186, %v3270
    %v3272 = vpop.f32.mrb[0].mxu0
    %3273 = vmatprep.mubr.f32.mxu0 %v3040
    %3274 = vmatmul.mubr.f32.gmra.mrb[0].mxu0 %v3039
    %v3275 = vpop.f32.mrb[0].mxu0
    %v3276 = vadd.f32 %v3191, %v3275
    %v3277 = vpop.f32.mrb[0].mxu0
    %3278 = vdwg.mxu0
    %v3279 = vadd.f32 %v2697, %v3261
    %v3280 = vadd.f32 %v2698, %v3266
    %v3281 = vadd.f32 %v2699, %v3271
    %v3282 = vadd.f32 %v2700, %v3276
    %3283 = vst [vmem:[#allocation11] sm:$0xff] %v3279
    %3284 = vst [vmem:[#allocation11 + $0x8] sm:$0xff] %v3280
    %3285 = vst [vmem:[#allocation11 + $0x10] sm:$0xff] %v3281
    %3286 = vst [vmem:[#allocation11 + $0x18] sm:$0xff] %v3282
    // Predicated region
    $region54: #{tpu_custom_call.1} parent=1 // pred_check
      _
    $region55: #{tpu_custom_call.1} parent=1 // pred_check_branch
      %3288 = sbr.rel (0) target = $region57
    $region56: #{tpu_custom_call.1} parent=1 // pred_region
      %s3290 = ssub.s32 512, 512
      %3291 = vsyncadd [#allocation4], %s3290
      %s3292 = sshll.u32 [#allocation11], 4
      %s3293 = int_to_ptr.vmem [resolvable:$true] %s3292
      %3298 = dma.vmem_to_hbm [thread:$0]  %s3293, 512, %s8, [#allocation4], 128, 128, 8
    $region57: #{tpu_custom_call.1} parent=1 // pred_fallthru
      _
    // Predicated region
    $region58: #{tpu_custom_call.1} parent=1 // pred_check
      _
    $region59: #{tpu_custom_call.1} parent=1 // pred_check_branch
      %3300 = sbr.rel (0) target = $region61
    $region60: #{tpu_custom_call.1} parent=1 // pred_region
      %3301 = dma.done [#allocation4], 512
    $region61: #{tpu_custom_call.1} parent=1 // pred_fallthru
      _
    %3302 = vsyncpa [#allocation3], 1
    %3303 = vsyncpa [#allocation6], 1
    %3304 = vsyncpa [#allocation9], 1
    %3305 = vsyncpa [#allocation4], 1

</llo_original>
